<compile_context>
chip_gen: v7x
topology: tpu7x:2x2x1
jax: 0.10.0
libtpu: 0.0.40
codegen_flags: <defaults>
</compile_context>

<pallas_src>
import functools

import jax
import jax.numpy as jnp
from jax import lax
from jax.experimental import pallas as pl
from jax.experimental.pallas import tpu as pltpu

BN_EPS = 1e-5
LANE = 128


# --------------------------------------------------------------------------
# kernels
# --------------------------------------------------------------------------
def _accumulate_conv(x_ref, w_ref, acc_ref, *, K, TH, W, Cin):
    """acc <- sum_{dy,dx} window(x, dy, dx) @ Wpack[dy*K+dx]   (f32 accumulate).

    x_ref : (1, TH+2p, W+2p, Cin)  halo'd input row block (bf16)
    w_ref : (K*K, Cin, 2*Cp)       packed [conv | identity] weights (bf16)
    acc   : (TH*W, 2*Cp)           f32 VMEM scratch
    """
    TM = TH * W
    xrow = x_ref[0]                                       # (TH+2p, W+2p, Cin)
    for t in range(K * K):
        dy, dx = t // K, t % K
        xs = xrow[dy:dy + TH, dx:dx + W, :].reshape(TM, Cin)
        contrib = jnp.dot(xs, w_ref[t], preferred_element_type=jnp.float32)
        if t == 0:
            acc_ref[...] = contrib
        else:
            acc_ref[...] += contrib


def _stats_kernel(x_ref, w_ref, stats_ref, acc_ref, *, K, TH, W, Cin):
    """Pass 1: per-tile per-channel sum and sum-of-squares of both branches."""
    _accumulate_conv(x_ref, w_ref, acc_ref, K=K, TH=TH, W=W, Cin=Cin)
    acc = acc_ref[...]                                    # (TM, 2*Cp) f32
    s = jnp.sum(acc, axis=0, keepdims=True)               # (1, 2*Cp)
    sq = jnp.sum(acc * acc, axis=0, keepdims=True)        # (1, 2*Cp)
    stats_ref[0] = jnp.concatenate([s, sq], axis=0)       # (2, 2*Cp)


def _apply_kernel(x_ref, w_ref, scale_ref, bias_ref, out_ref, acc_ref,
                  *, K, TH, W, Cin, Cp):
    """Pass 2: recompute convs, apply folded BN, add branches, ReLU."""
    _accumulate_conv(x_ref, w_ref, acc_ref, K=K, TH=TH, W=W, Cin=Cin)
    y = acc_ref[...] * scale_ref[...] + bias_ref[...]     # (TM, 2*Cp) f32
    out = y[:, :Cp] + y[:, Cp:]                           # conv-branch + identity
    out_ref[0] = jnp.maximum(out, 0.0).astype(out_ref.dtype)


# --------------------------------------------------------------------------
# wrapper
# --------------------------------------------------------------------------
def _pick_tile_rows(H, W, target_rows=512, max_rows=2048):
    """Pick TH dividing H so the row tile TM = TH*W is >= target (<= max)."""
    best = 1
    for th in range(1, H + 1):
        if H % th:
            continue
        if th * W <= max_rows:
            best = th
            if th * W >= target_rows:
                break
    return best


def res_single_conv(x_nchw, params, *, compute_dtype=jnp.bfloat16):
    """Forward pass of ResSingleConv.  x_nchw: (N, Cin, H, W) float32."""
    wconv = params["wconv"]                         # (Cout, Cin, K, K)
    wid = params["wid"]                             # (Cout, Cin, 1, 1)
    g1, b1 = params["bn1_gamma"], params["bn1_beta"]
    g2, b2 = params["bn2_gamma"], params["bn2_beta"]
    # params["bconv"] intentionally unused: a per-channel bias added before a
    # training-mode BatchNorm is cancelled exactly by the batch-mean subtraction.

    N, Cin, H, W = x_nchw.shape
    Cout, _, K, _ = wconv.shape
    assert K % 2 == 1, "same-padding ResSingleConv assumes odd kernel_size"
    p = (K - 1) // 2
    KK = K * K
    M = N * H * W

    Cp = ((Cout + LANE - 1) // LANE) * LANE         # lane-dense channel pad
    C2 = 2 * Cp                                     # [conv | identity] packed

    TH = _pick_tile_rows(H, W)
    HB = H // TH
    T = N * HB                                      # grid size (row tiles)
    TM = TH * W                                     # rows per tile
    THp, Wp = TH + 2 * p, W + 2 * p

    # ---- host glue: layout only (no im2col materialisation) ----------------
    x_nhwc = jnp.transpose(x_nchw, (0, 2, 3, 1))
    xpad = jnp.pad(x_nhwc, ((0, 0), (p, p), (p, p), (0, 0)))
    xrows = jnp.stack(
        [xpad[:, hb * TH: hb * TH + THp, :, :] for hb in range(HB)], axis=1)
    xrows = xrows.reshape(T, THp, Wp, Cin).astype(compute_dtype)

    # packed weights: cols [0, Cout) = conv taps, cols [Cp, Cp+Cout) = 1x1
    # identity weight, placed only in the centre tap (dy = dx = p).
    wtap = jnp.transpose(wconv, (2, 3, 1, 0)).reshape(KK, Cin, Cout)
    wstack = jnp.zeros((KK, Cin, C2), jnp.float32)
    wstack = wstack.at[:, :, :Cout].set(wtap)
    wstack = wstack.at[p * K + p, :, Cp:Cp + Cout].set(wid[:, :, 0, 0].T)
    wstack = wstack.astype(compute_dtype)

    gpack = jnp.zeros((C2,), jnp.float32).at[:Cout].set(g1).at[Cp:Cp + Cout].set(g2)
    bpack = jnp.zeros((C2,), jnp.float32).at[:Cout].set(b1).at[Cp:Cp + Cout].set(b2)

    x_spec = pl.BlockSpec((1, THp, Wp, Cin), lambda t: (t, 0, 0, 0))
    w_spec = pl.BlockSpec((KK, Cin, C2), lambda t: (0, 0, 0))      # resident
    acc_scratch = pltpu.VMEM((TM, C2), jnp.float32)
    cparams = pltpu.CompilerParams(
        dimension_semantics=("parallel",),
        vmem_limit_bytes=32 * 1024 * 1024)

    flops = 2 * T * TM * KK * Cin * C2
    x_bytes = T * THp * Wp * Cin * xrows.dtype.itemsize
    w_bytes = KK * Cin * C2 * wstack.dtype.itemsize

    # ---- pass 1: per-tile partial batch statistics --------------------------
    partial = pl.pallas_call(
        functools.partial(_stats_kernel, K=K, TH=TH, W=W, Cin=Cin),
        out_shape=jax.ShapeDtypeStruct((T, 2, C2), jnp.float32),
        grid_spec=pltpu.PrefetchScalarGridSpec(
            num_scalar_prefetch=0,
            grid=(T,),
            in_specs=[x_spec, w_spec],
            out_specs=pl.BlockSpec((1, 2, C2), lambda t: (t, 0, 0)),
            scratch_shapes=[acc_scratch]),
        compiler_params=cparams,
        cost_estimate=pl.CostEstimate(
            flops=flops, transcendentals=0,
            bytes_accessed=x_bytes + w_bytes + T * 2 * C2 * 4),
    )(xrows, wstack)

    # ---- tiny host reduction: global biased stats -> folded per-channel affine
    totals = jnp.sum(partial, axis=0)                     # (2, C2)
    mean = totals[0] / M
    var = jnp.maximum(totals[1] / M - mean * mean, 0.0)
    scale = gpack * lax.rsqrt(var + BN_EPS)
    bias = bpack - mean * scale
    scale2d = scale.reshape(1, C2)
    bias2d = bias.reshape(1, C2)

    # ---- pass 2: recompute convs, apply BN + add + ReLU (lane-dense output) --
    out_full = pl.pallas_call(
        functools.partial(_apply_kernel, K=K, TH=TH, W=W, Cin=Cin, Cp=Cp),
        out_shape=jax.ShapeDtypeStruct((T, TM, Cp), jnp.float32),
        grid_spec=pltpu.PrefetchScalarGridSpec(
            num_scalar_prefetch=0,
            grid=(T,),
            in_specs=[x_spec, w_spec,
                      pl.BlockSpec((1, C2), lambda t: (0, 0)),
                      pl.BlockSpec((1, C2), lambda t: (0, 0))],
            out_specs=pl.BlockSpec((1, TM, Cp), lambda t: (t, 0, 0)),
            scratch_shapes=[acc_scratch]),
        compiler_params=cparams,
        cost_estimate=pl.CostEstimate(
            flops=flops, transcendentals=0,
            bytes_accessed=x_bytes + w_bytes + T * TM * Cp * 4),
    )(xrows, wstack, scale2d, bias2d)

    # ---- wrapper-side re-assembly back to NCHW -------------------------------
    out = out_full.reshape(N, HB, TH, W, Cp)[..., :Cout]
    out = out.reshape(N, H, W, Cout)
    return jnp.transpose(out, (0, 3, 1, 2))


# --------------------------------------------------------------------------
# pure-JAX reference (f32, follows the PyTorch module exactly, incl. bconv)
# --------------------------------------------------------------------------
def _reference(x_nchw, params):
    wconv, bconv, wid = params["wconv"], params["bconv"], params["wid"]
    k = wconv.shape[2]
    p = (k - 1) // 2

    def bn(y, gamma, beta):
        mu = jnp.mean(y, axis=(0, 2, 3), keepdims=True)
        var = jnp.mean((y - mu) ** 2, axis=(0, 2, 3), keepdims=True)
        return (y - mu) / jnp.sqrt(var + BN_EPS) * gamma[None, :, None, None] \
            + beta[None, :, None, None]

    conv = lax.conv_general_dilated(
        x_nchw, wconv, (1, 1), [(p, p), (p, p)],
        dimension_numbers=("NCHW", "OIHW", "NCHW")) + bconv[None, :, None, None]
    ident = lax.conv_general_dilated(
        x_nchw, wid, (1, 1), [(0, 0), (0, 0)],
        dimension_numbers=("NCHW", "OIHW", "NCHW"))
    out = bn(conv, params["bn1_gamma"], params["bn1_beta"]) + \
        bn(ident, params["bn2_gamma"], params["bn2_beta"])
    return jnp.maximum(out, 0.0)


if __name__ == "__main__":
    N, Cin, Cout, H, W, K = 2, 4, 8, 16, 16, 3
    key = jax.random.PRNGKey(0)
    ks = jax.random.split(key, 7)
    params = {
        "wconv": 0.1 * jax.random.normal(ks[0], (Cout, Cin, K, K), jnp.float32),
        "bconv": 0.1 * jax.random.normal(ks[1], (Cout,), jnp.float32),
        "wid":   0.1 * jax.random.normal(ks[2], (Cout, Cin, 1, 1), jnp.float32),
        "bn1_gamma": 1.0 + 0.1 * jax.random.normal(ks[3], (Cout,), jnp.float32),
        "bn1_beta":  0.1 * jax.random.normal(ks[4], (Cout,), jnp.float32),
        "bn2_gamma": 1.0 + 0.1 * jax.random.normal(ks[5], (Cout,), jnp.float32),
        "bn2_beta":  0.1 * jax.random.normal(ks[6], (Cout,), jnp.float32),
    }
    x = jax.random.normal(jax.random.PRNGKey(42), (N, Cin, H, W), jnp.float32)

    out = jax.block_until_ready(res_single_conv(x, params))
    ref = jax.block_until_ready(_reference(x, params))

    assert out.shape == (N, Cout, H, W), out.shape
    # bf16 matmul inputs (f32 accumulation / BN stats) -> looser tolerance.
    assert jnp.allclose(out, ref, atol=5e-2, rtol=5e-2), \
        f"max abs err = {jnp.max(jnp.abs(out - ref))}"
    print("KERNEL_OK")
</pallas_src>

<mosaic_0001>
module attributes {stable_mosaic.version = 11 : i64} {
  func.func @_stats_kernel(%arg0: i32, %arg1: memref<1x18x18x4xbf16, #tpu.memory_space<vmem>>, %arg2: memref<9x4x256xbf16, #tpu.memory_space<vmem>>, %arg3: memref<1x2x256xf32, #tpu.memory_space<vmem>>, %arg4: memref<256x256xf32, #tpu.memory_space<vmem>>) attributes {dimension_semantics = [#tpu.dimension_semantics<parallel>], iteration_bounds = array<i64: 2>, scalar_prefetch = 0 : i64, scratch_operands = 1 : i64, tpu.core_type = #tpu.core_type<tc>, window_params = [{transform_indices = @transform_0, window_bounds = array<i64: 1, 18, 18, 4>}, {pipeline_mode = #tpu.pipeline_mode<synchronous>, transform_indices = @transform_1, window_bounds = array<i64: 9, 4, 256>}, {transform_indices = @transform_2, window_bounds = array<i64: 1, 2, 256>}]} {
    %c0 = arith.constant 0 : index
    %c0_0 = arith.constant 0 : index
    %c0_1 = arith.constant 0 : index
    %c0_2 = arith.constant 0 : index
    %0 = vector.load %arg1[%c0, %c0_0, %c0_1, %c0_2] : memref<1x18x18x4xbf16, #tpu.memory_space<vmem>>, vector<1x18x18x4xbf16>
    %1 = vector.shape_cast %0 : vector<1x18x18x4xbf16> to vector<18x18x4xbf16>
    %2 = vector.extract_strided_slice %1 {offsets = [0, 0, 0], sizes = [16, 16, 4], strides = [1, 1, 1]} : vector<18x18x4xbf16> to vector<16x16x4xbf16>
    %3 = vector.shape_cast %2 : vector<16x16x4xbf16> to vector<256x4xbf16>
    %c0_3 = arith.constant 0 : index
    %c0_4 = arith.constant 0 : index
    %c0_5 = arith.constant 0 : index
    %4 = vector.load %arg2[%c0_3, %c0_4, %c0_5] : memref<9x4x256xbf16, #tpu.memory_space<vmem>>, vector<1x4x256xbf16>
    %5 = vector.shape_cast %4 : vector<1x4x256xbf16> to vector<4x256xbf16>
    %cst = arith.constant dense<0.000000e+00> : vector<256x256xf32>
    %6 = tpu.matmul %3, %5, %cst {dimension_numbers = #tpu.dot_dimension_numbers<[1], [0], [0], [1], [0, 0, 1, 1], [], []>} : vector<256x4xbf16>, vector<4x256xbf16>, vector<256x256xf32> -> vector<256x256xf32>
    %c0_6 = arith.constant 0 : index
    %c0_7 = arith.constant 0 : index
    %7 = vector.load %arg4[%c0_6, %c0_7] : memref<256x256xf32, #tpu.memory_space<vmem>>, vector<256x256xf32>
    tpu.vector_store %arg4[%c0_6, %c0_7], %6 {strides = array<i32>} : memref<256x256xf32, #tpu.memory_space<vmem>>, vector<256x256xf32>,
    %8 = vector.extract_strided_slice %1 {offsets = [0, 1, 0], sizes = [16, 16, 4], strides = [1, 1, 1]} : vector<18x18x4xbf16> to vector<16x16x4xbf16>
    %9 = vector.shape_cast %8 : vector<16x16x4xbf16> to vector<256x4xbf16>
    %c1 = arith.constant 1 : index
    %c0_8 = arith.constant 0 : index
    %c0_9 = arith.constant 0 : index
    %10 = vector.load %arg2[%c1, %c0_8, %c0_9] : memref<9x4x256xbf16, #tpu.memory_space<vmem>>, vector<1x4x256xbf16>
    %11 = vector.shape_cast %10 : vector<1x4x256xbf16> to vector<4x256xbf16>
    %cst_10 = arith.constant dense<0.000000e+00> : vector<256x256xf32>
    %12 = tpu.matmul %9, %11, %cst_10 {dimension_numbers = #tpu.dot_dimension_numbers<[1], [0], [0], [1], [0, 0, 1, 1], [], []>} : vector<256x4xbf16>, vector<4x256xbf16>, vector<256x256xf32> -> vector<256x256xf32>
    %c0_11 = arith.constant 0 : index
    %c0_12 = arith.constant 0 : index
    %13 = vector.load %arg4[%c0_11, %c0_12] : memref<256x256xf32, #tpu.memory_space<vmem>>, vector<256x256xf32>
    %14 = arith.addf %13, %12 : vector<256x256xf32>
    %c0_13 = arith.constant 0 : index
    %c0_14 = arith.constant 0 : index
    %15 = vector.load %arg4[%c0_13, %c0_14] : memref<256x256xf32, #tpu.memory_space<vmem>>, vector<256x256xf32>
    tpu.vector_store %arg4[%c0_13, %c0_14], %14 {strides = array<i32>} : memref<256x256xf32, #tpu.memory_space<vmem>>, vector<256x256xf32>,
    %16 = vector.extract_strided_slice %1 {offsets = [0, 2, 0], sizes = [16, 16, 4], strides = [1, 1, 1]} : vector<18x18x4xbf16> to vector<16x16x4xbf16>
    %17 = vector.shape_cast %16 : vector<16x16x4xbf16> to vector<256x4xbf16>
    %c2 = arith.constant 2 : index
    %c0_15 = arith.constant 0 : index
    %c0_16 = arith.constant 0 : index
    %18 = vector.load %arg2[%c2, %c0_15, %c0_16] : memref<9x4x256xbf16, #tpu.memory_space<vmem>>, vector<1x4x256xbf16>
    %19 = vector.shape_cast %18 : vector<1x4x256xbf16> to vector<4x256xbf16>
    %cst_17 = arith.constant dense<0.000000e+00> : vector<256x256xf32>
    %20 = tpu.matmul %17, %19, %cst_17 {dimension_numbers = #tpu.dot_dimension_numbers<[1], [0], [0], [1], [0, 0, 1, 1], [], []>} : vector<256x4xbf16>, vector<4x256xbf16>, vector<256x256xf32> -> vector<256x256xf32>
    %c0_18 = arith.constant 0 : index
    %c0_19 = arith.constant 0 : index
    %21 = vector.load %arg4[%c0_18, %c0_19] : memref<256x256xf32, #tpu.memory_space<vmem>>, vector<256x256xf32>
    %22 = arith.addf %21, %20 : vector<256x256xf32>
    %c0_20 = arith.constant 0 : index
    %c0_21 = arith.constant 0 : index
    %23 = vector.load %arg4[%c0_20, %c0_21] : memref<256x256xf32, #tpu.memory_space<vmem>>, vector<256x256xf32>
    tpu.vector_store %arg4[%c0_20, %c0_21], %22 {strides = array<i32>} : memref<256x256xf32, #tpu.memory_space<vmem>>, vector<256x256xf32>,
    %24 = vector.extract_strided_slice %1 {offsets = [1, 0, 0], sizes = [16, 16, 4], strides = [1, 1, 1]} : vector<18x18x4xbf16> to vector<16x16x4xbf16>
    %25 = vector.shape_cast %24 : vector<16x16x4xbf16> to vector<256x4xbf16>
    %c3 = arith.constant 3 : index
    %c0_22 = arith.constant 0 : index
    %c0_23 = arith.constant 0 : index
    %26 = vector.load %arg2[%c3, %c0_22, %c0_23] : memref<9x4x256xbf16, #tpu.memory_space<vmem>>, vector<1x4x256xbf16>
    %27 = vector.shape_cast %26 : vector<1x4x256xbf16> to vector<4x256xbf16>
    %cst_24 = arith.constant dense<0.000000e+00> : vector<256x256xf32>
    %28 = tpu.matmul %25, %27, %cst_24 {dimension_numbers = #tpu.dot_dimension_numbers<[1], [0], [0], [1], [0, 0, 1, 1], [], []>} : vector<256x4xbf16>, vector<4x256xbf16>, vector<256x256xf32> -> vector<256x256xf32>
    %c0_25 = arith.constant 0 : index
    %c0_26 = arith.constant 0 : index
    %29 = vector.load %arg4[%c0_25, %c0_26] : memref<256x256xf32, #tpu.memory_space<vmem>>, vector<256x256xf32>
    %30 = arith.addf %29, %28 : vector<256x256xf32>
    %c0_27 = arith.constant 0 : index
    %c0_28 = arith.constant 0 : index
    %31 = vector.load %arg4[%c0_27, %c0_28] : memref<256x256xf32, #tpu.memory_space<vmem>>, vector<256x256xf32>
    tpu.vector_store %arg4[%c0_27, %c0_28], %30 {strides = array<i32>} : memref<256x256xf32, #tpu.memory_space<vmem>>, vector<256x256xf32>,
    %32 = vector.extract_strided_slice %1 {offsets = [1, 1, 0], sizes = [16, 16, 4], strides = [1, 1, 1]} : vector<18x18x4xbf16> to vector<16x16x4xbf16>
    %33 = vector.shape_cast %32 : vector<16x16x4xbf16> to vector<256x4xbf16>
    %c4 = arith.constant 4 : index
    %c0_29 = arith.constant 0 : index
    %c0_30 = arith.constant 0 : index
    %34 = vector.load %arg2[%c4, %c0_29, %c0_30] : memref<9x4x256xbf16, #tpu.memory_space<vmem>>, vector<1x4x256xbf16>
    %35 = vector.shape_cast %34 : vector<1x4x256xbf16> to vector<4x256xbf16>
    %cst_31 = arith.constant dense<0.000000e+00> : vector<256x256xf32>
    %36 = tpu.matmul %33, %35, %cst_31 {dimension_numbers = #tpu.dot_dimension_numbers<[1], [0], [0], [1], [0, 0, 1, 1], [], []>} : vector<256x4xbf16>, vector<4x256xbf16>, vector<256x256xf32> -> vector<256x256xf32>
    %c0_32 = arith.constant 0 : index
    %c0_33 = arith.constant 0 : index
    %37 = vector.load %arg4[%c0_32, %c0_33] : memref<256x256xf32, #tpu.memory_space<vmem>>, vector<256x256xf32>
    %38 = arith.addf %37, %36 : vector<256x256xf32>
    %c0_34 = arith.constant 0 : index
    %c0_35 = arith.constant 0 : index
    %39 = vector.load %arg4[%c0_34, %c0_35] : memref<256x256xf32, #tpu.memory_space<vmem>>, vector<256x256xf32>
    tpu.vector_store %arg4[%c0_34, %c0_35], %38 {strides = array<i32>} : memref<256x256xf32, #tpu.memory_space<vmem>>, vector<256x256xf32>,
    %40 = vector.extract_strided_slice %1 {offsets = [1, 2, 0], sizes = [16, 16, 4], strides = [1, 1, 1]} : vector<18x18x4xbf16> to vector<16x16x4xbf16>
    %41 = vector.shape_cast %40 : vector<16x16x4xbf16> to vector<256x4xbf16>
    %c5 = arith.constant 5 : index
    %c0_36 = arith.constant 0 : index
    %c0_37 = arith.constant 0 : index
    %42 = vector.load %arg2[%c5, %c0_36, %c0_37] : memref<9x4x256xbf16, #tpu.memory_space<vmem>>, vector<1x4x256xbf16>
    %43 = vector.shape_cast %42 : vector<1x4x256xbf16> to vector<4x256xbf16>
    %cst_38 = arith.constant dense<0.000000e+00> : vector<256x256xf32>
    %44 = tpu.matmul %41, %43, %cst_38 {dimension_numbers = #tpu.dot_dimension_numbers<[1], [0], [0], [1], [0, 0, 1, 1], [], []>} : vector<256x4xbf16>, vector<4x256xbf16>, vector<256x256xf32> -> vector<256x256xf32>
    %c0_39 = arith.constant 0 : index
    %c0_40 = arith.constant 0 : index
    %45 = vector.load %arg4[%c0_39, %c0_40] : memref<256x256xf32, #tpu.memory_space<vmem>>, vector<256x256xf32>
    %46 = arith.addf %45, %44 : vector<256x256xf32>
    %c0_41 = arith.constant 0 : index
    %c0_42 = arith.constant 0 : index
    %47 = vector.load %arg4[%c0_41, %c0_42] : memref<256x256xf32, #tpu.memory_space<vmem>>, vector<256x256xf32>
    tpu.vector_store %arg4[%c0_41, %c0_42], %46 {strides = array<i32>} : memref<256x256xf32, #tpu.memory_space<vmem>>, vector<256x256xf32>,
    %48 = vector.extract_strided_slice %1 {offsets = [2, 0, 0], sizes = [16, 16, 4], strides = [1, 1, 1]} : vector<18x18x4xbf16> to vector<16x16x4xbf16>
    %49 = vector.shape_cast %48 : vector<16x16x4xbf16> to vector<256x4xbf16>
    %c6 = arith.constant 6 : index
    %c0_43 = arith.constant 0 : index
    %c0_44 = arith.constant 0 : index
    %50 = vector.load %arg2[%c6, %c0_43, %c0_44] : memref<9x4x256xbf16, #tpu.memory_space<vmem>>, vector<1x4x256xbf16>
    %51 = vector.shape_cast %50 : vector<1x4x256xbf16> to vector<4x256xbf16>
    %cst_45 = arith.constant dense<0.000000e+00> : vector<256x256xf32>
    %52 = tpu.matmul %49, %51, %cst_45 {dimension_numbers = #tpu.dot_dimension_numbers<[1], [0], [0], [1], [0, 0, 1, 1], [], []>} : vector<256x4xbf16>, vector<4x256xbf16>, vector<256x256xf32> -> vector<256x256xf32>
    %c0_46 = arith.constant 0 : index
    %c0_47 = arith.constant 0 : index
    %53 = vector.load %arg4[%c0_46, %c0_47] : memref<256x256xf32, #tpu.memory_space<vmem>>, vector<256x256xf32>
    %54 = arith.addf %53, %52 : vector<256x256xf32>
    %c0_48 = arith.constant 0 : index
    %c0_49 = arith.constant 0 : index
    %55 = vector.load %arg4[%c0_48, %c0_49] : memref<256x256xf32, #tpu.memory_space<vmem>>, vector<256x256xf32>
    tpu.vector_store %arg4[%c0_48, %c0_49], %54 {strides = array<i32>} : memref<256x256xf32, #tpu.memory_space<vmem>>, vector<256x256xf32>,
    %56 = vector.extract_strided_slice %1 {offsets = [2, 1, 0], sizes = [16, 16, 4], strides = [1, 1, 1]} : vector<18x18x4xbf16> to vector<16x16x4xbf16>
    %57 = vector.shape_cast %56 : vector<16x16x4xbf16> to vector<256x4xbf16>
    %c7 = arith.constant 7 : index
    %c0_50 = arith.constant 0 : index
    %c0_51 = arith.constant 0 : index
    %58 = vector.load %arg2[%c7, %c0_50, %c0_51] : memref<9x4x256xbf16, #tpu.memory_space<vmem>>, vector<1x4x256xbf16>
    %59 = vector.shape_cast %58 : vector<1x4x256xbf16> to vector<4x256xbf16>
    %cst_52 = arith.constant dense<0.000000e+00> : vector<256x256xf32>
    %60 = tpu.matmul %57, %59, %cst_52 {dimension_numbers = #tpu.dot_dimension_numbers<[1], [0], [0], [1], [0, 0, 1, 1], [], []>} : vector<256x4xbf16>, vector<4x256xbf16>, vector<256x256xf32> -> vector<256x256xf32>
    %c0_53 = arith.constant 0 : index
    %c0_54 = arith.constant 0 : index
    %61 = vector.load %arg4[%c0_53, %c0_54] : memref<256x256xf32, #tpu.memory_space<vmem>>, vector<256x256xf32>
    %62 = arith.addf %61, %60 : vector<256x256xf32>
    %c0_55 = arith.constant 0 : index
    %c0_56 = arith.constant 0 : index
    %63 = vector.load %arg4[%c0_55, %c0_56] : memref<256x256xf32, #tpu.memory_space<vmem>>, vector<256x256xf32>
    tpu.vector_store %arg4[%c0_55, %c0_56], %62 {strides = array<i32>} : memref<256x256xf32, #tpu.memory_space<vmem>>, vector<256x256xf32>,
    %64 = vector.extract_strided_slice %1 {offsets = [2, 2, 0], sizes = [16, 16, 4], strides = [1, 1, 1]} : vector<18x18x4xbf16> to vector<16x16x4xbf16>
    %65 = vector.shape_cast %64 : vector<16x16x4xbf16> to vector<256x4xbf16>
    %c8 = arith.constant 8 : index
    %c0_57 = arith.constant 0 : index
    %c0_58 = arith.constant 0 : index
    %66 = vector.load %arg2[%c8, %c0_57, %c0_58] : memref<9x4x256xbf16, #tpu.memory_space<vmem>>, vector<1x4x256xbf16>
    %67 = vector.shape_cast %66 : vector<1x4x256xbf16> to vector<4x256xbf16>
    %cst_59 = arith.constant dense<0.000000e+00> : vector<256x256xf32>
    %68 = tpu.matmul %65, %67, %cst_59 {dimension_numbers = #tpu.dot_dimension_numbers<[1], [0], [0], [1], [0, 0, 1, 1], [], []>} : vector<256x4xbf16>, vector<4x256xbf16>, vector<256x256xf32> -> vector<256x256xf32>
    %c0_60 = arith.constant 0 : index
    %c0_61 = arith.constant 0 : index
    %69 = vector.load %arg4[%c0_60, %c0_61] : memref<256x256xf32, #tpu.memory_space<vmem>>, vector<256x256xf32>
    %70 = arith.addf %69, %68 : vector<256x256xf32>
    %c0_62 = arith.constant 0 : index
    %c0_63 = arith.constant 0 : index
    %71 = vector.load %arg4[%c0_62, %c0_63] : memref<256x256xf32, #tpu.memory_space<vmem>>, vector<256x256xf32>
    tpu.vector_store %arg4[%c0_62, %c0_63], %70 {strides = array<i32>} : memref<256x256xf32, #tpu.memory_space<vmem>>, vector<256x256xf32>,
    %c0_64 = arith.constant 0 : index
    %c0_65 = arith.constant 0 : index
    %72 = vector.load %arg4[%c0_64, %c0_65] : memref<256x256xf32, #tpu.memory_space<vmem>>, vector<256x256xf32>
    %cst_66 = arith.constant dense<0.000000e+00> : vector<256xf32>
    %73 = vector.multi_reduction <add>, %72, %cst_66 [0] : vector<256x256xf32> to vector<256xf32>
    %74 = vector.shape_cast %73 : vector<256xf32> to vector<1x256xf32>
    %75 = arith.mulf %72, %72 : vector<256x256xf32>
    %cst_67 = arith.constant dense<0.000000e+00> : vector<256xf32>
    %76 = vector.multi_reduction <add>, %75, %cst_67 [0] : vector<256x256xf32> to vector<256xf32>
    %77 = vector.shape_cast %76 : vector<256xf32> to vector<1x256xf32>
    %78 = tpu.concatenate %74, %77 in 0 : vector<1x256xf32>, vector<1x256xf32> -> vector<2x256xf32>
    %c0_68 = arith.constant 0 : index
    %c0_69 = arith.constant 0 : index
    %c0_70 = arith.constant 0 : index
    %79 = vector.load %arg3[%c0_68, %c0_69, %c0_70] : memref<1x2x256xf32, #tpu.memory_space<vmem>>, vector<1x2x256xf32>
    %80 = vector.shape_cast %79 : vector<1x2x256xf32> to vector<2x256xf32>
    %81 = vector.shape_cast %78 : vector<2x256xf32> to vector<1x2x256xf32>
    tpu.vector_store %arg3[%c0_68, %c0_69, %c0_70], %81 {strides = array<i32>} : memref<1x2x256xf32, #tpu.memory_space<vmem>>, vector<1x2x256xf32>,
    return
  }
  func.func @transform_0(%arg0: i32) -> (i32, i32, i32, i32) {
    %c0_i32 = arith.constant 0 : i32
    %c0_i32_0 = arith.constant 0 : i32
    %c0_i32_1 = arith.constant 0 : i32
    %c0_i32_2 = arith.constant 0 : i32
    return %arg0, %c0_i32, %c0_i32_0, %c0_i32_1 : i32, i32, i32, i32
  }
  func.func @transform_1(%arg0: i32) -> (i32, i32, i32) {
    %c0_i32 = arith.constant 0 : i32
    %c0_i32_0 = arith.constant 0 : i32
    %c0_i32_1 = arith.constant 0 : i32
    %c0_i32_2 = arith.constant 0 : i32
    return %c0_i32, %c0_i32_0, %c0_i32_1 : i32, i32, i32
  }
  func.func @transform_2(%arg0: i32) -> (i32, i32, i32) {
    %c0_i32 = arith.constant 0 : i32
    %c0_i32_0 = arith.constant 0 : i32
    %c0_i32_1 = arith.constant 0 : i32
    return %arg0, %c0_i32, %c0_i32_0 : i32, i32, i32
  }
}

</mosaic_0001>

<llo_original>
// kernel: tpu_custom_call.1
$region0: #{tpu_custom_call.1}
  #allocation0 [shape = 'u32[]', space=smem, size = 0x4, offset = 0x4, fixed_abs, tag = 'smem constant byte address 0x4 - core index']
  #allocation1 [shape = 'u32[144,128]{1,0:T(1,128)}', space=vmem, size = 0x12000, scoped, tag = 'internal scratch']
  #allocation2 [shape = 'f32[256,256]{1,0:T(8,128)}', space=vmem, size = 0x40000, scoped, tag = 'scratch operand']
  %s0 = inlined_call_operand.vmem [shape: bf16[2,18,18,4], index: 0, kind: input, shape index: {}]
  %s1 = inlined_call_operand.vmem [shape: bf16[9,4,256], index: 1, kind: input, shape index: {}]
  %s2 = inlined_call_operand.hbm [shape: f32[2,2,256], index: 2, kind: output, shape index: {}]
  %s3 = sld [smem:[#allocation0]]
  $region41: #{tpu_custom_call.1} parent=0
    _
  %s5 = ssub.s32 1, %s3
  %s6 = scalar_select 0, %s5, %s3
  $region1: #{tpu_custom_call.1} parent=0
    #allocation3 [shape = 'u8[4096]{0}', space=vmem, size = 0x1000, scoped, tag = 'output window, operand 0']
    #allocation4 [shape = 's32[2]{0}', space=sflag, size = 0x8, scoped, tag = 'scoped memory for tpu_custom_call.1']
    %7 = vsyncpa [#allocation4], 0
    %s8 = scalar_lea.sflag [#allocation4], 1
    %9 = vsyncpa %s8, 0
    loop: start=0, step=1, limit=4
    $region2: #{tpu_custom_call.1} parent=1 // loop_pre_header
      _
    $region3: #{tpu_custom_call.1} parent=1 // loop_header
      %s11 = sphi 0, %s15
      %p12 = scmp.ge.s32.totalorder %s11, 4
      %s21 = sphi 0, %s23
      %s24 = sphi 0, %s21
      %s25 = sphi 0, %s24
      %s41 = sphi 0, %s25
      %s45 = sphi 0, %s45
      %s47 = sphi 0, %s45
      %s48 = sphi 0, %s47
      %s62 = sphi 0, %s48
      %s68 = sphi 0, %s70
      %s71 = sphi 0, %s68
      %s72 = sphi 0, %s71
      %s88 = sphi 0, %s72
    $region4: #{tpu_custom_call.1} parent=1 // loop_header_branch
      %14 = sbr.rel (%p12) target = $region8
    $region5: #{tpu_custom_call.1} parent=1 // loop_body
      %s16 = ssub.s32 %s11, 1
      %s17 = ssub.s32 %s11, 2
      %s18 = sadd.s32 %s11, 1
      %s19 = ssub.s32 %s11, %s18
      %p20 = scmp.eq.s32.totalorder %s19, 0
      %s22 = sadd.s32 %s21, 1
      %s23 = scalar_select %p20, %s21, %s22
      %p26 = pneg %p20
      %p27 = scmp.eq.s32.totalorder %s11, 1
      %p28 = por %p26, %p27
      %p29 = scmp.ne.s32.totalorder %s21, %s24
      %p30 = scmp.eq.s32.totalorder %s11, 0
      %p31 = por %p29, %p30
      %p32 = scmp.ne.s32.totalorder %s21, %s24
      %p33 = scmp.eq.s32.totalorder %s16, 1
      %p34 = por %p32, %p33
      %p35 = scmp.ne.s32.totalorder %s24, %s25
      %p36 = scmp.eq.s32.totalorder %s16, 0
      %p37 = por %p35, %p36
      %p38 = scmp.ne.s32.totalorder %s24, %s25
      %p39 = scmp.eq.s32.totalorder %s17, 1
      %p40 = por %p38, %p39
      %p42 = scmp.ne.s32.totalorder %s25, %s41
      %p43 = scmp.eq.s32.totalorder %s17, 0
      %p44 = por %p42, %p43
      %s46 = sadd.s32 %s45, 1
      %p49 = scmp.eq.s32.totalorder %s11, 1
      %p50 = scmp.ne.s32.totalorder %s45, %s47
      %p51 = scmp.eq.s32.totalorder %s11, 0
      %p52 = por %p50, %p51
      %p53 = scmp.ne.s32.totalorder %s45, %s47
      %p54 = scmp.eq.s32.totalorder %s16, 1
      %p55 = por %p53, %p54
      %p56 = scmp.ne.s32.totalorder %s47, %s48
      %p57 = scmp.eq.s32.totalorder %s16, 0
      %p58 = por %p56, %p57
      %p59 = scmp.ne.s32.totalorder %s47, %s48
      %p60 = scmp.eq.s32.totalorder %s17, 1
      %p61 = por %p59, %p60
      %p63 = scmp.ne.s32.totalorder %s48, %s62
      %p64 = scmp.eq.s32.totalorder %s17, 0
      %p65 = por %p63, %p64
      %s66 = ssub.s32 %s11, %s18
      %p67 = scmp.eq.s32.totalorder %s66, 0
      %s69 = sadd.s32 %s68, 1
      %s70 = scalar_select %p67, %s68, %s69
      %p73 = pneg %p67
      %p74 = scmp.eq.s32.totalorder %s11, 1
      %p75 = por %p73, %p74
      %p76 = scmp.ne.s32.totalorder %s68, %s71
      %p77 = scmp.eq.s32.totalorder %s11, 0
      %p78 = por %p76, %p77
      %p79 = scmp.ne.s32.totalorder %s68, %s71
      %p80 = scmp.eq.s32.totalorder %s16, 1
      %p81 = por %p79, %p80
      %p82 = scmp.ne.s32.totalorder %s71, %s72
      %p83 = scmp.eq.s32.totalorder %s16, 0
      %p84 = por %p82, %p83
      %p85 = scmp.ne.s32.totalorder %s71, %s72
      %p86 = scmp.eq.s32.totalorder %s17, 1
      %p87 = por %p85, %p86
      %p89 = scmp.ne.s32.totalorder %s72, %s88
      %p90 = scmp.eq.s32.totalorder %s17, 0
      %p91 = por %p89, %p90
      %p92 = scmp.le.s32.totalorder 1, %s11
      %p93 = scmp.lt.s32.totalorder %s11, 3
      %p94 = pnand %p92, %p93
      %p95 = pneg %p94
      // Predicated region
      $region9: #{tpu_custom_call.1} parent=5 // pred_check
        _
      $region10: #{tpu_custom_call.1} parent=5 // pred_check_branch
        %97 = sbr.rel (%p94) target = $region12
      $region11: #{tpu_custom_call.1} parent=5 // pred_region
        %s98 = ssub.s32 %s11, 1
        // Predicated region
        $region13: #{tpu_custom_call.1} parent=11 // pred_check
          %p99 = pneg %p58
        $region14: #{tpu_custom_call.1} parent=11 // pred_check_branch
          %101 = sbr.rel (%p99) target = $region16
        $region15: #{tpu_custom_call.1} parent=11 // pred_region
          _
        $region16: #{tpu_custom_call.1} parent=11 // pred_fallthru
          _
      $region12: #{tpu_custom_call.1} parent=5 // pred_fallthru
        _
      %p102 = scmp.lt.s32.totalorder %s11, 2
      // Predicated region
      $region17: #{tpu_custom_call.1} parent=5 // pred_check
        %p103 = pneg %p102
      $region18: #{tpu_custom_call.1} parent=5 // pred_check_branch
        %105 = sbr.rel (%p103) target = $region20
      $region19: #{tpu_custom_call.1} parent=5 // pred_region
        // Predicated region
        $region21: #{tpu_custom_call.1} parent=19 // pred_check
          %p106 = pneg %p31
        $region22: #{tpu_custom_call.1} parent=19 // pred_check_branch
          %108 = sbr.rel (%p106) target = $region24
        $region23: #{tpu_custom_call.1} parent=19 // pred_region
          %p109 = scmp.lt.s32.totalorder %s11, 1
          %s110 = scalar_select %p109, %s11, 1
          %s111 = smul.addr %s110, 54
          %s112 = smul.addr %s111, 4
          %s113 = scalar_lea.vmem %s0, %s112
        $region24: #{tpu_custom_call.1} parent=19 // pred_fallthru
          _
      $region20: #{tpu_custom_call.1} parent=5 // pred_fallthru
        _
      %p114 = scmp.le.s32.totalorder 1, %s11
      %p115 = scmp.lt.s32.totalorder %s11, 3
      %p116 = pnand %p114, %p115
      %p117 = pneg %p116
      // Predicated region
      $region25: #{tpu_custom_call.1} parent=5 // pred_check
        _
      $region26: #{tpu_custom_call.1} parent=5 // pred_check_branch
        %119 = sbr.rel (%p116) target = $region28
      $region27: #{tpu_custom_call.1} parent=5 // pred_region
        %s120 = ssub.s32 %s11, 1
        %p121 = scmp.lt.s32.totalorder %s16, 1
        %s122 = scalar_select %p121, %s16, 1
        %s123 = smul.addr %s122, 54
        %s124 = smul.addr %s123, 4
        %s125 = scalar_lea.vmem %s0, %s124
        %p126 = pneg %p37
        %p127 = pneg %p34
        %p128 = pneg %p58
        %p129 = pneg %p55
        %p130 = pneg %p84
        %p131 = pneg %p81
        %s132 = sand.u32 %s71, 1
        %s133 = scalar_lea.sflag [#allocation4], %s132
        %s134 = sand.u32 %s71, 1
        %s135 = smul.addr %s134, 4
        %s136 = scalar_lea.vmem [#allocation3], %s135
        %p137 = scmp.lt.s32.totalorder %s16, 1
        %s138 = scalar_select %p137, %s16, 1
        %s139 = smul.addr %s138, 54
        %s140 = smul.addr %s139, 4
        %s141 = scalar_lea.vmem %s0, %s140
        %v143 = vld [vmem:[%s141] sm:$0xf]
        %v144 = vld [vmem:[%s141 + $0x4] sm:$0xf]
        %v145 = vld [vmem:[%s141 + $0x8] sm:$0x1]
        %v146 = vld [vmem:[%s141 + $0xc] sm:$0xf]
        %v147 = vld [vmem:[%s141 + $0x10] sm:$0xf]
        %v148 = vld [vmem:[%s141 + $0x14] sm:$0x1]
        %v149 = vld [vmem:[%s141 + $0x18] sm:$0xf]
        %v150 = vld [vmem:[%s141 + $0x1c] sm:$0xf]
        %v151 = vld [vmem:[%s141 + $0x20] sm:$0x1]
        %v152 = vld [vmem:[%s141 + $0x24] sm:$0xf]
        %v153 = vld [vmem:[%s141 + $0x28] sm:$0xf]
        %v154 = vld [vmem:[%s141 + $0x2c] sm:$0x1]
        %v155 = vld [vmem:[%s141 + $0x30] sm:$0xf]
        %v156 = vld [vmem:[%s141 + $0x34] sm:$0xf]
        %v157 = vld [vmem:[%s141 + $0x38] sm:$0x1]
        %v158 = vld [vmem:[%s141 + $0x3c] sm:$0xf]
        %v159 = vld [vmem:[%s141 + $0x40] sm:$0xf]
        %v160 = vld [vmem:[%s141 + $0x44] sm:$0x1]
        %v161 = vld [vmem:[%s141 + $0x48] sm:$0xf]
        %v162 = vld [vmem:[%s141 + $0x4c] sm:$0xf]
        %v163 = vld [vmem:[%s141 + $0x50] sm:$0x1]
        %v164 = vld [vmem:[%s141 + $0x54] sm:$0xf]
        %v165 = vld [vmem:[%s141 + $0x58] sm:$0xf]
        %v166 = vld [vmem:[%s141 + $0x5c] sm:$0x1]
        %v167 = vld [vmem:[%s141 + $0x60] sm:$0xf]
        %v168 = vld [vmem:[%s141 + $0x64] sm:$0xf]
        %v169 = vld [vmem:[%s141 + $0x68] sm:$0x1]
        %v170 = vld [vmem:[%s141 + $0x6c] sm:$0xf]
        %v171 = vld [vmem:[%s141 + $0x70] sm:$0xf]
        %v172 = vld [vmem:[%s141 + $0x74] sm:$0x1]
        %v173 = vld [vmem:[%s141 + $0x78] sm:$0xf]
        %v174 = vld [vmem:[%s141 + $0x7c] sm:$0xf]
        %v175 = vld [vmem:[%s141 + $0x80] sm:$0x1]
        %v176 = vld [vmem:[%s141 + $0x84] sm:$0xf]
        %v177 = vld [vmem:[%s141 + $0x88] sm:$0xf]
        %v178 = vld [vmem:[%s141 + $0x8c] sm:$0x1]
        %v179 = vld [vmem:[%s141 + $0x90] sm:$0xf]
        %v180 = vld [vmem:[%s141 + $0x94] sm:$0xf]
        %v181 = vld [vmem:[%s141 + $0x98] sm:$0x1]
        %v182 = vld [vmem:[%s141 + $0x9c] sm:$0xf]
        %v183 = vld [vmem:[%s141 + $0xa0] sm:$0xf]
        %v184 = vld [vmem:[%s141 + $0xa4] sm:$0x1]
        %v185 = vld [vmem:[%s141 + $0xa8] sm:$0xf]
        %v186 = vld [vmem:[%s141 + $0xac] sm:$0xf]
        %v187 = vld [vmem:[%s141 + $0xb0] sm:$0x1]
        %v188 = vld [vmem:[%s141 + $0xb4] sm:$0xf]
        %v189 = vld [vmem:[%s141 + $0xb8] sm:$0xf]
        %v190 = vld [vmem:[%s141 + $0xbc] sm:$0x1]
        %v191 = vld [vmem:[%s141 + $0xc0] sm:$0xf]
        %v192 = vld [vmem:[%s141 + $0xc4] sm:$0xf]
        %v193 = vld [vmem:[%s141 + $0xc8] sm:$0x1]
        %v194 = vld [vmem:[%s141 + $0xcc] sm:$0xf]
        %v195 = vld [vmem:[%s141 + $0xd0] sm:$0xf]
        %v196 = vld [vmem:[%s141 + $0xd4] sm:$0x1]
        %v197 = vld [vmem:[%s1] sm:$0xf]
        %v230 = vunpack.c.l.b16 %v143
        %v231 = vunpack.c.l.b16 %v144
        %v232 = vunpack.c.l.b16 %v146
        %v233 = vunpack.c.l.b16 %v147
        %v234 = vunpack.c.l.b16 %v149
        %v235 = vunpack.c.l.b16 %v150
        %v236 = vunpack.c.l.b16 %v152
        %v237 = vunpack.c.l.b16 %v153
        %v238 = vunpack.c.l.b16 %v155
        %v239 = vunpack.c.l.b16 %v156
        %v240 = vunpack.c.l.b16 %v158
        %v241 = vunpack.c.l.b16 %v159
        %v242 = vunpack.c.l.b16 %v161
        %v243 = vunpack.c.l.b16 %v162
        %v244 = vunpack.c.l.b16 %v164
        %v245 = vunpack.c.l.b16 %v165
        %v246 = vunpack.c.l.b16 %v167
        %v247 = vunpack.c.l.b16 %v168
        %v248 = vunpack.c.l.b16 %v170
        %v249 = vunpack.c.l.b16 %v171
        %v250 = vunpack.c.l.b16 %v173
        %v251 = vunpack.c.l.b16 %v174
        %v252 = vunpack.c.l.b16 %v176
        %v253 = vunpack.c.l.b16 %v177
        %v254 = vunpack.c.l.b16 %v179
        %v255 = vunpack.c.l.b16 %v180
        %v256 = vunpack.c.l.b16 %v182
        %v257 = vunpack.c.l.b16 %v183
        %v258 = vunpack.c.l.b16 %v185
        %v259 = vunpack.c.l.b16 %v186
        %v260 = vunpack.c.l.b16 %v188
        %v261 = vunpack.c.l.b16 %v189
        %v262 = vpack.c.b16 %v231, %v230
        %v263 = vpack.c.b16 %v233, %v232
        %v264 = vpack.c.b16 %v235, %v234
        %v265 = vpack.c.b16 %v237, %v236
        %v266 = vpack.c.b16 %v239, %v238
        %v267 = vpack.c.b16 %v241, %v240
        %v268 = vpack.c.b16 %v243, %v242
        %v269 = vpack.c.b16 %v245, %v244
        %v270 = vpack.c.b16 %v247, %v246
        %v271 = vpack.c.b16 %v249, %v248
        %v272 = vpack.c.b16 %v251, %v250
        %v273 = vpack.c.b16 %v253, %v252
        %v274 = vpack.c.b16 %v255, %v254
        %v275 = vpack.c.b16 %v257, %v256
        %v276 = vpack.c.b16 %v259, %v258
        %v277 = vpack.c.b16 %v261, %v260
        %v280 = vunpack.c.l.s4 1983009808
        %v281 = vunpack.c.0.s8 %v280
        %v282 = vlaneseq
        %v283 = vshrl.u32 %v282, 7
        %v284 = vsub.s32 %v281, %v283
        %v285 = vrot.slane %v197, %v284
        %v286 = vcombine.high %v285, %v285
        %vm287 = vcmask 31744
        %v289 = vsel %vm287, %v262, 0
        %v292 = vsel %vm287, %v263, 0
        %v295 = vsel %vm287, %v264, 0
        %v298 = vsel %vm287, %v265, 0
        %v301 = vsel %vm287, %v266, 0
        %v304 = vsel %vm287, %v267, 0
        %v307 = vsel %vm287, %v268, 0
        %v310 = vsel %vm287, %v269, 0
        %v313 = vsel %vm287, %v270, 0
        %v316 = vsel %vm287, %v271, 0
        %v319 = vsel %vm287, %v272, 0
        %v322 = vsel %vm287, %v273, 0
        %v325 = vsel %vm287, %v274, 0
        %v328 = vsel %vm287, %v275, 0
        %v331 = vsel %vm287, %v276, 0
        %v334 = vsel %vm287, %v277, 0
        %vm336 = vcmask 1041408
        %v338 = vsel %vm336, %v285, 0
        %v341 = vsel %vm336, %v286, 0
        %343 = vmatprep.subr.bf16.mxu0 %v341
        %344 = vmatpush1.bf16.msra.mxu0 %v338
        %345 = vmatprep.subr.bf16.mxu0 0
        %346 = vmatpush1.bf16.msra.mxu0 0
        %347 = vmatprep.subr.bf16.mxu0 0
        %348 = vmatpush1.bf16.msra.mxu0 0
        %349 = vmatprep.subr.bf16.mxu0 0
        %350 = vmatpush1.bf16.msra.mxu0 0
        %351 = vmatprep.subr.bf16.mxu0 0
        %352 = vmatpush1.bf16.msra.mxu0 0
        %353 = vmatprep.subr.bf16.mxu0 0
        %354 = vmatpush1.bf16.msra.mxu0 0
        %355 = vmatprep.subr.bf16.mxu0 0
        %356 = vmatpush1.bf16.msra.mxu0 0
        %357 = vmatprep.subr.bf16.mxu0 0
        %358 = vmatpush1.bf16.msra.mxu0 0
        %359 = vmatprep.subr.bf16.mxu0 0
        %360 = vmatpush1.bf16.msra.mxu0 0
        %361 = vmatprep.subr.bf16.mxu0 0
        %362 = vmatpush1.bf16.msra.mxu0 0
        %363 = vmatprep.subr.bf16.mxu0 0
        %364 = vmatpush1.bf16.msra.mxu0 0
        %365 = vmatprep.subr.bf16.mxu0 0
        %366 = vmatpush1.bf16.msra.mxu0 0
        %367 = vmatprep.subr.bf16.mxu0 0
        %368 = vmatpush1.bf16.msra.mxu0 0
        %369 = vmatprep.subr.bf16.mxu0 0
        %370 = vmatpush1.bf16.msra.mxu0 0
        %371 = vmatprep.subr.bf16.mxu0 0
        %372 = vmatpush1.bf16.msra.mxu0 0
        %373 = vmatprep.subr.bf16.mxu0 0
        %374 = vmatpush1.bf16.msra.mxu0 0
        %375 = vmatprep.mubr.bf16.mxu0 0
        %376 = vmatmul.mubr.bf16.gmra.mrb[0].mxu0 %v289
        %v377 = vpop.f32.mrb[0].mxu0
        %v378 = vadd.f32 0.0, %v377
        %v379 = vpop.f32.mrb[0].mxu0
        %v380 = vadd.f32 0.0, %v379
        %v381 = vpop.f32.mrb[0].mxu0
        %v382 = vadd.f32 0.0, %v381
        %v383 = vpop.f32.mrb[0].mxu0
        %v384 = vadd.f32 0.0, %v383
        %385 = vmatprep.mubr.bf16.mxu0 0
        %386 = vmatmul.mubr.bf16.gmra.mrb[0].mxu0 %v292
        %v387 = vpop.f32.mrb[0].mxu0
        %v388 = vadd.f32 0.0, %v387
        %v389 = vpop.f32.mrb[0].mxu0
        %v390 = vadd.f32 0.0, %v389
        %v391 = vpop.f32.mrb[0].mxu0
        %v392 = vadd.f32 0.0, %v391
        %v393 = vpop.f32.mrb[0].mxu0
        %v394 = vadd.f32 0.0, %v393
        %395 = vmatprep.mubr.bf16.mxu0 0
        %396 = vmatmul.mubr.bf16.gmra.mrb[0].mxu0 %v295
        %v397 = vpop.f32.mrb[0].mxu0
        %v398 = vadd.f32 0.0, %v397
        %v399 = vpop.f32.mrb[0].mxu0
        %v400 = vadd.f32 0.0, %v399
        %v401 = vpop.f32.mrb[0].mxu0
        %v402 = vadd.f32 0.0, %v401
        %v403 = vpop.f32.mrb[0].mxu0
        %v404 = vadd.f32 0.0, %v403
        %405 = vmatprep.mubr.bf16.mxu0 0
        %406 = vmatmul.mubr.bf16.gmra.mrb[0].mxu0 %v298
        %v407 = vpop.f32.mrb[0].mxu0
        %v408 = vadd.f32 0.0, %v407
        %v409 = vpop.f32.mrb[0].mxu0
        %v410 = vadd.f32 0.0, %v409
        %v411 = vpop.f32.mrb[0].mxu0
        %v412 = vadd.f32 0.0, %v411
        %v413 = vpop.f32.mrb[0].mxu0
        %v414 = vadd.f32 0.0, %v413
        %415 = vmatprep.mubr.bf16.mxu0 0
        %416 = vmatmul.mubr.bf16.gmra.mrb[0].mxu0 %v301
        %v417 = vpop.f32.mrb[0].mxu0
        %v418 = vadd.f32 0.0, %v417
        %v419 = vpop.f32.mrb[0].mxu0
        %v420 = vadd.f32 0.0, %v419
        %v421 = vpop.f32.mrb[0].mxu0
        %v422 = vadd.f32 0.0, %v421
        %v423 = vpop.f32.mrb[0].mxu0
        %v424 = vadd.f32 0.0, %v423
        %425 = vmatprep.mubr.bf16.mxu0 0
        %426 = vmatmul.mubr.bf16.gmra.mrb[0].mxu0 %v304
        %v427 = vpop.f32.mrb[0].mxu0
        %v428 = vadd.f32 0.0, %v427
        %v429 = vpop.f32.mrb[0].mxu0
        %v430 = vadd.f32 0.0, %v429
        %v431 = vpop.f32.mrb[0].mxu0
        %v432 = vadd.f32 0.0, %v431
        %v433 = vpop.f32.mrb[0].mxu0
        %v434 = vadd.f32 0.0, %v433
        %435 = vmatprep.mubr.bf16.mxu0 0
        %436 = vmatmul.mubr.bf16.gmra.mrb[0].mxu0 %v307
        %v437 = vpop.f32.mrb[0].mxu0
        %v438 = vadd.f32 0.0, %v437
        %v439 = vpop.f32.mrb[0].mxu0
        %v440 = vadd.f32 0.0, %v439
        %v441 = vpop.f32.mrb[0].mxu0
        %v442 = vadd.f32 0.0, %v441
        %v443 = vpop.f32.mrb[0].mxu0
        %v444 = vadd.f32 0.0, %v443
        %445 = vmatprep.mubr.bf16.mxu0 0
        %446 = vmatmul.mubr.bf16.gmra.mrb[0].mxu0 %v310
        %v447 = vpop.f32.mrb[0].mxu0
        %v448 = vadd.f32 0.0, %v447
        %v449 = vpop.f32.mrb[0].mxu0
        %v450 = vadd.f32 0.0, %v449
        %v451 = vpop.f32.mrb[0].mxu0
        %v452 = vadd.f32 0.0, %v451
        %v453 = vpop.f32.mrb[0].mxu0
        %v454 = vadd.f32 0.0, %v453
        %455 = vmatprep.mubr.bf16.mxu0 0
        %456 = vmatmul.mubr.bf16.gmra.mrb[0].mxu0 %v313
        %v457 = vpop.f32.mrb[0].mxu0
        %v458 = vadd.f32 0.0, %v457
        %v459 = vpop.f32.mrb[0].mxu0
        %v460 = vadd.f32 0.0, %v459
        %v461 = vpop.f32.mrb[0].mxu0
        %v462 = vadd.f32 0.0, %v461
        %v463 = vpop.f32.mrb[0].mxu0
        %v464 = vadd.f32 0.0, %v463
        %465 = vmatprep.mubr.bf16.mxu0 0
        %466 = vmatmul.mubr.bf16.gmra.mrb[0].mxu0 %v316
        %v467 = vpop.f32.mrb[0].mxu0
        %v468 = vadd.f32 0.0, %v467
        %v469 = vpop.f32.mrb[0].mxu0
        %v470 = vadd.f32 0.0, %v469
        %v471 = vpop.f32.mrb[0].mxu0
        %v472 = vadd.f32 0.0, %v471
        %v473 = vpop.f32.mrb[0].mxu0
        %v474 = vadd.f32 0.0, %v473
        %475 = vmatprep.mubr.bf16.mxu0 0
        %476 = vmatmul.mubr.bf16.gmra.mrb[0].mxu0 %v319
        %v477 = vpop.f32.mrb[0].mxu0
        %v478 = vadd.f32 0.0, %v477
        %v479 = vpop.f32.mrb[0].mxu0
        %v480 = vadd.f32 0.0, %v479
        %v481 = vpop.f32.mrb[0].mxu0
        %v482 = vadd.f32 0.0, %v481
        %v483 = vpop.f32.mrb[0].mxu0
        %v484 = vadd.f32 0.0, %v483
        %485 = vmatprep.mubr.bf16.mxu0 0
        %486 = vmatmul.mubr.bf16.gmra.mrb[0].mxu0 %v322
        %v487 = vpop.f32.mrb[0].mxu0
        %v488 = vadd.f32 0.0, %v487
        %v489 = vpop.f32.mrb[0].mxu0
        %v490 = vadd.f32 0.0, %v489
        %v491 = vpop.f32.mrb[0].mxu0
        %v492 = vadd.f32 0.0, %v491
        %v493 = vpop.f32.mrb[0].mxu0
        %v494 = vadd.f32 0.0, %v493
        %495 = vmatprep.mubr.bf16.mxu0 0
        %496 = vmatmul.mubr.bf16.gmra.mrb[0].mxu0 %v325
        %v497 = vpop.f32.mrb[0].mxu0
        %v498 = vadd.f32 0.0, %v497
        %v499 = vpop.f32.mrb[0].mxu0
        %v500 = vadd.f32 0.0, %v499
        %v501 = vpop.f32.mrb[0].mxu0
        %v502 = vadd.f32 0.0, %v501
        %v503 = vpop.f32.mrb[0].mxu0
        %v504 = vadd.f32 0.0, %v503
        %505 = vmatprep.mubr.bf16.mxu0 0
        %506 = vmatmul.mubr.bf16.gmra.mrb[0].mxu0 %v328
        %v507 = vpop.f32.mrb[0].mxu0
        %v508 = vadd.f32 0.0, %v507
        %v509 = vpop.f32.mrb[0].mxu0
        %v510 = vadd.f32 0.0, %v509
        %v511 = vpop.f32.mrb[0].mxu0
        %v512 = vadd.f32 0.0, %v511
        %v513 = vpop.f32.mrb[0].mxu0
        %v514 = vadd.f32 0.0, %v513
        %515 = vmatprep.mubr.bf16.mxu0 0
        %516 = vmatmul.mubr.bf16.gmra.mrb[0].mxu0 %v331
        %v517 = vpop.f32.mrb[0].mxu0
        %v518 = vadd.f32 0.0, %v517
        %v519 = vpop.f32.mrb[0].mxu0
        %v520 = vadd.f32 0.0, %v519
        %v521 = vpop.f32.mrb[0].mxu0
        %v522 = vadd.f32 0.0, %v521
        %v523 = vpop.f32.mrb[0].mxu0
        %v524 = vadd.f32 0.0, %v523
        %525 = vmatprep.mubr.bf16.mxu0 0
        %526 = vmatmul.mubr.bf16.gmra.mrb[0].mxu0 %v334
        %v527 = vpop.f32.mrb[0].mxu0
        %v528 = vadd.f32 0.0, %v527
        %v529 = vpop.f32.mrb[0].mxu0
        %v530 = vadd.f32 0.0, %v529
        %v531 = vpop.f32.mrb[0].mxu0
        %v532 = vadd.f32 0.0, %v531
        %v533 = vpop.f32.mrb[0].mxu0
        %v534 = vadd.f32 0.0, %v533
        %535 = vdwg.mxu0
        %536 = vst [vmem:[#allocation2] sm:$0xff] %v378
        %537 = vst [vmem:[#allocation2 + $0x8] sm:$0xff] %v380
        %538 = vst [vmem:[#allocation2 + $0x10] sm:$0xff] %v382
        %539 = vst [vmem:[#allocation2 + $0x18] sm:$0xff] %v384
        %540 = vst [vmem:[#allocation2 + $0x20] sm:$0xff] %v388
        %541 = vst [vmem:[#allocation2 + $0x28] sm:$0xff] %v390
        %542 = vst [vmem:[#allocation2 + $0x30] sm:$0xff] %v392
        %543 = vst [vmem:[#allocation2 + $0x38] sm:$0xff] %v394
        %544 = vst [vmem:[#allocation2 + $0x40] sm:$0xff] %v398
        %545 = vst [vmem:[#allocation2 + $0x48] sm:$0xff] %v400
        %546 = vst [vmem:[#allocation2 + $0x50] sm:$0xff] %v402
        %547 = vst [vmem:[#allocation2 + $0x58] sm:$0xff] %v404
        %548 = vst [vmem:[#allocation2 + $0x60] sm:$0xff] %v408
        %549 = vst [vmem:[#allocation2 + $0x68] sm:$0xff] %v410
        %550 = vst [vmem:[#allocation2 + $0x70] sm:$0xff] %v412
        %551 = vst [vmem:[#allocation2 + $0x78] sm:$0xff] %v414
        %552 = vst [vmem:[#allocation2 + $0x80] sm:$0xff] %v418
        %553 = vst [vmem:[#allocation2 + $0x88] sm:$0xff] %v420
        %554 = vst [vmem:[#allocation2 + $0x90] sm:$0xff] %v422
        %555 = vst [vmem:[#allocation2 + $0x98] sm:$0xff] %v424
        %556 = vst [vmem:[#allocation2 + $0xa0] sm:$0xff] %v428
        %557 = vst [vmem:[#allocation2 + $0xa8] sm:$0xff] %v430
        %558 = vst [vmem:[#allocation2 + $0xb0] sm:$0xff] %v432
        %559 = vst [vmem:[#allocation2 + $0xb8] sm:$0xff] %v434
        %560 = vst [vmem:[#allocation2 + $0xc0] sm:$0xff] %v438
        %561 = vst [vmem:[#allocation2 + $0xc8] sm:$0xff] %v440
        %562 = vst [vmem:[#allocation2 + $0xd0] sm:$0xff] %v442
        %563 = vst [vmem:[#allocation2 + $0xd8] sm:$0xff] %v444
        %564 = vst [vmem:[#allocation2 + $0xe0] sm:$0xff] %v448
        %565 = vst [vmem:[#allocation2 + $0xe8] sm:$0xff] %v450
        %566 = vst [vmem:[#allocation2 + $0xf0] sm:$0xff] %v452
        %567 = vst [vmem:[#allocation2 + $0xf8] sm:$0xff] %v454
        %568 = vst [vmem:[#allocation2 + $0x100] sm:$0xff] %v458
        %569 = vst [vmem:[#allocation2 + $0x108] sm:$0xff] %v460
        %570 = vst [vmem:[#allocation2 + $0x110] sm:$0xff] %v462
        %571 = vst [vmem:[#allocation2 + $0x118] sm:$0xff] %v464
        %572 = vst [vmem:[#allocation2 + $0x120] sm:$0xff] %v468
        %573 = vst [vmem:[#allocation2 + $0x128] sm:$0xff] %v470
        %574 = vst [vmem:[#allocation2 + $0x130] sm:$0xff] %v472
        %575 = vst [vmem:[#allocation2 + $0x138] sm:$0xff] %v474
        %576 = vst [vmem:[#allocation2 + $0x140] sm:$0xff] %v478
        %577 = vst [vmem:[#allocation2 + $0x148] sm:$0xff] %v480
        %578 = vst [vmem:[#allocation2 + $0x150] sm:$0xff] %v482
        %579 = vst [vmem:[#allocation2 + $0x158] sm:$0xff] %v484
        %580 = vst [vmem:[#allocation2 + $0x160] sm:$0xff] %v488
        %581 = vst [vmem:[#allocation2 + $0x168] sm:$0xff] %v490
        %582 = vst [vmem:[#allocation2 + $0x170] sm:$0xff] %v492
        %583 = vst [vmem:[#allocation2 + $0x178] sm:$0xff] %v494
        %584 = vst [vmem:[#allocation2 + $0x180] sm:$0xff] %v498
        %585 = vst [vmem:[#allocation2 + $0x188] sm:$0xff] %v500
        %586 = vst [vmem:[#allocation2 + $0x190] sm:$0xff] %v502
        %587 = vst [vmem:[#allocation2 + $0x198] sm:$0xff] %v504
        %588 = vst [vmem:[#allocation2 + $0x1a0] sm:$0xff] %v508
        %589 = vst [vmem:[#allocation2 + $0x1a8] sm:$0xff] %v510
        %590 = vst [vmem:[#allocation2 + $0x1b0] sm:$0xff] %v512
        %591 = vst [vmem:[#allocation2 + $0x1b8] sm:$0xff] %v514
        %592 = vst [vmem:[#allocation2 + $0x1c0] sm:$0xff] %v518
        %593 = vst [vmem:[#allocation2 + $0x1c8] sm:$0xff] %v520
        %594 = vst [vmem:[#allocation2 + $0x1d0] sm:$0xff] %v522
        %595 = vst [vmem:[#allocation2 + $0x1d8] sm:$0xff] %v524
        %596 = vst [vmem:[#allocation2 + $0x1e0] sm:$0xff] %v528
        %597 = vst [vmem:[#allocation2 + $0x1e8] sm:$0xff] %v530
        %598 = vst [vmem:[#allocation2 + $0x1f0] sm:$0xff] %v532
        %599 = vst [vmem:[#allocation2 + $0x1f8] sm:$0xff] %v534
        %vm600 = vsmask.f32 3328
        %vm601 = vsmask.f32 7440
        %vm602 = vmor %vm600, %vm601
        %v604 = vshrl.u32 %v143, 16
        %v606 = vrot.slane %v604, 4
        %v607 = vshll.u32 %v143, 16
        %v609 = vrot.slane %v607, 5
        %v610 = vor.u32 %v606, %v609
        %v611 = vrot.slane %v610, 4
        %v613 = vshll.u32 %v144, 16
        %v615 = vrot.slane %v613, 5
        %v616 = vsel %vm602, %v611, %v615
        %v617 = vshrl.u32 %v144, 16
        %v619 = vrot.slane %v617, 4
        %v620 = vor.u32 %v619, %v615
        %v621 = vrot.slane %v620, 4
        %v623 = vshll.u32 %v145, 16
        %v625 = vrot.slane %v623, 5
        %v626 = vsel %vm602, %v621, %v625
        %v628 = vshrl.u32 %v146, 16
        %v630 = vrot.slane %v628, 4
        %v631 = vshll.u32 %v146, 16
        %v633 = vrot.slane %v631, 5
        %v634 = vor.u32 %v630, %v633
        %v635 = vrot.slane %v634, 4
        %v637 = vshll.u32 %v147, 16
        %v639 = vrot.slane %v637, 5
        %v640 = vsel %vm602, %v635, %v639
        %v641 = vshrl.u32 %v147, 16
        %v643 = vrot.slane %v641, 4
        %v644 = vor.u32 %v643, %v639
        %v645 = vrot.slane %v644, 4
        %v647 = vshll.u32 %v148, 16
        %v649 = vrot.slane %v647, 5
        %v650 = vsel %vm602, %v645, %v649
        %v652 = vshrl.u32 %v149, 16
        %v654 = vrot.slane %v652, 4
        %v655 = vshll.u32 %v149, 16
        %v657 = vrot.slane %v655, 5
        %v658 = vor.u32 %v654, %v657
        %v659 = vrot.slane %v658, 4
        %v661 = vshll.u32 %v150, 16
        %v663 = vrot.slane %v661, 5
        %v664 = vsel %vm602, %v659, %v663
        %v665 = vshrl.u32 %v150, 16
        %v667 = vrot.slane %v665, 4
        %v668 = vor.u32 %v667, %v663
        %v669 = vrot.slane %v668, 4
        %v671 = vshll.u32 %v151, 16
        %v673 = vrot.slane %v671, 5
        %v674 = vsel %vm602, %v669, %v673
        %v676 = vshrl.u32 %v152, 16
        %v678 = vrot.slane %v676, 4
        %v679 = vshll.u32 %v152, 16
        %v681 = vrot.slane %v679, 5
        %v682 = vor.u32 %v678, %v681
        %v683 = vrot.slane %v682, 4
        %v685 = vshll.u32 %v153, 16
        %v687 = vrot.slane %v685, 5
        %v688 = vsel %vm602, %v683, %v687
        %v689 = vshrl.u32 %v153, 16
        %v691 = vrot.slane %v689, 4
        %v692 = vor.u32 %v691, %v687
        %v693 = vrot.slane %v692, 4
        %v695 = vshll.u32 %v154, 16
        %v697 = vrot.slane %v695, 5
        %v698 = vsel %vm602, %v693, %v697
        %v700 = vshrl.u32 %v155, 16
        %v702 = vrot.slane %v700, 4
        %v703 = vshll.u32 %v155, 16
        %v705 = vrot.slane %v703, 5
        %v706 = vor.u32 %v702, %v705
        %v707 = vrot.slane %v706, 4
        %v709 = vshll.u32 %v156, 16
        %v711 = vrot.slane %v709, 5
        %v712 = vsel %vm602, %v707, %v711
        %v713 = vshrl.u32 %v156, 16
        %v715 = vrot.slane %v713, 4
        %v716 = vor.u32 %v715, %v711
        %v717 = vrot.slane %v716, 4
        %v719 = vshll.u32 %v157, 16
        %v721 = vrot.slane %v719, 5
        %v722 = vsel %vm602, %v717, %v721
        %v724 = vshrl.u32 %v158, 16
        %v726 = vrot.slane %v724, 4
        %v727 = vshll.u32 %v158, 16
        %v729 = vrot.slane %v727, 5
        %v730 = vor.u32 %v726, %v729
        %v731 = vrot.slane %v730, 4
        %v733 = vshll.u32 %v159, 16
        %v735 = vrot.slane %v733, 5
        %v736 = vsel %vm602, %v731, %v735
        %v737 = vshrl.u32 %v159, 16
        %v739 = vrot.slane %v737, 4
        %v740 = vor.u32 %v739, %v735
        %v741 = vrot.slane %v740, 4
        %v743 = vshll.u32 %v160, 16
        %v745 = vrot.slane %v743, 5
        %v746 = vsel %vm602, %v741, %v745
        %v748 = vshrl.u32 %v161, 16
        %v750 = vrot.slane %v748, 4
        %v751 = vshll.u32 %v161, 16
        %v753 = vrot.slane %v751, 5
        %v754 = vor.u32 %v750, %v753
        %v755 = vrot.slane %v754, 4
        %v757 = vshll.u32 %v162, 16
        %v759 = vrot.slane %v757, 5
        %v760 = vsel %vm602, %v755, %v759
        %v761 = vshrl.u32 %v162, 16
        %v763 = vrot.slane %v761, 4
        %v764 = vor.u32 %v763, %v759
        %v765 = vrot.slane %v764, 4
        %v767 = vshll.u32 %v163, 16
        %v769 = vrot.slane %v767, 5
        %v770 = vsel %vm602, %v765, %v769
        %v772 = vshrl.u32 %v164, 16
        %v774 = vrot.slane %v772, 4
        %v775 = vshll.u32 %v164, 16
        %v777 = vrot.slane %v775, 5
        %v778 = vor.u32 %v774, %v777
        %v779 = vrot.slane %v778, 4
        %v781 = vshll.u32 %v165, 16
        %v783 = vrot.slane %v781, 5
        %v784 = vsel %vm602, %v779, %v783
        %v785 = vshrl.u32 %v165, 16
        %v787 = vrot.slane %v785, 4
        %v788 = vor.u32 %v787, %v783
        %v789 = vrot.slane %v788, 4
        %v791 = vshll.u32 %v166, 16
        %v793 = vrot.slane %v791, 5
        %v794 = vsel %vm602, %v789, %v793
        %v796 = vshrl.u32 %v167, 16
        %v798 = vrot.slane %v796, 4
        %v799 = vshll.u32 %v167, 16
        %v801 = vrot.slane %v799, 5
        %v802 = vor.u32 %v798, %v801
        %v803 = vrot.slane %v802, 4
        %v805 = vshll.u32 %v168, 16
        %v807 = vrot.slane %v805, 5
        %v808 = vsel %vm602, %v803, %v807
        %v809 = vshrl.u32 %v168, 16
        %v811 = vrot.slane %v809, 4
        %v812 = vor.u32 %v811, %v807
        %v813 = vrot.slane %v812, 4
        %v815 = vshll.u32 %v169, 16
        %v817 = vrot.slane %v815, 5
        %v818 = vsel %vm602, %v813, %v817
        %v820 = vshrl.u32 %v170, 16
        %v822 = vrot.slane %v820, 4
        %v823 = vshll.u32 %v170, 16
        %v825 = vrot.slane %v823, 5
        %v826 = vor.u32 %v822, %v825
        %v827 = vrot.slane %v826, 4
        %v829 = vshll.u32 %v171, 16
        %v831 = vrot.slane %v829, 5
        %v832 = vsel %vm602, %v827, %v831
        %v833 = vshrl.u32 %v171, 16
        %v835 = vrot.slane %v833, 4
        %v836 = vor.u32 %v835, %v831
        %v837 = vrot.slane %v836, 4
        %v839 = vshll.u32 %v172, 16
        %v841 = vrot.slane %v839, 5
        %v842 = vsel %vm602, %v837, %v841
        %v844 = vshrl.u32 %v173, 16
        %v846 = vrot.slane %v844, 4
        %v847 = vshll.u32 %v173, 16
        %v849 = vrot.slane %v847, 5
        %v850 = vor.u32 %v846, %v849
        %v851 = vrot.slane %v850, 4
        %v853 = vshll.u32 %v174, 16
        %v855 = vrot.slane %v853, 5
        %v856 = vsel %vm602, %v851, %v855
        %v857 = vshrl.u32 %v174, 16
        %v859 = vrot.slane %v857, 4
        %v860 = vor.u32 %v859, %v855
        %v861 = vrot.slane %v860, 4
        %v863 = vshll.u32 %v175, 16
        %v865 = vrot.slane %v863, 5
        %v866 = vsel %vm602, %v861, %v865
        %v868 = vshrl.u32 %v176, 16
        %v870 = vrot.slane %v868, 4
        %v871 = vshll.u32 %v176, 16
        %v873 = vrot.slane %v871, 5
        %v874 = vor.u32 %v870, %v873
        %v875 = vrot.slane %v874, 4
        %v877 = vshll.u32 %v177, 16
        %v879 = vrot.slane %v877, 5
        %v880 = vsel %vm602, %v875, %v879
        %v881 = vshrl.u32 %v177, 16
        %v883 = vrot.slane %v881, 4
        %v884 = vor.u32 %v883, %v879
        %v885 = vrot.slane %v884, 4
        %v887 = vshll.u32 %v178, 16
        %v889 = vrot.slane %v887, 5
        %v890 = vsel %vm602, %v885, %v889
        %v892 = vshrl.u32 %v179, 16
        %v894 = vrot.slane %v892, 4
        %v895 = vshll.u32 %v179, 16
        %v897 = vrot.slane %v895, 5
        %v898 = vor.u32 %v894, %v897
        %v899 = vrot.slane %v898, 4
        %v901 = vshll.u32 %v180, 16
        %v903 = vrot.slane %v901, 5
        %v904 = vsel %vm602, %v899, %v903
        %v905 = vshrl.u32 %v180, 16
        %v907 = vrot.slane %v905, 4
        %v908 = vor.u32 %v907, %v903
        %v909 = vrot.slane %v908, 4
        %v911 = vshll.u32 %v181, 16
        %v913 = vrot.slane %v911, 5
        %v914 = vsel %vm602, %v909, %v913
        %v916 = vshrl.u32 %v182, 16
        %v918 = vrot.slane %v916, 4
        %v919 = vshll.u32 %v182, 16
        %v921 = vrot.slane %v919, 5
        %v922 = vor.u32 %v918, %v921
        %v923 = vrot.slane %v922, 4
        %v925 = vshll.u32 %v183, 16
        %v927 = vrot.slane %v925, 5
        %v928 = vsel %vm602, %v923, %v927
        %v929 = vshrl.u32 %v183, 16
        %v931 = vrot.slane %v929, 4
        %v932 = vor.u32 %v931, %v927
        %v933 = vrot.slane %v932, 4
        %v935 = vshll.u32 %v184, 16
        %v937 = vrot.slane %v935, 5
        %v938 = vsel %vm602, %v933, %v937
        %v940 = vshrl.u32 %v185, 16
        %v942 = vrot.slane %v940, 4
        %v943 = vshll.u32 %v185, 16
        %v945 = vrot.slane %v943, 5
        %v946 = vor.u32 %v942, %v945
        %v947 = vrot.slane %v946, 4
        %v949 = vshll.u32 %v186, 16
        %v951 = vrot.slane %v949, 5
        %v952 = vsel %vm602, %v947, %v951
        %v953 = vshrl.u32 %v186, 16
        %v955 = vrot.slane %v953, 4
        %v956 = vor.u32 %v955, %v951
        %v957 = vrot.slane %v956, 4
        %v959 = vshll.u32 %v187, 16
        %v961 = vrot.slane %v959, 5
        %v962 = vsel %vm602, %v957, %v961
        %v964 = vshrl.u32 %v188, 16
        %v966 = vrot.slane %v964, 4
        %v967 = vshll.u32 %v188, 16
        %v969 = vrot.slane %v967, 5
        %v970 = vor.u32 %v966, %v969
        %v971 = vrot.slane %v970, 4
        %v973 = vshll.u32 %v189, 16
        %v975 = vrot.slane %v973, 5
        %v976 = vsel %vm602, %v971, %v975
        %v977 = vshrl.u32 %v189, 16
        %v979 = vrot.slane %v977, 4
        %v980 = vor.u32 %v979, %v975
        %v981 = vrot.slane %v980, 4
        %v983 = vshll.u32 %v190, 16
        %v985 = vrot.slane %v983, 5
        %v986 = vsel %vm602, %v981, %v985
        %s987 = scalar_lea.vmem %s1, 4
        %v988 = vld [vmem:[%s987] sm:$0xf]
        %v989 = vunpack.c.l.b16 %v616
        %v990 = vunpack.c.l.b16 %v626
        %v991 = vunpack.c.l.b16 %v640
        %v992 = vunpack.c.l.b16 %v650
        %v993 = vunpack.c.l.b16 %v664
        %v994 = vunpack.c.l.b16 %v674
        %v995 = vunpack.c.l.b16 %v688
        %v996 = vunpack.c.l.b16 %v698
        %v997 = vunpack.c.l.b16 %v712
        %v998 = vunpack.c.l.b16 %v722
        %v999 = vunpack.c.l.b16 %v736
        %v1000 = vunpack.c.l.b16 %v746
        %v1001 = vunpack.c.l.b16 %v760
        %v1002 = vunpack.c.l.b16 %v770
        %v1003 = vunpack.c.l.b16 %v784
        %v1004 = vunpack.c.l.b16 %v794
        %v1005 = vunpack.c.l.b16 %v808
        %v1006 = vunpack.c.l.b16 %v818
        %v1007 = vunpack.c.l.b16 %v832
        %v1008 = vunpack.c.l.b16 %v842
        %v1009 = vunpack.c.l.b16 %v856
        %v1010 = vunpack.c.l.b16 %v866
        %v1011 = vunpack.c.l.b16 %v880
        %v1012 = vunpack.c.l.b16 %v890
        %v1013 = vunpack.c.l.b16 %v904
        %v1014 = vunpack.c.l.b16 %v914
        %v1015 = vunpack.c.l.b16 %v928
        %v1016 = vunpack.c.l.b16 %v938
        %v1017 = vunpack.c.l.b16 %v952
        %v1018 = vunpack.c.l.b16 %v962
        %v1019 = vunpack.c.l.b16 %v976
        %v1020 = vunpack.c.l.b16 %v986
        %v1021 = vpack.c.b16 %v990, %v989
        %v1022 = vpack.c.b16 %v992, %v991
        %v1023 = vpack.c.b16 %v994, %v993
        %v1024 = vpack.c.b16 %v996, %v995
        %v1025 = vpack.c.b16 %v998, %v997
        %v1026 = vpack.c.b16 %v1000, %v999
        %v1027 = vpack.c.b16 %v1002, %v1001
        %v1028 = vpack.c.b16 %v1004, %v1003
        %v1029 = vpack.c.b16 %v1006, %v1005
        %v1030 = vpack.c.b16 %v1008, %v1007
        %v1031 = vpack.c.b16 %v1010, %v1009
        %v1032 = vpack.c.b16 %v1012, %v1011
        %v1033 = vpack.c.b16 %v1014, %v1013
        %v1034 = vpack.c.b16 %v1016, %v1015
        %v1035 = vpack.c.b16 %v1018, %v1017
        %v1036 = vpack.c.b16 %v1020, %v1019
        %v1039 = vunpack.c.l.s4 1983009808
        %v1040 = vunpack.c.0.s8 %v1039
        %v1041 = vlaneseq
        %v1042 = vshrl.u32 %v1041, 7
        %v1043 = vsub.s32 %v1040, %v1042
        %v1044 = vrot.slane %v988, %v1043
        %v1045 = vcombine.high %v1044, %v1044
        %v1047 = vsel %vm287, %v1021, 0
        %v1050 = vsel %vm287, %v1022, 0
        %v1053 = vsel %vm287, %v1023, 0
        %v1056 = vsel %vm287, %v1024, 0
        %v1059 = vsel %vm287, %v1025, 0
        %v1062 = vsel %vm287, %v1026, 0
        %v1065 = vsel %vm287, %v1027, 0
        %v1068 = vsel %vm287, %v1028, 0
        %v1071 = vsel %vm287, %v1029, 0
        %v1074 = vsel %vm287, %v1030, 0
        %v1077 = vsel %vm287, %v1031, 0
        %v1080 = vsel %vm287, %v1032, 0
        %v1083 = vsel %vm287, %v1033, 0
        %v1086 = vsel %vm287, %v1034, 0
        %v1089 = vsel %vm287, %v1035, 0
        %v1092 = vsel %vm287, %v1036, 0
        %v1095 = vsel %vm336, %v1044, 0
        %v1098 = vsel %vm336, %v1045, 0
        %1100 = vmatprep.subr.bf16.mxu0 %v1098
        %1101 = vmatpush1.bf16.msra.mxu0 %v1095
        %1102 = vmatprep.subr.bf16.mxu0 0
        %1103 = vmatpush1.bf16.msra.mxu0 0
        %1104 = vmatprep.subr.bf16.mxu0 0
        %1105 = vmatpush1.bf16.msra.mxu0 0
        %1106 = vmatprep.subr.bf16.mxu0 0
        %1107 = vmatpush1.bf16.msra.mxu0 0
        %1108 = vmatprep.subr.bf16.mxu0 0
        %1109 = vmatpush1.bf16.msra.mxu0 0
        %1110 = vmatprep.subr.bf16.mxu0 0
        %1111 = vmatpush1.bf16.msra.mxu0 0
        %1112 = vmatprep.subr.bf16.mxu0 0
        %1113 = vmatpush1.bf16.msra.mxu0 0
        %1114 = vmatprep.subr.bf16.mxu0 0
        %1115 = vmatpush1.bf16.msra.mxu0 0
        %1116 = vmatprep.subr.bf16.mxu0 0
        %1117 = vmatpush1.bf16.msra.mxu0 0
        %1118 = vmatprep.subr.bf16.mxu0 0
        %1119 = vmatpush1.bf16.msra.mxu0 0
        %1120 = vmatprep.subr.bf16.mxu0 0
        %1121 = vmatpush1.bf16.msra.mxu0 0
        %1122 = vmatprep.subr.bf16.mxu0 0
        %1123 = vmatpush1.bf16.msra.mxu0 0
        %1124 = vmatprep.subr.bf16.mxu0 0
        %1125 = vmatpush1.bf16.msra.mxu0 0
        %1126 = vmatprep.subr.bf16.mxu0 0
        %1127 = vmatpush1.bf16.msra.mxu0 0
        %1128 = vmatprep.subr.bf16.mxu0 0
        %1129 = vmatpush1.bf16.msra.mxu0 0
        %1130 = vmatprep.subr.bf16.mxu0 0
        %1131 = vmatpush1.bf16.msra.mxu0 0
        %1132 = vmatprep.mubr.bf16.mxu0 0
        %1133 = vmatmul.mubr.bf16.gmra.mrb[0].mxu0 %v1047
        %v1134 = vpop.f32.mrb[0].mxu0
        %v1135 = vadd.f32 0.0, %v1134
        %v1136 = vpop.f32.mrb[0].mxu0
        %v1137 = vadd.f32 0.0, %v1136
        %v1138 = vpop.f32.mrb[0].mxu0
        %v1139 = vadd.f32 0.0, %v1138
        %v1140 = vpop.f32.mrb[0].mxu0
        %v1141 = vadd.f32 0.0, %v1140
        %1142 = vmatprep.mubr.bf16.mxu0 0
        %1143 = vmatmul.mubr.bf16.gmra.mrb[0].mxu0 %v1050
        %v1144 = vpop.f32.mrb[0].mxu0
        %v1145 = vadd.f32 0.0, %v1144
        %v1146 = vpop.f32.mrb[0].mxu0
        %v1147 = vadd.f32 0.0, %v1146
        %v1148 = vpop.f32.mrb[0].mxu0
        %v1149 = vadd.f32 0.0, %v1148
        %v1150 = vpop.f32.mrb[0].mxu0
        %v1151 = vadd.f32 0.0, %v1150
        %1152 = vmatprep.mubr.bf16.mxu0 0
        %1153 = vmatmul.mubr.bf16.gmra.mrb[0].mxu0 %v1053
        %v1154 = vpop.f32.mrb[0].mxu0
        %v1155 = vadd.f32 0.0, %v1154
        %v1156 = vpop.f32.mrb[0].mxu0
        %v1157 = vadd.f32 0.0, %v1156
        %v1158 = vpop.f32.mrb[0].mxu0
        %v1159 = vadd.f32 0.0, %v1158
        %v1160 = vpop.f32.mrb[0].mxu0
        %v1161 = vadd.f32 0.0, %v1160
        %1162 = vmatprep.mubr.bf16.mxu0 0
        %1163 = vmatmul.mubr.bf16.gmra.mrb[0].mxu0 %v1056
        %v1164 = vpop.f32.mrb[0].mxu0
        %v1165 = vadd.f32 0.0, %v1164
        %v1166 = vpop.f32.mrb[0].mxu0
        %v1167 = vadd.f32 0.0, %v1166
        %v1168 = vpop.f32.mrb[0].mxu0
        %v1169 = vadd.f32 0.0, %v1168
        %v1170 = vpop.f32.mrb[0].mxu0
        %v1171 = vadd.f32 0.0, %v1170
        %1172 = vmatprep.mubr.bf16.mxu0 0
        %1173 = vmatmul.mubr.bf16.gmra.mrb[0].mxu0 %v1059
        %v1174 = vpop.f32.mrb[0].mxu0
        %v1175 = vadd.f32 0.0, %v1174
        %v1176 = vpop.f32.mrb[0].mxu0
        %v1177 = vadd.f32 0.0, %v1176
        %v1178 = vpop.f32.mrb[0].mxu0
        %v1179 = vadd.f32 0.0, %v1178
        %v1180 = vpop.f32.mrb[0].mxu0
        %v1181 = vadd.f32 0.0, %v1180
        %1182 = vmatprep.mubr.bf16.mxu0 0
        %1183 = vmatmul.mubr.bf16.gmra.mrb[0].mxu0 %v1062
        %v1184 = vpop.f32.mrb[0].mxu0
        %v1185 = vadd.f32 0.0, %v1184
        %v1186 = vpop.f32.mrb[0].mxu0
        %v1187 = vadd.f32 0.0, %v1186
        %v1188 = vpop.f32.mrb[0].mxu0
        %v1189 = vadd.f32 0.0, %v1188
        %v1190 = vpop.f32.mrb[0].mxu0
        %v1191 = vadd.f32 0.0, %v1190
        %1192 = vmatprep.mubr.bf16.mxu0 0
        %1193 = vmatmul.mubr.bf16.gmra.mrb[0].mxu0 %v1065
        %v1194 = vpop.f32.mrb[0].mxu0
        %v1195 = vadd.f32 0.0, %v1194
        %v1196 = vpop.f32.mrb[0].mxu0
        %v1197 = vadd.f32 0.0, %v1196
        %v1198 = vpop.f32.mrb[0].mxu0
        %v1199 = vadd.f32 0.0, %v1198
        %v1200 = vpop.f32.mrb[0].mxu0
        %v1201 = vadd.f32 0.0, %v1200
        %1202 = vmatprep.mubr.bf16.mxu0 0
        %1203 = vmatmul.mubr.bf16.gmra.mrb[0].mxu0 %v1068
        %v1204 = vpop.f32.mrb[0].mxu0
        %v1205 = vadd.f32 0.0, %v1204
        %v1206 = vpop.f32.mrb[0].mxu0
        %v1207 = vadd.f32 0.0, %v1206
        %v1208 = vpop.f32.mrb[0].mxu0
        %v1209 = vadd.f32 0.0, %v1208
        %v1210 = vpop.f32.mrb[0].mxu0
        %v1211 = vadd.f32 0.0, %v1210
        %1212 = vmatprep.mubr.bf16.mxu0 0
        %1213 = vmatmul.mubr.bf16.gmra.mrb[0].mxu0 %v1071
        %v1214 = vpop.f32.mrb[0].mxu0
        %v1215 = vadd.f32 0.0, %v1214
        %v1216 = vpop.f32.mrb[0].mxu0
        %v1217 = vadd.f32 0.0, %v1216
        %v1218 = vpop.f32.mrb[0].mxu0
        %v1219 = vadd.f32 0.0, %v1218
        %v1220 = vpop.f32.mrb[0].mxu0
        %v1221 = vadd.f32 0.0, %v1220
        %1222 = vmatprep.mubr.bf16.mxu0 0
        %1223 = vmatmul.mubr.bf16.gmra.mrb[0].mxu0 %v1074
        %v1224 = vpop.f32.mrb[0].mxu0
        %v1225 = vadd.f32 0.0, %v1224
        %v1226 = vpop.f32.mrb[0].mxu0
        %v1227 = vadd.f32 0.0, %v1226
        %v1228 = vpop.f32.mrb[0].mxu0
        %v1229 = vadd.f32 0.0, %v1228
        %v1230 = vpop.f32.mrb[0].mxu0
        %v1231 = vadd.f32 0.0, %v1230
        %1232 = vmatprep.mubr.bf16.mxu0 0
        %1233 = vmatmul.mubr.bf16.gmra.mrb[0].mxu0 %v1077
        %v1234 = vpop.f32.mrb[0].mxu0
        %v1235 = vadd.f32 0.0, %v1234
        %v1236 = vpop.f32.mrb[0].mxu0
        %v1237 = vadd.f32 0.0, %v1236
        %v1238 = vpop.f32.mrb[0].mxu0
        %v1239 = vadd.f32 0.0, %v1238
        %v1240 = vpop.f32.mrb[0].mxu0
        %v1241 = vadd.f32 0.0, %v1240
        %1242 = vmatprep.mubr.bf16.mxu0 0
        %1243 = vmatmul.mubr.bf16.gmra.mrb[0].mxu0 %v1080
        %v1244 = vpop.f32.mrb[0].mxu0
        %v1245 = vadd.f32 0.0, %v1244
        %v1246 = vpop.f32.mrb[0].mxu0
        %v1247 = vadd.f32 0.0, %v1246
        %v1248 = vpop.f32.mrb[0].mxu0
        %v1249 = vadd.f32 0.0, %v1248
        %v1250 = vpop.f32.mrb[0].mxu0
        %v1251 = vadd.f32 0.0, %v1250
        %1252 = vmatprep.mubr.bf16.mxu0 0
        %1253 = vmatmul.mubr.bf16.gmra.mrb[0].mxu0 %v1083
        %v1254 = vpop.f32.mrb[0].mxu0
        %v1255 = vadd.f32 0.0, %v1254
        %v1256 = vpop.f32.mrb[0].mxu0
        %v1257 = vadd.f32 0.0, %v1256
        %v1258 = vpop.f32.mrb[0].mxu0
        %v1259 = vadd.f32 0.0, %v1258
        %v1260 = vpop.f32.mrb[0].mxu0
        %v1261 = vadd.f32 0.0, %v1260
        %1262 = vmatprep.mubr.bf16.mxu0 0
        %1263 = vmatmul.mubr.bf16.gmra.mrb[0].mxu0 %v1086
        %v1264 = vpop.f32.mrb[0].mxu0
        %v1265 = vadd.f32 0.0, %v1264
        %v1266 = vpop.f32.mrb[0].mxu0
        %v1267 = vadd.f32 0.0, %v1266
        %v1268 = vpop.f32.mrb[0].mxu0
        %v1269 = vadd.f32 0.0, %v1268
        %v1270 = vpop.f32.mrb[0].mxu0
        %v1271 = vadd.f32 0.0, %v1270
        %1272 = vmatprep.mubr.bf16.mxu0 0
        %1273 = vmatmul.mubr.bf16.gmra.mrb[0].mxu0 %v1089
        %v1274 = vpop.f32.mrb[0].mxu0
        %v1275 = vadd.f32 0.0, %v1274
        %v1276 = vpop.f32.mrb[0].mxu0
        %v1277 = vadd.f32 0.0, %v1276
        %v1278 = vpop.f32.mrb[0].mxu0
        %v1279 = vadd.f32 0.0, %v1278
        %v1280 = vpop.f32.mrb[0].mxu0
        %v1281 = vadd.f32 0.0, %v1280
        %1282 = vmatprep.mubr.bf16.mxu0 0
        %1283 = vmatmul.mubr.bf16.gmra.mrb[0].mxu0 %v1092
        %v1284 = vpop.f32.mrb[0].mxu0
        %v1285 = vadd.f32 0.0, %v1284
        %v1286 = vpop.f32.mrb[0].mxu0
        %v1287 = vadd.f32 0.0, %v1286
        %v1288 = vpop.f32.mrb[0].mxu0
        %v1289 = vadd.f32 0.0, %v1288
        %v1290 = vpop.f32.mrb[0].mxu0
        %v1291 = vadd.f32 0.0, %v1290
        %1292 = vdwg.mxu0
        %v1293 = vld [vmem:[#allocation2] sm:$0xff]
        %v1294 = vld [vmem:[#allocation2 + $0x8] sm:$0xff]
        %v1295 = vld [vmem:[#allocation2 + $0x10] sm:$0xff]
        %v1296 = vld [vmem:[#allocation2 + $0x18] sm:$0xff]
        %v1297 = vld [vmem:[#allocation2 + $0x20] sm:$0xff]
        %v1298 = vld [vmem:[#allocation2 + $0x28] sm:$0xff]
        %v1299 = vld [vmem:[#allocation2 + $0x30] sm:$0xff]
        %v1300 = vld [vmem:[#allocation2 + $0x38] sm:$0xff]
        %v1301 = vld [vmem:[#allocation2 + $0x40] sm:$0xff]
        %v1302 = vld [vmem:[#allocation2 + $0x48] sm:$0xff]
        %v1303 = vld [vmem:[#allocation2 + $0x50] sm:$0xff]
        %v1304 = vld [vmem:[#allocation2 + $0x58] sm:$0xff]
        %v1305 = vld [vmem:[#allocation2 + $0x60] sm:$0xff]
        %v1306 = vld [vmem:[#allocation2 + $0x68] sm:$0xff]
        %v1307 = vld [vmem:[#allocation2 + $0x70] sm:$0xff]
        %v1308 = vld [vmem:[#allocation2 + $0x78] sm:$0xff]
        %v1309 = vld [vmem:[#allocation2 + $0x80] sm:$0xff]
        %v1310 = vld [vmem:[#allocation2 + $0x88] sm:$0xff]
        %v1311 = vld [vmem:[#allocation2 + $0x90] sm:$0xff]
        %v1312 = vld [vmem:[#allocation2 + $0x98] sm:$0xff]
        %v1313 = vld [vmem:[#allocation2 + $0xa0] sm:$0xff]
        %v1314 = vld [vmem:[#allocation2 + $0xa8] sm:$0xff]
        %v1315 = vld [vmem:[#allocation2 + $0xb0] sm:$0xff]
        %v1316 = vld [vmem:[#allocation2 + $0xb8] sm:$0xff]
        %v1317 = vld [vmem:[#allocation2 + $0xc0] sm:$0xff]
        %v1318 = vld [vmem:[#allocation2 + $0xc8] sm:$0xff]
        %v1319 = vld [vmem:[#allocation2 + $0xd0] sm:$0xff]
        %v1320 = vld [vmem:[#allocation2 + $0xd8] sm:$0xff]
        %v1321 = vld [vmem:[#allocation2 + $0xe0] sm:$0xff]
        %v1322 = vld [vmem:[#allocation2 + $0xe8] sm:$0xff]
        %v1323 = vld [vmem:[#allocation2 + $0xf0] sm:$0xff]
        %v1324 = vld [vmem:[#allocation2 + $0xf8] sm:$0xff]
        %v1325 = vld [vmem:[#allocation2 + $0x100] sm:$0xff]
        %v1326 = vld [vmem:[#allocation2 + $0x108] sm:$0xff]
        %v1327 = vld [vmem:[#allocation2 + $0x110] sm:$0xff]
        %v1328 = vld [vmem:[#allocation2 + $0x118] sm:$0xff]
        %v1329 = vld [vmem:[#allocation2 + $0x120] sm:$0xff]
        %v1330 = vld [vmem:[#allocation2 + $0x128] sm:$0xff]
        %v1331 = vld [vmem:[#allocation2 + $0x130] sm:$0xff]
        %v1332 = vld [vmem:[#allocation2 + $0x138] sm:$0xff]
        %v1333 = vld [vmem:[#allocation2 + $0x140] sm:$0xff]
        %v1334 = vld [vmem:[#allocation2 + $0x148] sm:$0xff]
        %v1335 = vld [vmem:[#allocation2 + $0x150] sm:$0xff]
        %v1336 = vld [vmem:[#allocation2 + $0x158] sm:$0xff]
        %v1337 = vld [vmem:[#allocation2 + $0x160] sm:$0xff]
        %v1338 = vld [vmem:[#allocation2 + $0x168] sm:$0xff]
        %v1339 = vld [vmem:[#allocation2 + $0x170] sm:$0xff]
        %v1340 = vld [vmem:[#allocation2 + $0x178] sm:$0xff]
        %v1341 = vld [vmem:[#allocation2 + $0x180] sm:$0xff]
        %v1342 = vld [vmem:[#allocation2 + $0x188] sm:$0xff]
        %v1343 = vld [vmem:[#allocation2 + $0x190] sm:$0xff]
        %v1344 = vld [vmem:[#allocation2 + $0x198] sm:$0xff]
        %v1345 = vld [vmem:[#allocation2 + $0x1a0] sm:$0xff]
        %v1346 = vld [vmem:[#allocation2 + $0x1a8] sm:$0xff]
        %v1347 = vld [vmem:[#allocation2 + $0x1b0] sm:$0xff]
        %v1348 = vld [vmem:[#allocation2 + $0x1b8] sm:$0xff]
        %v1349 = vld [vmem:[#allocation2 + $0x1c0] sm:$0xff]
        %v1350 = vld [vmem:[#allocation2 + $0x1c8] sm:$0xff]
        %v1351 = vld [vmem:[#allocation2 + $0x1d0] sm:$0xff]
        %v1352 = vld [vmem:[#allocation2 + $0x1d8] sm:$0xff]
        %v1353 = vld [vmem:[#allocation2 + $0x1e0] sm:$0xff]
        %v1354 = vld [vmem:[#allocation2 + $0x1e8] sm:$0xff]
        %v1355 = vld [vmem:[#allocation2 + $0x1f0] sm:$0xff]
        %v1356 = vld [vmem:[#allocation2 + $0x1f8] sm:$0xff]
        %v1357 = vadd.f32 %v1293, %v1135
        %v1358 = vadd.f32 %v1294, %v1137
        %v1359 = vadd.f32 %v1295, %v1139
        %v1360 = vadd.f32 %v1296, %v1141
        %v1361 = vadd.f32 %v1297, %v1145
        %v1362 = vadd.f32 %v1298, %v1147
        %v1363 = vadd.f32 %v1299, %v1149
        %v1364 = vadd.f32 %v1300, %v1151
        %v1365 = vadd.f32 %v1301, %v1155
        %v1366 = vadd.f32 %v1302, %v1157
        %v1367 = vadd.f32 %v1303, %v1159
        %v1368 = vadd.f32 %v1304, %v1161
        %v1369 = vadd.f32 %v1305, %v1165
        %v1370 = vadd.f32 %v1306, %v1167
        %v1371 = vadd.f32 %v1307, %v1169
        %v1372 = vadd.f32 %v1308, %v1171
        %v1373 = vadd.f32 %v1309, %v1175
        %v1374 = vadd.f32 %v1310, %v1177
        %v1375 = vadd.f32 %v1311, %v1179
        %v1376 = vadd.f32 %v1312, %v1181
        %v1377 = vadd.f32 %v1313, %v1185
        %v1378 = vadd.f32 %v1314, %v1187
        %v1379 = vadd.f32 %v1315, %v1189
        %v1380 = vadd.f32 %v1316, %v1191
        %v1381 = vadd.f32 %v1317, %v1195
        %v1382 = vadd.f32 %v1318, %v1197
        %v1383 = vadd.f32 %v1319, %v1199
        %v1384 = vadd.f32 %v1320, %v1201
        %v1385 = vadd.f32 %v1321, %v1205
        %v1386 = vadd.f32 %v1322, %v1207
        %v1387 = vadd.f32 %v1323, %v1209
        %v1388 = vadd.f32 %v1324, %v1211
        %v1389 = vadd.f32 %v1325, %v1215
        %v1390 = vadd.f32 %v1326, %v1217
        %v1391 = vadd.f32 %v1327, %v1219
        %v1392 = vadd.f32 %v1328, %v1221
        %v1393 = vadd.f32 %v1329, %v1225
        %v1394 = vadd.f32 %v1330, %v1227
        %v1395 = vadd.f32 %v1331, %v1229
        %v1396 = vadd.f32 %v1332, %v1231
        %v1397 = vadd.f32 %v1333, %v1235
        %v1398 = vadd.f32 %v1334, %v1237
        %v1399 = vadd.f32 %v1335, %v1239
        %v1400 = vadd.f32 %v1336, %v1241
        %v1401 = vadd.f32 %v1337, %v1245
        %v1402 = vadd.f32 %v1338, %v1247
        %v1403 = vadd.f32 %v1339, %v1249
        %v1404 = vadd.f32 %v1340, %v1251
        %v1405 = vadd.f32 %v1341, %v1255
        %v1406 = vadd.f32 %v1342, %v1257
        %v1407 = vadd.f32 %v1343, %v1259
        %v1408 = vadd.f32 %v1344, %v1261
        %v1409 = vadd.f32 %v1345, %v1265
        %v1410 = vadd.f32 %v1346, %v1267
        %v1411 = vadd.f32 %v1347, %v1269
        %v1412 = vadd.f32 %v1348, %v1271
        %v1413 = vadd.f32 %v1349, %v1275
        %v1414 = vadd.f32 %v1350, %v1277
        %v1415 = vadd.f32 %v1351, %v1279
        %v1416 = vadd.f32 %v1352, %v1281
        %v1417 = vadd.f32 %v1353, %v1285
        %v1418 = vadd.f32 %v1354, %v1287
        %v1419 = vadd.f32 %v1355, %v1289
        %v1420 = vadd.f32 %v1356, %v1291
        %1421 = vst [vmem:[#allocation2] sm:$0xff] %v1357
        %1422 = vst [vmem:[#allocation2 + $0x8] sm:$0xff] %v1358
        %1423 = vst [vmem:[#allocation2 + $0x10] sm:$0xff] %v1359
        %1424 = vst [vmem:[#allocation2 + $0x18] sm:$0xff] %v1360
        %1425 = vst [vmem:[#allocation2 + $0x20] sm:$0xff] %v1361
        %1426 = vst [vmem:[#allocation2 + $0x28] sm:$0xff] %v1362
        %1427 = vst [vmem:[#allocation2 + $0x30] sm:$0xff] %v1363
        %1428 = vst [vmem:[#allocation2 + $0x38] sm:$0xff] %v1364
        %1429 = vst [vmem:[#allocation2 + $0x40] sm:$0xff] %v1365
        %1430 = vst [vmem:[#allocation2 + $0x48] sm:$0xff] %v1366
        %1431 = vst [vmem:[#allocation2 + $0x50] sm:$0xff] %v1367
        %1432 = vst [vmem:[#allocation2 + $0x58] sm:$0xff] %v1368
        %1433 = vst [vmem:[#allocation2 + $0x60] sm:$0xff] %v1369
        %1434 = vst [vmem:[#allocation2 + $0x68] sm:$0xff] %v1370
        %1435 = vst [vmem:[#allocation2 + $0x70] sm:$0xff] %v1371
        %1436 = vst [vmem:[#allocation2 + $0x78] sm:$0xff] %v1372
        %1437 = vst [vmem:[#allocation2 + $0x80] sm:$0xff] %v1373
        %1438 = vst [vmem:[#allocation2 + $0x88] sm:$0xff] %v1374
        %1439 = vst [vmem:[#allocation2 + $0x90] sm:$0xff] %v1375
        %1440 = vst [vmem:[#allocation2 + $0x98] sm:$0xff] %v1376
        %1441 = vst [vmem:[#allocation2 + $0xa0] sm:$0xff] %v1377
        %1442 = vst [vmem:[#allocation2 + $0xa8] sm:$0xff] %v1378
        %1443 = vst [vmem:[#allocation2 + $0xb0] sm:$0xff] %v1379
        %1444 = vst [vmem:[#allocation2 + $0xb8] sm:$0xff] %v1380
        %1445 = vst [vmem:[#allocation2 + $0xc0] sm:$0xff] %v1381
        %1446 = vst [vmem:[#allocation2 + $0xc8] sm:$0xff] %v1382
        %1447 = vst [vmem:[#allocation2 + $0xd0] sm:$0xff] %v1383
        %1448 = vst [vmem:[#allocation2 + $0xd8] sm:$0xff] %v1384
        %1449 = vst [vmem:[#allocation2 + $0xe0] sm:$0xff] %v1385
        %1450 = vst [vmem:[#allocation2 + $0xe8] sm:$0xff] %v1386
        %1451 = vst [vmem:[#allocation2 + $0xf0] sm:$0xff] %v1387
        %1452 = vst [vmem:[#allocation2 + $0xf8] sm:$0xff] %v1388
        %1453 = vst [vmem:[#allocation2 + $0x100] sm:$0xff] %v1389
        %1454 = vst [vmem:[#allocation2 + $0x108] sm:$0xff] %v1390
        %1455 = vst [vmem:[#allocation2 + $0x110] sm:$0xff] %v1391
        %1456 = vst [vmem:[#allocation2 + $0x118] sm:$0xff] %v1392
        %1457 = vst [vmem:[#allocation2 + $0x120] sm:$0xff] %v1393
        %1458 = vst [vmem:[#allocation2 + $0x128] sm:$0xff] %v1394
        %1459 = vst [vmem:[#allocation2 + $0x130] sm:$0xff] %v1395
        %1460 = vst [vmem:[#allocation2 + $0x138] sm:$0xff] %v1396
        %1461 = vst [vmem:[#allocation2 + $0x140] sm:$0xff] %v1397
        %1462 = vst [vmem:[#allocation2 + $0x148] sm:$0xff] %v1398
        %1463 = vst [vmem:[#allocation2 + $0x150] sm:$0xff] %v1399
        %1464 = vst [vmem:[#allocation2 + $0x158] sm:$0xff] %v1400
        %1465 = vst [vmem:[#allocation2 + $0x160] sm:$0xff] %v1401
        %1466 = vst [vmem:[#allocation2 + $0x168] sm:$0xff] %v1402
        %1467 = vst [vmem:[#allocation2 + $0x170] sm:$0xff] %v1403
        %1468 = vst [vmem:[#allocation2 + $0x178] sm:$0xff] %v1404
        %1469 = vst [vmem:[#allocation2 + $0x180] sm:$0xff] %v1405
        %1470 = vst [vmem:[#allocation2 + $0x188] sm:$0xff] %v1406
        %1471 = vst [vmem:[#allocation2 + $0x190] sm:$0xff] %v1407
        %1472 = vst [vmem:[#allocation2 + $0x198] sm:$0xff] %v1408
        %1473 = vst [vmem:[#allocation2 + $0x1a0] sm:$0xff] %v1409
        %1474 = vst [vmem:[#allocation2 + $0x1a8] sm:$0xff] %v1410
        %1475 = vst [vmem:[#allocation2 + $0x1b0] sm:$0xff] %v1411
        %1476 = vst [vmem:[#allocation2 + $0x1b8] sm:$0xff] %v1412
        %1477 = vst [vmem:[#allocation2 + $0x1c0] sm:$0xff] %v1413
        %1478 = vst [vmem:[#allocation2 + $0x1c8] sm:$0xff] %v1414
        %1479 = vst [vmem:[#allocation2 + $0x1d0] sm:$0xff] %v1415
        %1480 = vst [vmem:[#allocation2 + $0x1d8] sm:$0xff] %v1416
        %1481 = vst [vmem:[#allocation2 + $0x1e0] sm:$0xff] %v1417
        %1482 = vst [vmem:[#allocation2 + $0x1e8] sm:$0xff] %v1418
        %1483 = vst [vmem:[#allocation2 + $0x1f0] sm:$0xff] %v1419
        %1484 = vst [vmem:[#allocation2 + $0x1f8] sm:$0xff] %v1420
        %vm1501 = vcmask 1042432
        %vm1502 = vcmask 1046532
        %vm1503 = vmor %vm1501, %vm1502
        %v1504 = vrot.slane %v143, 5
        %v1505 = vrot.slane %v1504, 4
        %v1506 = vrot.slane %v144, 5
        %v1507 = vsel %vm1503, %v1505, %v1506
        %v1508 = vrot.slane %v1506, 4
        %v1509 = vrot.slane %v145, 5
        %v1510 = vsel %vm1503, %v1508, %v1509
        %v1511 = vrot.slane %v146, 5
        %v1512 = vrot.slane %v1511, 4
        %v1513 = vrot.slane %v147, 5
        %v1514 = vsel %vm1503, %v1512, %v1513
        %v1515 = vrot.slane %v1513, 4
        %v1516 = vrot.slane %v148, 5
        %v1517 = vsel %vm1503, %v1515, %v1516
        %v1518 = vrot.slane %v149, 5
        %v1519 = vrot.slane %v1518, 4
        %v1520 = vrot.slane %v150, 5
        %v1521 = vsel %vm1503, %v1519, %v1520
        %v1522 = vrot.slane %v1520, 4
        %v1523 = vrot.slane %v151, 5
        %v1524 = vsel %vm1503, %v1522, %v1523
        %v1525 = vrot.slane %v152, 5
        %v1526 = vrot.slane %v1525, 4
        %v1527 = vrot.slane %v153, 5
        %v1528 = vsel %vm1503, %v1526, %v1527
        %v1529 = vrot.slane %v1527, 4
        %v1530 = vrot.slane %v154, 5
        %v1531 = vsel %vm1503, %v1529, %v1530
        %v1532 = vrot.slane %v155, 5
        %v1533 = vrot.slane %v1532, 4
        %v1534 = vrot.slane %v156, 5
        %v1535 = vsel %vm1503, %v1533, %v1534
        %v1536 = vrot.slane %v1534, 4
        %v1537 = vrot.slane %v157, 5
        %v1538 = vsel %vm1503, %v1536, %v1537
        %v1539 = vrot.slane %v158, 5
        %v1540 = vrot.slane %v1539, 4
        %v1541 = vrot.slane %v159, 5
        %v1542 = vsel %vm1503, %v1540, %v1541
        %v1543 = vrot.slane %v1541, 4
        %v1544 = vrot.slane %v160, 5
        %v1545 = vsel %vm1503, %v1543, %v1544
        %v1546 = vrot.slane %v161, 5
        %v1547 = vrot.slane %v1546, 4
        %v1548 = vrot.slane %v162, 5
        %v1549 = vsel %vm1503, %v1547, %v1548
        %v1550 = vrot.slane %v1548, 4
        %v1551 = vrot.slane %v163, 5
        %v1552 = vsel %vm1503, %v1550, %v1551
        %v1553 = vrot.slane %v164, 5
        %v1554 = vrot.slane %v1553, 4
        %v1555 = vrot.slane %v165, 5
        %v1556 = vsel %vm1503, %v1554, %v1555
        %v1557 = vrot.slane %v1555, 4
        %v1558 = vrot.slane %v166, 5
        %v1559 = vsel %vm1503, %v1557, %v1558
        %v1560 = vrot.slane %v167, 5
        %v1561 = vrot.slane %v1560, 4
        %v1562 = vrot.slane %v168, 5
        %v1563 = vsel %vm1503, %v1561, %v1562
        %v1564 = vrot.slane %v1562, 4
        %v1565 = vrot.slane %v169, 5
        %v1566 = vsel %vm1503, %v1564, %v1565
        %v1567 = vrot.slane %v170, 5
        %v1568 = vrot.slane %v1567, 4
        %v1569 = vrot.slane %v171, 5
        %v1570 = vsel %vm1503, %v1568, %v1569
        %v1571 = vrot.slane %v1569, 4
        %v1572 = vrot.slane %v172, 5
        %v1573 = vsel %vm1503, %v1571, %v1572
        %v1574 = vrot.slane %v173, 5
        %v1575 = vrot.slane %v1574, 4
        %v1576 = vrot.slane %v174, 5
        %v1577 = vsel %vm1503, %v1575, %v1576
        %v1578 = vrot.slane %v1576, 4
        %v1579 = vrot.slane %v175, 5
        %v1580 = vsel %vm1503, %v1578, %v1579
        %v1581 = vrot.slane %v176, 5
        %v1582 = vrot.slane %v1581, 4
        %v1583 = vrot.slane %v177, 5
        %v1584 = vsel %vm1503, %v1582, %v1583
        %v1585 = vrot.slane %v1583, 4
        %v1586 = vrot.slane %v178, 5
        %v1587 = vsel %vm1503, %v1585, %v1586
        %v1588 = vrot.slane %v179, 5
        %v1589 = vrot.slane %v1588, 4
        %v1590 = vrot.slane %v180, 5
        %v1591 = vsel %vm1503, %v1589, %v1590
        %v1592 = vrot.slane %v1590, 4
        %v1593 = vrot.slane %v181, 5
        %v1594 = vsel %vm1503, %v1592, %v1593
        %v1595 = vrot.slane %v182, 5
        %v1596 = vrot.slane %v1595, 4
        %v1597 = vrot.slane %v183, 5
        %v1598 = vsel %vm1503, %v1596, %v1597
        %v1599 = vrot.slane %v1597, 4
        %v1600 = vrot.slane %v184, 5
        %v1601 = vsel %vm1503, %v1599, %v1600
        %v1602 = vrot.slane %v185, 5
        %v1603 = vrot.slane %v1602, 4
        %v1604 = vrot.slane %v186, 5
        %v1605 = vsel %vm1503, %v1603, %v1604
        %v1606 = vrot.slane %v1604, 4
        %v1607 = vrot.slane %v187, 5
        %v1608 = vsel %vm1503, %v1606, %v1607
        %v1609 = vrot.slane %v188, 5
        %v1610 = vrot.slane %v1609, 4
        %v1611 = vrot.slane %v189, 5
        %v1612 = vsel %vm1503, %v1610, %v1611
        %v1613 = vrot.slane %v1611, 4
        %v1614 = vrot.slane %v190, 5
        %v1615 = vsel %vm1503, %v1613, %v1614
        %s1616 = scalar_lea.vmem %s1, 8
        %v1617 = vld [vmem:[%s1616] sm:$0xf]
        %v1618 = vunpack.c.l.b16 %v1507
        %v1619 = vunpack.c.l.b16 %v1510
        %v1620 = vunpack.c.l.b16 %v1514
        %v1621 = vunpack.c.l.b16 %v1517
        %v1622 = vunpack.c.l.b16 %v1521
        %v1623 = vunpack.c.l.b16 %v1524
        %v1624 = vunpack.c.l.b16 %v1528
        %v1625 = vunpack.c.l.b16 %v1531
        %v1626 = vunpack.c.l.b16 %v1535
        %v1627 = vunpack.c.l.b16 %v1538
        %v1628 = vunpack.c.l.b16 %v1542
        %v1629 = vunpack.c.l.b16 %v1545
        %v1630 = vunpack.c.l.b16 %v1549
        %v1631 = vunpack.c.l.b16 %v1552
        %v1632 = vunpack.c.l.b16 %v1556
        %v1633 = vunpack.c.l.b16 %v1559
        %v1634 = vunpack.c.l.b16 %v1563
        %v1635 = vunpack.c.l.b16 %v1566
        %v1636 = vunpack.c.l.b16 %v1570
        %v1637 = vunpack.c.l.b16 %v1573
        %v1638 = vunpack.c.l.b16 %v1577
        %v1639 = vunpack.c.l.b16 %v1580
        %v1640 = vunpack.c.l.b16 %v1584
        %v1641 = vunpack.c.l.b16 %v1587
        %v1642 = vunpack.c.l.b16 %v1591
        %v1643 = vunpack.c.l.b16 %v1594
        %v1644 = vunpack.c.l.b16 %v1598
        %v1645 = vunpack.c.l.b16 %v1601
        %v1646 = vunpack.c.l.b16 %v1605
        %v1647 = vunpack.c.l.b16 %v1608
        %v1648 = vunpack.c.l.b16 %v1612
        %v1649 = vunpack.c.l.b16 %v1615
        %v1650 = vpack.c.b16 %v1619, %v1618
        %v1651 = vpack.c.b16 %v1621, %v1620
        %v1652 = vpack.c.b16 %v1623, %v1622
        %v1653 = vpack.c.b16 %v1625, %v1624
        %v1654 = vpack.c.b16 %v1627, %v1626
        %v1655 = vpack.c.b16 %v1629, %v1628
        %v1656 = vpack.c.b16 %v1631, %v1630
        %v1657 = vpack.c.b16 %v1633, %v1632
        %v1658 = vpack.c.b16 %v1635, %v1634
        %v1659 = vpack.c.b16 %v1637, %v1636
        %v1660 = vpack.c.b16 %v1639, %v1638
        %v1661 = vpack.c.b16 %v1641, %v1640
        %v1662 = vpack.c.b16 %v1643, %v1642
        %v1663 = vpack.c.b16 %v1645, %v1644
        %v1664 = vpack.c.b16 %v1647, %v1646
        %v1665 = vpack.c.b16 %v1649, %v1648
        %v1668 = vunpack.c.l.s4 1983009808
        %v1669 = vunpack.c.0.s8 %v1668
        %v1670 = vlaneseq
        %v1671 = vshrl.u32 %v1670, 7
        %v1672 = vsub.s32 %v1669, %v1671
        %v1673 = vrot.slane %v1617, %v1672
        %v1674 = vcombine.high %v1673, %v1673
        %v1676 = vsel %vm287, %v1650, 0
        %v1679 = vsel %vm287, %v1651, 0
        %v1682 = vsel %vm287, %v1652, 0
        %v1685 = vsel %vm287, %v1653, 0
        %v1688 = vsel %vm287, %v1654, 0
        %v1691 = vsel %vm287, %v1655, 0
        %v1694 = vsel %vm287, %v1656, 0
        %v1697 = vsel %vm287, %v1657, 0
        %v1700 = vsel %vm287, %v1658, 0
        %v1703 = vsel %vm287, %v1659, 0
        %v1706 = vsel %vm287, %v1660, 0
        %v1709 = vsel %vm287, %v1661, 0
        %v1712 = vsel %vm287, %v1662, 0
        %v1715 = vsel %vm287, %v1663, 0
        %v1718 = vsel %vm287, %v1664, 0
        %v1721 = vsel %vm287, %v1665, 0
        %v1724 = vsel %vm336, %v1673, 0
        %v1727 = vsel %vm336, %v1674, 0
        %1729 = vmatprep.subr.bf16.mxu0 %v1727
        %1730 = vmatpush1.bf16.msra.mxu0 %v1724
        %1731 = vmatprep.subr.bf16.mxu0 0
        %1732 = vmatpush1.bf16.msra.mxu0 0
        %1733 = vmatprep.subr.bf16.mxu0 0
        %1734 = vmatpush1.bf16.msra.mxu0 0
        %1735 = vmatprep.subr.bf16.mxu0 0
        %1736 = vmatpush1.bf16.msra.mxu0 0
        %1737 = vmatprep.subr.bf16.mxu0 0
        %1738 = vmatpush1.bf16.msra.mxu0 0
        %1739 = vmatprep.subr.bf16.mxu0 0
        %1740 = vmatpush1.bf16.msra.mxu0 0
        %1741 = vmatprep.subr.bf16.mxu0 0
        %1742 = vmatpush1.bf16.msra.mxu0 0
        %1743 = vmatprep.subr.bf16.mxu0 0
        %1744 = vmatpush1.bf16.msra.mxu0 0
        %1745 = vmatprep.subr.bf16.mxu0 0
        %1746 = vmatpush1.bf16.msra.mxu0 0
        %1747 = vmatprep.subr.bf16.mxu0 0
        %1748 = vmatpush1.bf16.msra.mxu0 0
        %1749 = vmatprep.subr.bf16.mxu0 0
        %1750 = vmatpush1.bf16.msra.mxu0 0
        %1751 = vmatprep.subr.bf16.mxu0 0
        %1752 = vmatpush1.bf16.msra.mxu0 0
        %1753 = vmatprep.subr.bf16.mxu0 0
        %1754 = vmatpush1.bf16.msra.mxu0 0
        %1755 = vmatprep.subr.bf16.mxu0 0
        %1756 = vmatpush1.bf16.msra.mxu0 0
        %1757 = vmatprep.subr.bf16.mxu0 0
        %1758 = vmatpush1.bf16.msra.mxu0 0
        %1759 = vmatprep.subr.bf16.mxu0 0
        %1760 = vmatpush1.bf16.msra.mxu0 0
        %1761 = vmatprep.mubr.bf16.mxu0 0
        %1762 = vmatmul.mubr.bf16.gmra.mrb[0].mxu0 %v1676
        %v1763 = vpop.f32.mrb[0].mxu0
        %v1764 = vadd.f32 0.0, %v1763
        %v1765 = vpop.f32.mrb[0].mxu0
        %v1766 = vadd.f32 0.0, %v1765
        %v1767 = vpop.f32.mrb[0].mxu0
        %v1768 = vadd.f32 0.0, %v1767
        %v1769 = vpop.f32.mrb[0].mxu0
        %v1770 = vadd.f32 0.0, %v1769
        %1771 = vmatprep.mubr.bf16.mxu0 0
        %1772 = vmatmul.mubr.bf16.gmra.mrb[0].mxu0 %v1679
        %v1773 = vpop.f32.mrb[0].mxu0
        %v1774 = vadd.f32 0.0, %v1773
        %v1775 = vpop.f32.mrb[0].mxu0
        %v1776 = vadd.f32 0.0, %v1775
        %v1777 = vpop.f32.mrb[0].mxu0
        %v1778 = vadd.f32 0.0, %v1777
        %v1779 = vpop.f32.mrb[0].mxu0
        %v1780 = vadd.f32 0.0, %v1779
        %1781 = vmatprep.mubr.bf16.mxu0 0
        %1782 = vmatmul.mubr.bf16.gmra.mrb[0].mxu0 %v1682
        %v1783 = vpop.f32.mrb[0].mxu0
        %v1784 = vadd.f32 0.0, %v1783
        %v1785 = vpop.f32.mrb[0].mxu0
        %v1786 = vadd.f32 0.0, %v1785
        %v1787 = vpop.f32.mrb[0].mxu0
        %v1788 = vadd.f32 0.0, %v1787
        %v1789 = vpop.f32.mrb[0].mxu0
        %v1790 = vadd.f32 0.0, %v1789
        %1791 = vmatprep.mubr.bf16.mxu0 0
        %1792 = vmatmul.mubr.bf16.gmra.mrb[0].mxu0 %v1685
        %v1793 = vpop.f32.mrb[0].mxu0
        %v1794 = vadd.f32 0.0, %v1793
        %v1795 = vpop.f32.mrb[0].mxu0
        %v1796 = vadd.f32 0.0, %v1795
        %v1797 = vpop.f32.mrb[0].mxu0
        %v1798 = vadd.f32 0.0, %v1797
        %v1799 = vpop.f32.mrb[0].mxu0
        %v1800 = vadd.f32 0.0, %v1799
        %1801 = vmatprep.mubr.bf16.mxu0 0
        %1802 = vmatmul.mubr.bf16.gmra.mrb[0].mxu0 %v1688
        %v1803 = vpop.f32.mrb[0].mxu0
        %v1804 = vadd.f32 0.0, %v1803
        %v1805 = vpop.f32.mrb[0].mxu0
        %v1806 = vadd.f32 0.0, %v1805
        %v1807 = vpop.f32.mrb[0].mxu0
        %v1808 = vadd.f32 0.0, %v1807
        %v1809 = vpop.f32.mrb[0].mxu0
        %v1810 = vadd.f32 0.0, %v1809
        %1811 = vmatprep.mubr.bf16.mxu0 0
        %1812 = vmatmul.mubr.bf16.gmra.mrb[0].mxu0 %v1691
        %v1813 = vpop.f32.mrb[0].mxu0
        %v1814 = vadd.f32 0.0, %v1813
        %v1815 = vpop.f32.mrb[0].mxu0
        %v1816 = vadd.f32 0.0, %v1815
        %v1817 = vpop.f32.mrb[0].mxu0
        %v1818 = vadd.f32 0.0, %v1817
        %v1819 = vpop.f32.mrb[0].mxu0
        %v1820 = vadd.f32 0.0, %v1819
        %1821 = vmatprep.mubr.bf16.mxu0 0
        %1822 = vmatmul.mubr.bf16.gmra.mrb[0].mxu0 %v1694
        %v1823 = vpop.f32.mrb[0].mxu0
        %v1824 = vadd.f32 0.0, %v1823
        %v1825 = vpop.f32.mrb[0].mxu0
        %v1826 = vadd.f32 0.0, %v1825
        %v1827 = vpop.f32.mrb[0].mxu0
        %v1828 = vadd.f32 0.0, %v1827
        %v1829 = vpop.f32.mrb[0].mxu0
        %v1830 = vadd.f32 0.0, %v1829
        %1831 = vmatprep.mubr.bf16.mxu0 0
        %1832 = vmatmul.mubr.bf16.gmra.mrb[0].mxu0 %v1697
        %v1833 = vpop.f32.mrb[0].mxu0
        %v1834 = vadd.f32 0.0, %v1833
        %v1835 = vpop.f32.mrb[0].mxu0
        %v1836 = vadd.f32 0.0, %v1835
        %v1837 = vpop.f32.mrb[0].mxu0
        %v1838 = vadd.f32 0.0, %v1837
        %v1839 = vpop.f32.mrb[0].mxu0
        %v1840 = vadd.f32 0.0, %v1839
        %1841 = vmatprep.mubr.bf16.mxu0 0
        %1842 = vmatmul.mubr.bf16.gmra.mrb[0].mxu0 %v1700
        %v1843 = vpop.f32.mrb[0].mxu0
        %v1844 = vadd.f32 0.0, %v1843
        %v1845 = vpop.f32.mrb[0].mxu0
        %v1846 = vadd.f32 0.0, %v1845
        %v1847 = vpop.f32.mrb[0].mxu0
        %v1848 = vadd.f32 0.0, %v1847
        %v1849 = vpop.f32.mrb[0].mxu0
        %v1850 = vadd.f32 0.0, %v1849
        %1851 = vmatprep.mubr.bf16.mxu0 0
        %1852 = vmatmul.mubr.bf16.gmra.mrb[0].mxu0 %v1703
        %v1853 = vpop.f32.mrb[0].mxu0
        %v1854 = vadd.f32 0.0, %v1853
        %v1855 = vpop.f32.mrb[0].mxu0
        %v1856 = vadd.f32 0.0, %v1855
        %v1857 = vpop.f32.mrb[0].mxu0
        %v1858 = vadd.f32 0.0, %v1857
        %v1859 = vpop.f32.mrb[0].mxu0
        %v1860 = vadd.f32 0.0, %v1859
        %1861 = vmatprep.mubr.bf16.mxu0 0
        %1862 = vmatmul.mubr.bf16.gmra.mrb[0].mxu0 %v1706
        %v1863 = vpop.f32.mrb[0].mxu0
        %v1864 = vadd.f32 0.0, %v1863
        %v1865 = vpop.f32.mrb[0].mxu0
        %v1866 = vadd.f32 0.0, %v1865
        %v1867 = vpop.f32.mrb[0].mxu0
        %v1868 = vadd.f32 0.0, %v1867
        %v1869 = vpop.f32.mrb[0].mxu0
        %v1870 = vadd.f32 0.0, %v1869
        %1871 = vmatprep.mubr.bf16.mxu0 0
        %1872 = vmatmul.mubr.bf16.gmra.mrb[0].mxu0 %v1709
        %v1873 = vpop.f32.mrb[0].mxu0
        %v1874 = vadd.f32 0.0, %v1873
        %v1875 = vpop.f32.mrb[0].mxu0
        %v1876 = vadd.f32 0.0, %v1875
        %v1877 = vpop.f32.mrb[0].mxu0
        %v1878 = vadd.f32 0.0, %v1877
        %v1879 = vpop.f32.mrb[0].mxu0
        %v1880 = vadd.f32 0.0, %v1879
        %1881 = vmatprep.mubr.bf16.mxu0 0
        %1882 = vmatmul.mubr.bf16.gmra.mrb[0].mxu0 %v1712
        %v1883 = vpop.f32.mrb[0].mxu0
        %v1884 = vadd.f32 0.0, %v1883
        %v1885 = vpop.f32.mrb[0].mxu0
        %v1886 = vadd.f32 0.0, %v1885
        %v1887 = vpop.f32.mrb[0].mxu0
        %v1888 = vadd.f32 0.0, %v1887
        %v1889 = vpop.f32.mrb[0].mxu0
        %v1890 = vadd.f32 0.0, %v1889
        %1891 = vmatprep.mubr.bf16.mxu0 0
        %1892 = vmatmul.mubr.bf16.gmra.mrb[0].mxu0 %v1715
        %v1893 = vpop.f32.mrb[0].mxu0
        %v1894 = vadd.f32 0.0, %v1893
        %v1895 = vpop.f32.mrb[0].mxu0
        %v1896 = vadd.f32 0.0, %v1895
        %v1897 = vpop.f32.mrb[0].mxu0
        %v1898 = vadd.f32 0.0, %v1897
        %v1899 = vpop.f32.mrb[0].mxu0
        %v1900 = vadd.f32 0.0, %v1899
        %1901 = vmatprep.mubr.bf16.mxu0 0
        %1902 = vmatmul.mubr.bf16.gmra.mrb[0].mxu0 %v1718
        %v1903 = vpop.f32.mrb[0].mxu0
        %v1904 = vadd.f32 0.0, %v1903
        %v1905 = vpop.f32.mrb[0].mxu0
        %v1906 = vadd.f32 0.0, %v1905
        %v1907 = vpop.f32.mrb[0].mxu0
        %v1908 = vadd.f32 0.0, %v1907
        %v1909 = vpop.f32.mrb[0].mxu0
        %v1910 = vadd.f32 0.0, %v1909
        %1911 = vmatprep.mubr.bf16.mxu0 0
        %1912 = vmatmul.mubr.bf16.gmra.mrb[0].mxu0 %v1721
        %v1913 = vpop.f32.mrb[0].mxu0
        %v1914 = vadd.f32 0.0, %v1913
        %v1915 = vpop.f32.mrb[0].mxu0
        %v1916 = vadd.f32 0.0, %v1915
        %v1917 = vpop.f32.mrb[0].mxu0
        %v1918 = vadd.f32 0.0, %v1917
        %v1919 = vpop.f32.mrb[0].mxu0
        %v1920 = vadd.f32 0.0, %v1919
        %1921 = vdwg.mxu0
        %v1922 = vld [vmem:[#allocation2] sm:$0xff]
        %v1923 = vld [vmem:[#allocation2 + $0x8] sm:$0xff]
        %v1924 = vld [vmem:[#allocation2 + $0x10] sm:$0xff]
        %v1925 = vld [vmem:[#allocation2 + $0x18] sm:$0xff]
        %v1926 = vld [vmem:[#allocation2 + $0x20] sm:$0xff]
        %v1927 = vld [vmem:[#allocation2 + $0x28] sm:$0xff]
        %v1928 = vld [vmem:[#allocation2 + $0x30] sm:$0xff]
        %v1929 = vld [vmem:[#allocation2 + $0x38] sm:$0xff]
        %v1930 = vld [vmem:[#allocation2 + $0x40] sm:$0xff]
        %v1931 = vld [vmem:[#allocation2 + $0x48] sm:$0xff]
        %v1932 = vld [vmem:[#allocation2 + $0x50] sm:$0xff]
        %v1933 = vld [vmem:[#allocation2 + $0x58] sm:$0xff]
        %v1934 = vld [vmem:[#allocation2 + $0x60] sm:$0xff]
        %v1935 = vld [vmem:[#allocation2 + $0x68] sm:$0xff]
        %v1936 = vld [vmem:[#allocation2 + $0x70] sm:$0xff]
        %v1937 = vld [vmem:[#allocation2 + $0x78] sm:$0xff]
        %v1938 = vld [vmem:[#allocation2 + $0x80] sm:$0xff]
        %v1939 = vld [vmem:[#allocation2 + $0x88] sm:$0xff]
        %v1940 = vld [vmem:[#allocation2 + $0x90] sm:$0xff]
        %v1941 = vld [vmem:[#allocation2 + $0x98] sm:$0xff]
        %v1942 = vld [vmem:[#allocation2 + $0xa0] sm:$0xff]
        %v1943 = vld [vmem:[#allocation2 + $0xa8] sm:$0xff]
        %v1944 = vld [vmem:[#allocation2 + $0xb0] sm:$0xff]
        %v1945 = vld [vmem:[#allocation2 + $0xb8] sm:$0xff]
        %v1946 = vld [vmem:[#allocation2 + $0xc0] sm:$0xff]
        %v1947 = vld [vmem:[#allocation2 + $0xc8] sm:$0xff]
        %v1948 = vld [vmem:[#allocation2 + $0xd0] sm:$0xff]
        %v1949 = vld [vmem:[#allocation2 + $0xd8] sm:$0xff]
        %v1950 = vld [vmem:[#allocation2 + $0xe0] sm:$0xff]
        %v1951 = vld [vmem:[#allocation2 + $0xe8] sm:$0xff]
        %v1952 = vld [vmem:[#allocation2 + $0xf0] sm:$0xff]
        %v1953 = vld [vmem:[#allocation2 + $0xf8] sm:$0xff]
        %v1954 = vld [vmem:[#allocation2 + $0x100] sm:$0xff]
        %v1955 = vld [vmem:[#allocation2 + $0x108] sm:$0xff]
        %v1956 = vld [vmem:[#allocation2 + $0x110] sm:$0xff]
        %v1957 = vld [vmem:[#allocation2 + $0x118] sm:$0xff]
        %v1958 = vld [vmem:[#allocation2 + $0x120] sm:$0xff]
        %v1959 = vld [vmem:[#allocation2 + $0x128] sm:$0xff]
        %v1960 = vld [vmem:[#allocation2 + $0x130] sm:$0xff]
        %v1961 = vld [vmem:[#allocation2 + $0x138] sm:$0xff]
        %v1962 = vld [vmem:[#allocation2 + $0x140] sm:$0xff]
        %v1963 = vld [vmem:[#allocation2 + $0x148] sm:$0xff]
        %v1964 = vld [vmem:[#allocation2 + $0x150] sm:$0xff]
        %v1965 = vld [vmem:[#allocation2 + $0x158] sm:$0xff]
        %v1966 = vld [vmem:[#allocation2 + $0x160] sm:$0xff]
        %v1967 = vld [vmem:[#allocation2 + $0x168] sm:$0xff]
        %v1968 = vld [vmem:[#allocation2 + $0x170] sm:$0xff]
        %v1969 = vld [vmem:[#allocation2 + $0x178] sm:$0xff]
        %v1970 = vld [vmem:[#allocation2 + $0x180] sm:$0xff]
        %v1971 = vld [vmem:[#allocation2 + $0x188] sm:$0xff]
        %v1972 = vld [vmem:[#allocation2 + $0x190] sm:$0xff]
        %v1973 = vld [vmem:[#allocation2 + $0x198] sm:$0xff]
        %v1974 = vld [vmem:[#allocation2 + $0x1a0] sm:$0xff]
        %v1975 = vld [vmem:[#allocation2 + $0x1a8] sm:$0xff]
        %v1976 = vld [vmem:[#allocation2 + $0x1b0] sm:$0xff]
        %v1977 = vld [vmem:[#allocation2 + $0x1b8] sm:$0xff]
        %v1978 = vld [vmem:[#allocation2 + $0x1c0] sm:$0xff]
        %v1979 = vld [vmem:[#allocation2 + $0x1c8] sm:$0xff]
        %v1980 = vld [vmem:[#allocation2 + $0x1d0] sm:$0xff]
        %v1981 = vld [vmem:[#allocation2 + $0x1d8] sm:$0xff]
        %v1982 = vld [vmem:[#allocation2 + $0x1e0] sm:$0xff]
        %v1983 = vld [vmem:[#allocation2 + $0x1e8] sm:$0xff]
        %v1984 = vld [vmem:[#allocation2 + $0x1f0] sm:$0xff]
        %v1985 = vld [vmem:[#allocation2 + $0x1f8] sm:$0xff]
        %v1986 = vadd.f32 %v1922, %v1764
        %v1987 = vadd.f32 %v1923, %v1766
        %v1988 = vadd.f32 %v1924, %v1768
        %v1989 = vadd.f32 %v1925, %v1770
        %v1990 = vadd.f32 %v1926, %v1774
        %v1991 = vadd.f32 %v1927, %v1776
        %v1992 = vadd.f32 %v1928, %v1778
        %v1993 = vadd.f32 %v1929, %v1780
        %v1994 = vadd.f32 %v1930, %v1784
        %v1995 = vadd.f32 %v1931, %v1786
        %v1996 = vadd.f32 %v1932, %v1788
        %v1997 = vadd.f32 %v1933, %v1790
        %v1998 = vadd.f32 %v1934, %v1794
        %v1999 = vadd.f32 %v1935, %v1796
        %v2000 = vadd.f32 %v1936, %v1798
        %v2001 = vadd.f32 %v1937, %v1800
        %v2002 = vadd.f32 %v1938, %v1804
        %v2003 = vadd.f32 %v1939, %v1806
        %v2004 = vadd.f32 %v1940, %v1808
        %v2005 = vadd.f32 %v1941, %v1810
        %v2006 = vadd.f32 %v1942, %v1814
        %v2007 = vadd.f32 %v1943, %v1816
        %v2008 = vadd.f32 %v1944, %v1818
        %v2009 = vadd.f32 %v1945, %v1820
        %v2010 = vadd.f32 %v1946, %v1824
        %v2011 = vadd.f32 %v1947, %v1826
        %v2012 = vadd.f32 %v1948, %v1828
        %v2013 = vadd.f32 %v1949, %v1830
        %v2014 = vadd.f32 %v1950, %v1834
        %v2015 = vadd.f32 %v1951, %v1836
        %v2016 = vadd.f32 %v1952, %v1838
        %v2017 = vadd.f32 %v1953, %v1840
        %v2018 = vadd.f32 %v1954, %v1844
        %v2019 = vadd.f32 %v1955, %v1846
        %v2020 = vadd.f32 %v1956, %v1848
        %v2021 = vadd.f32 %v1957, %v1850
        %v2022 = vadd.f32 %v1958, %v1854
        %v2023 = vadd.f32 %v1959, %v1856
        %v2024 = vadd.f32 %v1960, %v1858
        %v2025 = vadd.f32 %v1961, %v1860
        %v2026 = vadd.f32 %v1962, %v1864
        %v2027 = vadd.f32 %v1963, %v1866
        %v2028 = vadd.f32 %v1964, %v1868
        %v2029 = vadd.f32 %v1965, %v1870
        %v2030 = vadd.f32 %v1966, %v1874
        %v2031 = vadd.f32 %v1967, %v1876
        %v2032 = vadd.f32 %v1968, %v1878
        %v2033 = vadd.f32 %v1969, %v1880
        %v2034 = vadd.f32 %v1970, %v1884
        %v2035 = vadd.f32 %v1971, %v1886
        %v2036 = vadd.f32 %v1972, %v1888
        %v2037 = vadd.f32 %v1973, %v1890
        %v2038 = vadd.f32 %v1974, %v1894
        %v2039 = vadd.f32 %v1975, %v1896
        %v2040 = vadd.f32 %v1976, %v1898
        %v2041 = vadd.f32 %v1977, %v1900
        %v2042 = vadd.f32 %v1978, %v1904
        %v2043 = vadd.f32 %v1979, %v1906
        %v2044 = vadd.f32 %v1980, %v1908
        %v2045 = vadd.f32 %v1981, %v1910
        %v2046 = vadd.f32 %v1982, %v1914
        %v2047 = vadd.f32 %v1983, %v1916
        %v2048 = vadd.f32 %v1984, %v1918
        %v2049 = vadd.f32 %v1985, %v1920
        %2050 = vst [vmem:[#allocation2] sm:$0xff] %v1986
        %2051 = vst [vmem:[#allocation2 + $0x8] sm:$0xff] %v1987
        %2052 = vst [vmem:[#allocation2 + $0x10] sm:$0xff] %v1988
        %2053 = vst [vmem:[#allocation2 + $0x18] sm:$0xff] %v1989
        %2054 = vst [vmem:[#allocation2 + $0x20] sm:$0xff] %v1990
        %2055 = vst [vmem:[#allocation2 + $0x28] sm:$0xff] %v1991
        %2056 = vst [vmem:[#allocation2 + $0x30] sm:$0xff] %v1992
        %2057 = vst [vmem:[#allocation2 + $0x38] sm:$0xff] %v1993
        %2058 = vst [vmem:[#allocation2 + $0x40] sm:$0xff] %v1994
        %2059 = vst [vmem:[#allocation2 + $0x48] sm:$0xff] %v1995
        %2060 = vst [vmem:[#allocation2 + $0x50] sm:$0xff] %v1996
        %2061 = vst [vmem:[#allocation2 + $0x58] sm:$0xff] %v1997
        %2062 = vst [vmem:[#allocation2 + $0x60] sm:$0xff] %v1998
        %2063 = vst [vmem:[#allocation2 + $0x68] sm:$0xff] %v1999
        %2064 = vst [vmem:[#allocation2 + $0x70] sm:$0xff] %v2000
        %2065 = vst [vmem:[#allocation2 + $0x78] sm:$0xff] %v2001
        %2066 = vst [vmem:[#allocation2 + $0x80] sm:$0xff] %v2002
        %2067 = vst [vmem:[#allocation2 + $0x88] sm:$0xff] %v2003
        %2068 = vst [vmem:[#allocation2 + $0x90] sm:$0xff] %v2004
        %2069 = vst [vmem:[#allocation2 + $0x98] sm:$0xff] %v2005
        %2070 = vst [vmem:[#allocation2 + $0xa0] sm:$0xff] %v2006
        %2071 = vst [vmem:[#allocation2 + $0xa8] sm:$0xff] %v2007
        %2072 = vst [vmem:[#allocation2 + $0xb0] sm:$0xff] %v2008
        %2073 = vst [vmem:[#allocation2 + $0xb8] sm:$0xff] %v2009
        %2074 = vst [vmem:[#allocation2 + $0xc0] sm:$0xff] %v2010
        %2075 = vst [vmem:[#allocation2 + $0xc8] sm:$0xff] %v2011
        %2076 = vst [vmem:[#allocation2 + $0xd0] sm:$0xff] %v2012
        %2077 = vst [vmem:[#allocation2 + $0xd8] sm:$0xff] %v2013
        %2078 = vst [vmem:[#allocation2 + $0xe0] sm:$0xff] %v2014
        %2079 = vst [vmem:[#allocation2 + $0xe8] sm:$0xff] %v2015
        %2080 = vst [vmem:[#allocation2 + $0xf0] sm:$0xff] %v2016
        %2081 = vst [vmem:[#allocation2 + $0xf8] sm:$0xff] %v2017
        %2082 = vst [vmem:[#allocation2 + $0x100] sm:$0xff] %v2018
        %2083 = vst [vmem:[#allocation2 + $0x108] sm:$0xff] %v2019
        %2084 = vst [vmem:[#allocation2 + $0x110] sm:$0xff] %v2020
        %2085 = vst [vmem:[#allocation2 + $0x118] sm:$0xff] %v2021
        %2086 = vst [vmem:[#allocation2 + $0x120] sm:$0xff] %v2022
        %2087 = vst [vmem:[#allocation2 + $0x128] sm:$0xff] %v2023
        %2088 = vst [vmem:[#allocation2 + $0x130] sm:$0xff] %v2024
        %2089 = vst [vmem:[#allocation2 + $0x138] sm:$0xff] %v2025
        %2090 = vst [vmem:[#allocation2 + $0x140] sm:$0xff] %v2026
        %2091 = vst [vmem:[#allocation2 + $0x148] sm:$0xff] %v2027
        %2092 = vst [vmem:[#allocation2 + $0x150] sm:$0xff] %v2028
        %2093 = vst [vmem:[#allocation2 + $0x158] sm:$0xff] %v2029
        %2094 = vst [vmem:[#allocation2 + $0x160] sm:$0xff] %v2030
        %2095 = vst [vmem:[#allocation2 + $0x168] sm:$0xff] %v2031
        %2096 = vst [vmem:[#allocation2 + $0x170] sm:$0xff] %v2032
        %2097 = vst [vmem:[#allocation2 + $0x178] sm:$0xff] %v2033
        %2098 = vst [vmem:[#allocation2 + $0x180] sm:$0xff] %v2034
        %2099 = vst [vmem:[#allocation2 + $0x188] sm:$0xff] %v2035
        %2100 = vst [vmem:[#allocation2 + $0x190] sm:$0xff] %v2036
        %2101 = vst [vmem:[#allocation2 + $0x198] sm:$0xff] %v2037
        %2102 = vst [vmem:[#allocation2 + $0x1a0] sm:$0xff] %v2038
        %2103 = vst [vmem:[#allocation2 + $0x1a8] sm:$0xff] %v2039
        %2104 = vst [vmem:[#allocation2 + $0x1b0] sm:$0xff] %v2040
        %2105 = vst [vmem:[#allocation2 + $0x1b8] sm:$0xff] %v2041
        %2106 = vst [vmem:[#allocation2 + $0x1c0] sm:$0xff] %v2042
        %2107 = vst [vmem:[#allocation2 + $0x1c8] sm:$0xff] %v2043
        %2108 = vst [vmem:[#allocation2 + $0x1d0] sm:$0xff] %v2044
        %2109 = vst [vmem:[#allocation2 + $0x1d8] sm:$0xff] %v2045
        %2110 = vst [vmem:[#allocation2 + $0x1e0] sm:$0xff] %v2046
        %2111 = vst [vmem:[#allocation2 + $0x1e8] sm:$0xff] %v2047
        %2112 = vst [vmem:[#allocation2 + $0x1f0] sm:$0xff] %v2048
        %2113 = vst [vmem:[#allocation2 + $0x1f8] sm:$0xff] %v2049
        %s2114 = scalar_lea.vmem %s1, 12
        %v2115 = vld [vmem:[%s2114] sm:$0xf]
        %v2118 = vunpack.c.l.b16 %v191
        %v2119 = vunpack.c.l.b16 %v192
        %v2120 = vpack.c.b16 %v2119, %v2118
        %v2123 = vunpack.c.l.s4 1983009808
        %v2124 = vunpack.c.0.s8 %v2123
        %v2125 = vlaneseq
        %v2126 = vshrl.u32 %v2125, 7
        %v2127 = vsub.s32 %v2124, %v2126
        %v2128 = vrot.slane %v2115, %v2127
        %v2129 = vcombine.high %v2128, %v2128
        %v2131 = vsel %vm287, %v2120, 0
        %v2134 = vsel %vm336, %v2128, 0
        %v2137 = vsel %vm336, %v2129, 0
        %2139 = vmatprep.subr.bf16.mxu0 %v2137
        %2140 = vmatpush1.bf16.msra.mxu0 %v2134
        %2141 = vmatprep.subr.bf16.mxu0 0
        %2142 = vmatpush1.bf16.msra.mxu0 0
        %2143 = vmatprep.subr.bf16.mxu0 0
        %2144 = vmatpush1.bf16.msra.mxu0 0
        %2145 = vmatprep.subr.bf16.mxu0 0
        %2146 = vmatpush1.bf16.msra.mxu0 0
        %2147 = vmatprep.subr.bf16.mxu0 0
        %2148 = vmatpush1.bf16.msra.mxu0 0
        %2149 = vmatprep.subr.bf16.mxu0 0
        %2150 = vmatpush1.bf16.msra.mxu0 0
        %2151 = vmatprep.subr.bf16.mxu0 0
        %2152 = vmatpush1.bf16.msra.mxu0 0
        %2153 = vmatprep.subr.bf16.mxu0 0
        %2154 = vmatpush1.bf16.msra.mxu0 0
        %2155 = vmatprep.subr.bf16.mxu0 0
        %2156 = vmatpush1.bf16.msra.mxu0 0
        %2157 = vmatprep.subr.bf16.mxu0 0
        %2158 = vmatpush1.bf16.msra.mxu0 0
        %2159 = vmatprep.subr.bf16.mxu0 0
        %2160 = vmatpush1.bf16.msra.mxu0 0
        %2161 = vmatprep.subr.bf16.mxu0 0
        %2162 = vmatpush1.bf16.msra.mxu0 0
        %2163 = vmatprep.subr.bf16.mxu0 0
        %2164 = vmatpush1.bf16.msra.mxu0 0
        %2165 = vmatprep.subr.bf16.mxu0 0
        %2166 = vmatpush1.bf16.msra.mxu0 0
        %2167 = vmatprep.subr.bf16.mxu0 0
        %2168 = vmatpush1.bf16.msra.mxu0 0
        %2169 = vmatprep.subr.bf16.mxu0 0
        %2170 = vmatpush1.bf16.msra.mxu0 0
        %2171 = vmatprep.mubr.bf16.mxu0 0
        %2172 = vmatmul.mubr.bf16.gmra.mrb[0].mxu0 %v292
        %v2173 = vpop.f32.mrb[0].mxu0
        %v2174 = vadd.f32 0.0, %v2173
        %v2175 = vpop.f32.mrb[0].mxu0
        %v2176 = vadd.f32 0.0, %v2175
        %v2177 = vpop.f32.mrb[0].mxu0
        %v2178 = vadd.f32 0.0, %v2177
        %v2179 = vpop.f32.mrb[0].mxu0
        %v2180 = vadd.f32 0.0, %v2179
        %2181 = vmatprep.mubr.bf16.mxu0 0
        %2182 = vmatmul.mubr.bf16.gmra.mrb[0].mxu0 %v295
        %v2183 = vpop.f32.mrb[0].mxu0
        %v2184 = vadd.f32 0.0, %v2183
        %v2185 = vpop.f32.mrb[0].mxu0
        %v2186 = vadd.f32 0.0, %v2185
        %v2187 = vpop.f32.mrb[0].mxu0
        %v2188 = vadd.f32 0.0, %v2187
        %v2189 = vpop.f32.mrb[0].mxu0
        %v2190 = vadd.f32 0.0, %v2189
        %2191 = vmatprep.mubr.bf16.mxu0 0
        %2192 = vmatmul.mubr.bf16.gmra.mrb[0].mxu0 %v298
        %v2193 = vpop.f32.mrb[0].mxu0
        %v2194 = vadd.f32 0.0, %v2193
        %v2195 = vpop.f32.mrb[0].mxu0
        %v2196 = vadd.f32 0.0, %v2195
        %v2197 = vpop.f32.mrb[0].mxu0
        %v2198 = vadd.f32 0.0, %v2197
        %v2199 = vpop.f32.mrb[0].mxu0
        %v2200 = vadd.f32 0.0, %v2199
        %2201 = vmatprep.mubr.bf16.mxu0 0
        %2202 = vmatmul.mubr.bf16.gmra.mrb[0].mxu0 %v301
        %v2203 = vpop.f32.mrb[0].mxu0
        %v2204 = vadd.f32 0.0, %v2203
        %v2205 = vpop.f32.mrb[0].mxu0
        %v2206 = vadd.f32 0.0, %v2205
        %v2207 = vpop.f32.mrb[0].mxu0
        %v2208 = vadd.f32 0.0, %v2207
        %v2209 = vpop.f32.mrb[0].mxu0
        %v2210 = vadd.f32 0.0, %v2209
        %2211 = vmatprep.mubr.bf16.mxu0 0
        %2212 = vmatmul.mubr.bf16.gmra.mrb[0].mxu0 %v304
        %v2213 = vpop.f32.mrb[0].mxu0
        %v2214 = vadd.f32 0.0, %v2213
        %v2215 = vpop.f32.mrb[0].mxu0
        %v2216 = vadd.f32 0.0, %v2215
        %v2217 = vpop.f32.mrb[0].mxu0
        %v2218 = vadd.f32 0.0, %v2217
        %v2219 = vpop.f32.mrb[0].mxu0
        %v2220 = vadd.f32 0.0, %v2219
        %2221 = vmatprep.mubr.bf16.mxu0 0
        %2222 = vmatmul.mubr.bf16.gmra.mrb[0].mxu0 %v307
        %v2223 = vpop.f32.mrb[0].mxu0
        %v2224 = vadd.f32 0.0, %v2223
        %v2225 = vpop.f32.mrb[0].mxu0
        %v2226 = vadd.f32 0.0, %v2225
        %v2227 = vpop.f32.mrb[0].mxu0
        %v2228 = vadd.f32 0.0, %v2227
        %v2229 = vpop.f32.mrb[0].mxu0
        %v2230 = vadd.f32 0.0, %v2229
        %2231 = vmatprep.mubr.bf16.mxu0 0
        %2232 = vmatmul.mubr.bf16.gmra.mrb[0].mxu0 %v310
        %v2233 = vpop.f32.mrb[0].mxu0
        %v2234 = vadd.f32 0.0, %v2233
        %v2235 = vpop.f32.mrb[0].mxu0
        %v2236 = vadd.f32 0.0, %v2235
        %v2237 = vpop.f32.mrb[0].mxu0
        %v2238 = vadd.f32 0.0, %v2237
        %v2239 = vpop.f32.mrb[0].mxu0
        %v2240 = vadd.f32 0.0, %v2239
        %2241 = vmatprep.mubr.bf16.mxu0 0
        %2242 = vmatmul.mubr.bf16.gmra.mrb[0].mxu0 %v313
        %v2243 = vpop.f32.mrb[0].mxu0
        %v2244 = vadd.f32 0.0, %v2243
        %v2245 = vpop.f32.mrb[0].mxu0
        %v2246 = vadd.f32 0.0, %v2245
        %v2247 = vpop.f32.mrb[0].mxu0
        %v2248 = vadd.f32 0.0, %v2247
        %v2249 = vpop.f32.mrb[0].mxu0
        %v2250 = vadd.f32 0.0, %v2249
        %2251 = vmatprep.mubr.bf16.mxu0 0
        %2252 = vmatmul.mubr.bf16.gmra.mrb[0].mxu0 %v316
        %v2253 = vpop.f32.mrb[0].mxu0
        %v2254 = vadd.f32 0.0, %v2253
        %v2255 = vpop.f32.mrb[0].mxu0
        %v2256 = vadd.f32 0.0, %v2255
        %v2257 = vpop.f32.mrb[0].mxu0
        %v2258 = vadd.f32 0.0, %v2257
        %v2259 = vpop.f32.mrb[0].mxu0
        %v2260 = vadd.f32 0.0, %v2259
        %2261 = vmatprep.mubr.bf16.mxu0 0
        %2262 = vmatmul.mubr.bf16.gmra.mrb[0].mxu0 %v319
        %v2263 = vpop.f32.mrb[0].mxu0
        %v2264 = vadd.f32 0.0, %v2263
        %v2265 = vpop.f32.mrb[0].mxu0
        %v2266 = vadd.f32 0.0, %v2265
        %v2267 = vpop.f32.mrb[0].mxu0
        %v2268 = vadd.f32 0.0, %v2267
        %v2269 = vpop.f32.mrb[0].mxu0
        %v2270 = vadd.f32 0.0, %v2269
        %2271 = vmatprep.mubr.bf16.mxu0 0
        %2272 = vmatmul.mubr.bf16.gmra.mrb[0].mxu0 %v322
        %v2273 = vpop.f32.mrb[0].mxu0
        %v2274 = vadd.f32 0.0, %v2273
        %v2275 = vpop.f32.mrb[0].mxu0
        %v2276 = vadd.f32 0.0, %v2275
        %v2277 = vpop.f32.mrb[0].mxu0
        %v2278 = vadd.f32 0.0, %v2277
        %v2279 = vpop.f32.mrb[0].mxu0
        %v2280 = vadd.f32 0.0, %v2279
        %2281 = vmatprep.mubr.bf16.mxu0 0
        %2282 = vmatmul.mubr.bf16.gmra.mrb[0].mxu0 %v325
        %v2283 = vpop.f32.mrb[0].mxu0
        %v2284 = vadd.f32 0.0, %v2283
        %v2285 = vpop.f32.mrb[0].mxu0
        %v2286 = vadd.f32 0.0, %v2285
        %v2287 = vpop.f32.mrb[0].mxu0
        %v2288 = vadd.f32 0.0, %v2287
        %v2289 = vpop.f32.mrb[0].mxu0
        %v2290 = vadd.f32 0.0, %v2289
        %2291 = vmatprep.mubr.bf16.mxu0 0
        %2292 = vmatmul.mubr.bf16.gmra.mrb[0].mxu0 %v328
        %v2293 = vpop.f32.mrb[0].mxu0
        %v2294 = vadd.f32 0.0, %v2293
        %v2295 = vpop.f32.mrb[0].mxu0
        %v2296 = vadd.f32 0.0, %v2295
        %v2297 = vpop.f32.mrb[0].mxu0
        %v2298 = vadd.f32 0.0, %v2297
        %v2299 = vpop.f32.mrb[0].mxu0
        %v2300 = vadd.f32 0.0, %v2299
        %2301 = vmatprep.mubr.bf16.mxu0 0
        %2302 = vmatmul.mubr.bf16.gmra.mrb[0].mxu0 %v331
        %v2303 = vpop.f32.mrb[0].mxu0
        %v2304 = vadd.f32 0.0, %v2303
        %v2305 = vpop.f32.mrb[0].mxu0
        %v2306 = vadd.f32 0.0, %v2305
        %v2307 = vpop.f32.mrb[0].mxu0
        %v2308 = vadd.f32 0.0, %v2307
        %v2309 = vpop.f32.mrb[0].mxu0
        %v2310 = vadd.f32 0.0, %v2309
        %2311 = vmatprep.mubr.bf16.mxu0 0
        %2312 = vmatmul.mubr.bf16.gmra.mrb[0].mxu0 %v334
        %v2313 = vpop.f32.mrb[0].mxu0
        %v2314 = vadd.f32 0.0, %v2313
        %v2315 = vpop.f32.mrb[0].mxu0
        %v2316 = vadd.f32 0.0, %v2315
        %v2317 = vpop.f32.mrb[0].mxu0
        %v2318 = vadd.f32 0.0, %v2317
        %v2319 = vpop.f32.mrb[0].mxu0
        %v2320 = vadd.f32 0.0, %v2319
        %2321 = vmatprep.mubr.bf16.mxu0 0
        %2322 = vmatmul.mubr.bf16.gmra.mrb[0].mxu0 %v2131
        %v2323 = vpop.f32.mrb[0].mxu0
        %v2324 = vadd.f32 0.0, %v2323
        %v2325 = vpop.f32.mrb[0].mxu0
        %v2326 = vadd.f32 0.0, %v2325
        %v2327 = vpop.f32.mrb[0].mxu0
        %v2328 = vadd.f32 0.0, %v2327
        %v2329 = vpop.f32.mrb[0].mxu0
        %v2330 = vadd.f32 0.0, %v2329
        %2331 = vdwg.mxu0
        %v2332 = vld [vmem:[#allocation2] sm:$0xff]
        %v2333 = vld [vmem:[#allocation2 + $0x8] sm:$0xff]
        %v2334 = vld [vmem:[#allocation2 + $0x10] sm:$0xff]
        %v2335 = vld [vmem:[#allocation2 + $0x18] sm:$0xff]
        %v2336 = vld [vmem:[#allocation2 + $0x20] sm:$0xff]
        %v2337 = vld [vmem:[#allocation2 + $0x28] sm:$0xff]
        %v2338 = vld [vmem:[#allocation2 + $0x30] sm:$0xff]
        %v2339 = vld [vmem:[#allocation2 + $0x38] sm:$0xff]
        %v2340 = vld [vmem:[#allocation2 + $0x40] sm:$0xff]
        %v2341 = vld [vmem:[#allocation2 + $0x48] sm:$0xff]
        %v2342 = vld [vmem:[#allocation2 + $0x50] sm:$0xff]
        %v2343 = vld [vmem:[#allocation2 + $0x58] sm:$0xff]
        %v2344 = vld [vmem:[#allocation2 + $0x60] sm:$0xff]
        %v2345 = vld [vmem:[#allocation2 + $0x68] sm:$0xff]
        %v2346 = vld [vmem:[#allocation2 + $0x70] sm:$0xff]
        %v2347 = vld [vmem:[#allocation2 + $0x78] sm:$0xff]
        %v2348 = vld [vmem:[#allocation2 + $0x80] sm:$0xff]
        %v2349 = vld [vmem:[#allocation2 + $0x88] sm:$0xff]
        %v2350 = vld [vmem:[#allocation2 + $0x90] sm:$0xff]
        %v2351 = vld [vmem:[#allocation2 + $0x98] sm:$0xff]
        %v2352 = vld [vmem:[#allocation2 + $0xa0] sm:$0xff]
        %v2353 = vld [vmem:[#allocation2 + $0xa8] sm:$0xff]
        %v2354 = vld [vmem:[#allocation2 + $0xb0] sm:$0xff]
        %v2355 = vld [vmem:[#allocation2 + $0xb8] sm:$0xff]
        %v2356 = vld [vmem:[#allocation2 + $0xc0] sm:$0xff]
        %v2357 = vld [vmem:[#allocation2 + $0xc8] sm:$0xff]
        %v2358 = vld [vmem:[#allocation2 + $0xd0] sm:$0xff]
        %v2359 = vld [vmem:[#allocation2 + $0xd8] sm:$0xff]
        %v2360 = vld [vmem:[#allocation2 + $0xe0] sm:$0xff]
        %v2361 = vld [vmem:[#allocation2 + $0xe8] sm:$0xff]
        %v2362 = vld [vmem:[#allocation2 + $0xf0] sm:$0xff]
        %v2363 = vld [vmem:[#allocation2 + $0xf8] sm:$0xff]
        %v2364 = vld [vmem:[#allocation2 + $0x100] sm:$0xff]
        %v2365 = vld [vmem:[#allocation2 + $0x108] sm:$0xff]
        %v2366 = vld [vmem:[#allocation2 + $0x110] sm:$0xff]
        %v2367 = vld [vmem:[#allocation2 + $0x118] sm:$0xff]
        %v2368 = vld [vmem:[#allocation2 + $0x120] sm:$0xff]
        %v2369 = vld [vmem:[#allocation2 + $0x128] sm:$0xff]
        %v2370 = vld [vmem:[#allocation2 + $0x130] sm:$0xff]
        %v2371 = vld [vmem:[#allocation2 + $0x138] sm:$0xff]
        %v2372 = vld [vmem:[#allocation2 + $0x140] sm:$0xff]
        %v2373 = vld [vmem:[#allocation2 + $0x148] sm:$0xff]
        %v2374 = vld [vmem:[#allocation2 + $0x150] sm:$0xff]
        %v2375 = vld [vmem:[#allocation2 + $0x158] sm:$0xff]
        %v2376 = vld [vmem:[#allocation2 + $0x160] sm:$0xff]
        %v2377 = vld [vmem:[#allocation2 + $0x168] sm:$0xff]
        %v2378 = vld [vmem:[#allocation2 + $0x170] sm:$0xff]
        %v2379 = vld [vmem:[#allocation2 + $0x178] sm:$0xff]
        %v2380 = vld [vmem:[#allocation2 + $0x180] sm:$0xff]
        %v2381 = vld [vmem:[#allocation2 + $0x188] sm:$0xff]
        %v2382 = vld [vmem:[#allocation2 + $0x190] sm:$0xff]
        %v2383 = vld [vmem:[#allocation2 + $0x198] sm:$0xff]
        %v2384 = vld [vmem:[#allocation2 + $0x1a0] sm:$0xff]
        %v2385 = vld [vmem:[#allocation2 + $0x1a8] sm:$0xff]
        %v2386 = vld [vmem:[#allocation2 + $0x1b0] sm:$0xff]
        %v2387 = vld [vmem:[#allocation2 + $0x1b8] sm:$0xff]
        %v2388 = vld [vmem:[#allocation2 + $0x1c0] sm:$0xff]
        %v2389 = vld [vmem:[#allocation2 + $0x1c8] sm:$0xff]
        %v2390 = vld [vmem:[#allocation2 + $0x1d0] sm:$0xff]
        %v2391 = vld [vmem:[#allocation2 + $0x1d8] sm:$0xff]
        %v2392 = vld [vmem:[#allocation2 + $0x1e0] sm:$0xff]
        %v2393 = vld [vmem:[#allocation2 + $0x1e8] sm:$0xff]
        %v2394 = vld [vmem:[#allocation2 + $0x1f0] sm:$0xff]
        %v2395 = vld [vmem:[#allocation2 + $0x1f8] sm:$0xff]
        %v2396 = vadd.f32 %v2332, %v2174
        %v2397 = vadd.f32 %v2333, %v2176
        %v2398 = vadd.f32 %v2334, %v2178
        %v2399 = vadd.f32 %v2335, %v2180
        %v2400 = vadd.f32 %v2336, %v2184
        %v2401 = vadd.f32 %v2337, %v2186
        %v2402 = vadd.f32 %v2338, %v2188
        %v2403 = vadd.f32 %v2339, %v2190
        %v2404 = vadd.f32 %v2340, %v2194
        %v2405 = vadd.f32 %v2341, %v2196
        %v2406 = vadd.f32 %v2342, %v2198
        %v2407 = vadd.f32 %v2343, %v2200
        %v2408 = vadd.f32 %v2344, %v2204
        %v2409 = vadd.f32 %v2345, %v2206
        %v2410 = vadd.f32 %v2346, %v2208
        %v2411 = vadd.f32 %v2347, %v2210
        %v2412 = vadd.f32 %v2348, %v2214
        %v2413 = vadd.f32 %v2349, %v2216
        %v2414 = vadd.f32 %v2350, %v2218
        %v2415 = vadd.f32 %v2351, %v2220
        %v2416 = vadd.f32 %v2352, %v2224
        %v2417 = vadd.f32 %v2353, %v2226
        %v2418 = vadd.f32 %v2354, %v2228
        %v2419 = vadd.f32 %v2355, %v2230
        %v2420 = vadd.f32 %v2356, %v2234
        %v2421 = vadd.f32 %v2357, %v2236
        %v2422 = vadd.f32 %v2358, %v2238
        %v2423 = vadd.f32 %v2359, %v2240
        %v2424 = vadd.f32 %v2360, %v2244
        %v2425 = vadd.f32 %v2361, %v2246
        %v2426 = vadd.f32 %v2362, %v2248
        %v2427 = vadd.f32 %v2363, %v2250
        %v2428 = vadd.f32 %v2364, %v2254
        %v2429 = vadd.f32 %v2365, %v2256
        %v2430 = vadd.f32 %v2366, %v2258
        %v2431 = vadd.f32 %v2367, %v2260
        %v2432 = vadd.f32 %v2368, %v2264
        %v2433 = vadd.f32 %v2369, %v2266
        %v2434 = vadd.f32 %v2370, %v2268
        %v2435 = vadd.f32 %v2371, %v2270
        %v2436 = vadd.f32 %v2372, %v2274
        %v2437 = vadd.f32 %v2373, %v2276
        %v2438 = vadd.f32 %v2374, %v2278
        %v2439 = vadd.f32 %v2375, %v2280
        %v2440 = vadd.f32 %v2376, %v2284
        %v2441 = vadd.f32 %v2377, %v2286
        %v2442 = vadd.f32 %v2378, %v2288
        %v2443 = vadd.f32 %v2379, %v2290
        %v2444 = vadd.f32 %v2380, %v2294
        %v2445 = vadd.f32 %v2381, %v2296
        %v2446 = vadd.f32 %v2382, %v2298
        %v2447 = vadd.f32 %v2383, %v2300
        %v2448 = vadd.f32 %v2384, %v2304
        %v2449 = vadd.f32 %v2385, %v2306
        %v2450 = vadd.f32 %v2386, %v2308
        %v2451 = vadd.f32 %v2387, %v2310
        %v2452 = vadd.f32 %v2388, %v2314
        %v2453 = vadd.f32 %v2389, %v2316
        %v2454 = vadd.f32 %v2390, %v2318
        %v2455 = vadd.f32 %v2391, %v2320
        %v2456 = vadd.f32 %v2392, %v2324
        %v2457 = vadd.f32 %v2393, %v2326
        %v2458 = vadd.f32 %v2394, %v2328
        %v2459 = vadd.f32 %v2395, %v2330
        %2460 = vst [vmem:[#allocation2] sm:$0xff] %v2396
        %2461 = vst [vmem:[#allocation2 + $0x8] sm:$0xff] %v2397
        %2462 = vst [vmem:[#allocation2 + $0x10] sm:$0xff] %v2398
        %2463 = vst [vmem:[#allocation2 + $0x18] sm:$0xff] %v2399
        %2464 = vst [vmem:[#allocation2 + $0x20] sm:$0xff] %v2400
        %2465 = vst [vmem:[#allocation2 + $0x28] sm:$0xff] %v2401
        %2466 = vst [vmem:[#allocation2 + $0x30] sm:$0xff] %v2402
        %2467 = vst [vmem:[#allocation2 + $0x38] sm:$0xff] %v2403
        %2468 = vst [vmem:[#allocation2 + $0x40] sm:$0xff] %v2404
        %2469 = vst [vmem:[#allocation2 + $0x48] sm:$0xff] %v2405
        %2470 = vst [vmem:[#allocation2 + $0x50] sm:$0xff] %v2406
        %2471 = vst [vmem:[#allocation2 + $0x58] sm:$0xff] %v2407
        %2472 = vst [vmem:[#allocation2 + $0x60] sm:$0xff] %v2408
        %2473 = vst [vmem:[#allocation2 + $0x68] sm:$0xff] %v2409
        %2474 = vst [vmem:[#allocation2 + $0x70] sm:$0xff] %v2410
        %2475 = vst [vmem:[#allocation2 + $0x78] sm:$0xff] %v2411
        %2476 = vst [vmem:[#allocation2 + $0x80] sm:$0xff] %v2412
        %2477 = vst [vmem:[#allocation2 + $0x88] sm:$0xff] %v2413
        %2478 = vst [vmem:[#allocation2 + $0x90] sm:$0xff] %v2414
        %2479 = vst [vmem:[#allocation2 + $0x98] sm:$0xff] %v2415
        %2480 = vst [vmem:[#allocation2 + $0xa0] sm:$0xff] %v2416
        %2481 = vst [vmem:[#allocation2 + $0xa8] sm:$0xff] %v2417
        %2482 = vst [vmem:[#allocation2 + $0xb0] sm:$0xff] %v2418
        %2483 = vst [vmem:[#allocation2 + $0xb8] sm:$0xff] %v2419
        %2484 = vst [vmem:[#allocation2 + $0xc0] sm:$0xff] %v2420
        %2485 = vst [vmem:[#allocation2 + $0xc8] sm:$0xff] %v2421
        %2486 = vst [vmem:[#allocation2 + $0xd0] sm:$0xff] %v2422
        %2487 = vst [vmem:[#allocation2 + $0xd8] sm:$0xff] %v2423
        %2488 = vst [vmem:[#allocation2 + $0xe0] sm:$0xff] %v2424
        %2489 = vst [vmem:[#allocation2 + $0xe8] sm:$0xff] %v2425
        %2490 = vst [vmem:[#allocation2 + $0xf0] sm:$0xff] %v2426
        %2491 = vst [vmem:[#allocation2 + $0xf8] sm:$0xff] %v2427
        %2492 = vst [vmem:[#allocation2 + $0x100] sm:$0xff] %v2428
        %2493 = vst [vmem:[#allocation2 + $0x108] sm:$0xff] %v2429
        %2494 = vst [vmem:[#allocation2 + $0x110] sm:$0xff] %v2430
        %2495 = vst [vmem:[#allocation2 + $0x118] sm:$0xff] %v2431
        %2496 = vst [vmem:[#allocation2 + $0x120] sm:$0xff] %v2432
        %2497 = vst [vmem:[#allocation2 + $0x128] sm:$0xff] %v2433
        %2498 = vst [vmem:[#allocation2 + $0x130] sm:$0xff] %v2434
        %2499 = vst [vmem:[#allocation2 + $0x138] sm:$0xff] %v2435
        %2500 = vst [vmem:[#allocation2 + $0x140] sm:$0xff] %v2436
        %2501 = vst [vmem:[#allocation2 + $0x148] sm:$0xff] %v2437
        %2502 = vst [vmem:[#allocation2 + $0x150] sm:$0xff] %v2438
        %2503 = vst [vmem:[#allocation2 + $0x158] sm:$0xff] %v2439
        %2504 = vst [vmem:[#allocation2 + $0x160] sm:$0xff] %v2440
        %2505 = vst [vmem:[#allocation2 + $0x168] sm:$0xff] %v2441
        %2506 = vst [vmem:[#allocation2 + $0x170] sm:$0xff] %v2442
        %2507 = vst [vmem:[#allocation2 + $0x178] sm:$0xff] %v2443
        %2508 = vst [vmem:[#allocation2 + $0x180] sm:$0xff] %v2444
        %2509 = vst [vmem:[#allocation2 + $0x188] sm:$0xff] %v2445
        %2510 = vst [vmem:[#allocation2 + $0x190] sm:$0xff] %v2446
        %2511 = vst [vmem:[#allocation2 + $0x198] sm:$0xff] %v2447
        %2512 = vst [vmem:[#allocation2 + $0x1a0] sm:$0xff] %v2448
        %2513 = vst [vmem:[#allocation2 + $0x1a8] sm:$0xff] %v2449
        %2514 = vst [vmem:[#allocation2 + $0x1b0] sm:$0xff] %v2450
        %2515 = vst [vmem:[#allocation2 + $0x1b8] sm:$0xff] %v2451
        %2516 = vst [vmem:[#allocation2 + $0x1c0] sm:$0xff] %v2452
        %2517 = vst [vmem:[#allocation2 + $0x1c8] sm:$0xff] %v2453
        %2518 = vst [vmem:[#allocation2 + $0x1d0] sm:$0xff] %v2454
        %2519 = vst [vmem:[#allocation2 + $0x1d8] sm:$0xff] %v2455
        %2520 = vst [vmem:[#allocation2 + $0x1e0] sm:$0xff] %v2456
        %2521 = vst [vmem:[#allocation2 + $0x1e8] sm:$0xff] %v2457
        %2522 = vst [vmem:[#allocation2 + $0x1f0] sm:$0xff] %v2458
        %2523 = vst [vmem:[#allocation2 + $0x1f8] sm:$0xff] %v2459
        %v2525 = vshrl.u32 %v191, 16
        %v2527 = vrot.slane %v2525, 4
        %v2528 = vshll.u32 %v191, 16
        %v2530 = vrot.slane %v2528, 5
        %v2531 = vor.u32 %v2527, %v2530
        %v2532 = vrot.slane %v2531, 4
        %v2534 = vshll.u32 %v192, 16
        %v2536 = vrot.slane %v2534, 5
        %v2537 = vsel %vm602, %v2532, %v2536
        %v2538 = vshrl.u32 %v192, 16
        %v2540 = vrot.slane %v2538, 4
        %v2541 = vor.u32 %v2540, %v2536
        %v2542 = vrot.slane %v2541, 4
        %v2544 = vshll.u32 %v193, 16
        %v2546 = vrot.slane %v2544, 5
        %v2547 = vsel %vm602, %v2542, %v2546
        %s2548 = scalar_lea.vmem %s1, 16
        %v2549 = vld [vmem:[%s2548] sm:$0xf]
        %v2550 = vunpack.c.l.b16 %v2537
        %v2551 = vunpack.c.l.b16 %v2547
        %v2552 = vpack.c.b16 %v2551, %v2550
        %v2555 = vunpack.c.l.s4 1983009808
        %v2556 = vunpack.c.0.s8 %v2555
        %v2557 = vlaneseq
        %v2558 = vshrl.u32 %v2557, 7
        %v2559 = vsub.s32 %v2556, %v2558
        %v2560 = vrot.slane %v2549, %v2559
        %v2561 = vcombine.high %v2560, %v2560
        %v2563 = vsel %vm287, %v2552, 0
        %v2566 = vsel %vm336, %v2560, 0
        %v2569 = vsel %vm336, %v2561, 0
        %2571 = vmatprep.subr.bf16.mxu0 %v2569
        %2572 = vmatpush1.bf16.msra.mxu0 %v2566
        %2573 = vmatprep.subr.bf16.mxu0 0
        %2574 = vmatpush1.bf16.msra.mxu0 0
        %2575 = vmatprep.subr.bf16.mxu0 0
        %2576 = vmatpush1.bf16.msra.mxu0 0
        %2577 = vmatprep.subr.bf16.mxu0 0
        %2578 = vmatpush1.bf16.msra.mxu0 0
        %2579 = vmatprep.subr.bf16.mxu0 0
        %2580 = vmatpush1.bf16.msra.mxu0 0
        %2581 = vmatprep.subr.bf16.mxu0 0
        %2582 = vmatpush1.bf16.msra.mxu0 0
        %2583 = vmatprep.subr.bf16.mxu0 0
        %2584 = vmatpush1.bf16.msra.mxu0 0
        %2585 = vmatprep.subr.bf16.mxu0 0
        %2586 = vmatpush1.bf16.msra.mxu0 0
        %2587 = vmatprep.subr.bf16.mxu0 0
        %2588 = vmatpush1.bf16.msra.mxu0 0
        %2589 = vmatprep.subr.bf16.mxu0 0
        %2590 = vmatpush1.bf16.msra.mxu0 0
        %2591 = vmatprep.subr.bf16.mxu0 0
        %2592 = vmatpush1.bf16.msra.mxu0 0
        %2593 = vmatprep.subr.bf16.mxu0 0
        %2594 = vmatpush1.bf16.msra.mxu0 0
        %2595 = vmatprep.subr.bf16.mxu0 0
        %2596 = vmatpush1.bf16.msra.mxu0 0
        %2597 = vmatprep.subr.bf16.mxu0 0
        %2598 = vmatpush1.bf16.msra.mxu0 0
        %2599 = vmatprep.subr.bf16.mxu0 0
        %2600 = vmatpush1.bf16.msra.mxu0 0
        %2601 = vmatprep.subr.bf16.mxu0 0
        %2602 = vmatpush1.bf16.msra.mxu0 0
        %2603 = vmatprep.mubr.bf16.mxu0 0
        %2604 = vmatmul.mubr.bf16.gmra.mrb[0].mxu0 %v1050
        %v2605 = vpop.f32.mrb[0].mxu0
        %v2606 = vadd.f32 0.0, %v2605
        %v2607 = vpop.f32.mrb[0].mxu0
        %v2608 = vadd.f32 0.0, %v2607
        %v2609 = vpop.f32.mrb[0].mxu0
        %v2610 = vadd.f32 0.0, %v2609
        %v2611 = vpop.f32.mrb[0].mxu0
        %v2612 = vadd.f32 0.0, %v2611
        %2613 = vmatprep.mubr.bf16.mxu0 0
        %2614 = vmatmul.mubr.bf16.gmra.mrb[0].mxu0 %v1053
        %v2615 = vpop.f32.mrb[0].mxu0
        %v2616 = vadd.f32 0.0, %v2615
        %v2617 = vpop.f32.mrb[0].mxu0
        %v2618 = vadd.f32 0.0, %v2617
        %v2619 = vpop.f32.mrb[0].mxu0
        %v2620 = vadd.f32 0.0, %v2619
        %v2621 = vpop.f32.mrb[0].mxu0
        %v2622 = vadd.f32 0.0, %v2621
        %2623 = vmatprep.mubr.bf16.mxu0 0
        %2624 = vmatmul.mubr.bf16.gmra.mrb[0].mxu0 %v1056
        %v2625 = vpop.f32.mrb[0].mxu0
        %v2626 = vadd.f32 0.0, %v2625
        %v2627 = vpop.f32.mrb[0].mxu0
        %v2628 = vadd.f32 0.0, %v2627
        %v2629 = vpop.f32.mrb[0].mxu0
        %v2630 = vadd.f32 0.0, %v2629
        %v2631 = vpop.f32.mrb[0].mxu0
        %v2632 = vadd.f32 0.0, %v2631
        %2633 = vmatprep.mubr.bf16.mxu0 0
        %2634 = vmatmul.mubr.bf16.gmra.mrb[0].mxu0 %v1059
        %v2635 = vpop.f32.mrb[0].mxu0
        %v2636 = vadd.f32 0.0, %v2635
        %v2637 = vpop.f32.mrb[0].mxu0
        %v2638 = vadd.f32 0.0, %v2637
        %v2639 = vpop.f32.mrb[0].mxu0
        %v2640 = vadd.f32 0.0, %v2639
        %v2641 = vpop.f32.mrb[0].mxu0
        %v2642 = vadd.f32 0.0, %v2641
        %2643 = vmatprep.mubr.bf16.mxu0 0
        %2644 = vmatmul.mubr.bf16.gmra.mrb[0].mxu0 %v1062
        %v2645 = vpop.f32.mrb[0].mxu0
        %v2646 = vadd.f32 0.0, %v2645
        %v2647 = vpop.f32.mrb[0].mxu0
        %v2648 = vadd.f32 0.0, %v2647
        %v2649 = vpop.f32.mrb[0].mxu0
        %v2650 = vadd.f32 0.0, %v2649
        %v2651 = vpop.f32.mrb[0].mxu0
        %v2652 = vadd.f32 0.0, %v2651
        %2653 = vmatprep.mubr.bf16.mxu0 0
        %2654 = vmatmul.mubr.bf16.gmra.mrb[0].mxu0 %v1065
        %v2655 = vpop.f32.mrb[0].mxu0
        %v2656 = vadd.f32 0.0, %v2655
        %v2657 = vpop.f32.mrb[0].mxu0
        %v2658 = vadd.f32 0.0, %v2657
        %v2659 = vpop.f32.mrb[0].mxu0
        %v2660 = vadd.f32 0.0, %v2659
        %v2661 = vpop.f32.mrb[0].mxu0
        %v2662 = vadd.f32 0.0, %v2661
        %2663 = vmatprep.mubr.bf16.mxu0 0
        %2664 = vmatmul.mubr.bf16.gmra.mrb[0].mxu0 %v1068
        %v2665 = vpop.f32.mrb[0].mxu0
        %v2666 = vadd.f32 0.0, %v2665
        %v2667 = vpop.f32.mrb[0].mxu0
        %v2668 = vadd.f32 0.0, %v2667
        %v2669 = vpop.f32.mrb[0].mxu0
        %v2670 = vadd.f32 0.0, %v2669
        %v2671 = vpop.f32.mrb[0].mxu0
        %v2672 = vadd.f32 0.0, %v2671
        %2673 = vmatprep.mubr.bf16.mxu0 0
        %2674 = vmatmul.mubr.bf16.gmra.mrb[0].mxu0 %v1071
        %v2675 = vpop.f32.mrb[0].mxu0
        %v2676 = vadd.f32 0.0, %v2675
        %v2677 = vpop.f32.mrb[0].mxu0
        %v2678 = vadd.f32 0.0, %v2677
        %v2679 = vpop.f32.mrb[0].mxu0
        %v2680 = vadd.f32 0.0, %v2679
        %v2681 = vpop.f32.mrb[0].mxu0
        %v2682 = vadd.f32 0.0, %v2681
        %2683 = vmatprep.mubr.bf16.mxu0 0
        %2684 = vmatmul.mubr.bf16.gmra.mrb[0].mxu0 %v1074
        %v2685 = vpop.f32.mrb[0].mxu0
        %v2686 = vadd.f32 0.0, %v2685
        %v2687 = vpop.f32.mrb[0].mxu0
        %v2688 = vadd.f32 0.0, %v2687
        %v2689 = vpop.f32.mrb[0].mxu0
        %v2690 = vadd.f32 0.0, %v2689
        %v2691 = vpop.f32.mrb[0].mxu0
        %v2692 = vadd.f32 0.0, %v2691
        %2693 = vmatprep.mubr.bf16.mxu0 0
        %2694 = vmatmul.mubr.bf16.gmra.mrb[0].mxu0 %v1077
        %v2695 = vpop.f32.mrb[0].mxu0
        %v2696 = vadd.f32 0.0, %v2695
        %v2697 = vpop.f32.mrb[0].mxu0
        %v2698 = vadd.f32 0.0, %v2697
        %v2699 = vpop.f32.mrb[0].mxu0
        %v2700 = vadd.f32 0.0, %v2699
        %v2701 = vpop.f32.mrb[0].mxu0
        %v2702 = vadd.f32 0.0, %v2701
        %2703 = vmatprep.mubr.bf16.mxu0 0
        %2704 = vmatmul.mubr.bf16.gmra.mrb[0].mxu0 %v1080
        %v2705 = vpop.f32.mrb[0].mxu0
        %v2706 = vadd.f32 0.0, %v2705
        %v2707 = vpop.f32.mrb[0].mxu0
        %v2708 = vadd.f32 0.0, %v2707
        %v2709 = vpop.f32.mrb[0].mxu0
        %v2710 = vadd.f32 0.0, %v2709
        %v2711 = vpop.f32.mrb[0].mxu0
        %v2712 = vadd.f32 0.0, %v2711
        %2713 = vmatprep.mubr.bf16.mxu0 0
        %2714 = vmatmul.mubr.bf16.gmra.mrb[0].mxu0 %v1083
        %v2715 = vpop.f32.mrb[0].mxu0
        %v2716 = vadd.f32 0.0, %v2715
        %v2717 = vpop.f32.mrb[0].mxu0
        %v2718 = vadd.f32 0.0, %v2717
        %v2719 = vpop.f32.mrb[0].mxu0
        %v2720 = vadd.f32 0.0, %v2719
        %v2721 = vpop.f32.mrb[0].mxu0
        %v2722 = vadd.f32 0.0, %v2721
        %2723 = vmatprep.mubr.bf16.mxu0 0
        %2724 = vmatmul.mubr.bf16.gmra.mrb[0].mxu0 %v1086
        %v2725 = vpop.f32.mrb[0].mxu0
        %v2726 = vadd.f32 0.0, %v2725
        %v2727 = vpop.f32.mrb[0].mxu0
        %v2728 = vadd.f32 0.0, %v2727
        %v2729 = vpop.f32.mrb[0].mxu0
        %v2730 = vadd.f32 0.0, %v2729
        %v2731 = vpop.f32.mrb[0].mxu0
        %v2732 = vadd.f32 0.0, %v2731
        %2733 = vmatprep.mubr.bf16.mxu0 0
        %2734 = vmatmul.mubr.bf16.gmra.mrb[0].mxu0 %v1089
        %v2735 = vpop.f32.mrb[0].mxu0
        %v2736 = vadd.f32 0.0, %v2735
        %v2737 = vpop.f32.mrb[0].mxu0
        %v2738 = vadd.f32 0.0, %v2737
        %v2739 = vpop.f32.mrb[0].mxu0
        %v2740 = vadd.f32 0.0, %v2739
        %v2741 = vpop.f32.mrb[0].mxu0
        %v2742 = vadd.f32 0.0, %v2741
        %2743 = vmatprep.mubr.bf16.mxu0 0
        %2744 = vmatmul.mubr.bf16.gmra.mrb[0].mxu0 %v1092
        %v2745 = vpop.f32.mrb[0].mxu0
        %v2746 = vadd.f32 0.0, %v2745
        %v2747 = vpop.f32.mrb[0].mxu0
        %v2748 = vadd.f32 0.0, %v2747
        %v2749 = vpop.f32.mrb[0].mxu0
        %v2750 = vadd.f32 0.0, %v2749
        %v2751 = vpop.f32.mrb[0].mxu0
        %v2752 = vadd.f32 0.0, %v2751
        %2753 = vmatprep.mubr.bf16.mxu0 0
        %2754 = vmatmul.mubr.bf16.gmra.mrb[0].mxu0 %v2563
        %v2755 = vpop.f32.mrb[0].mxu0
        %v2756 = vadd.f32 0.0, %v2755
        %v2757 = vpop.f32.mrb[0].mxu0
        %v2758 = vadd.f32 0.0, %v2757
        %v2759 = vpop.f32.mrb[0].mxu0
        %v2760 = vadd.f32 0.0, %v2759
        %v2761 = vpop.f32.mrb[0].mxu0
        %v2762 = vadd.f32 0.0, %v2761
        %2763 = vdwg.mxu0
        %v2764 = vld [vmem:[#allocation2] sm:$0xff]
        %v2765 = vld [vmem:[#allocation2 + $0x8] sm:$0xff]
        %v2766 = vld [vmem:[#allocation2 + $0x10] sm:$0xff]
        %v2767 = vld [vmem:[#allocation2 + $0x18] sm:$0xff]
        %v2768 = vld [vmem:[#allocation2 + $0x20] sm:$0xff]
        %v2769 = vld [vmem:[#allocation2 + $0x28] sm:$0xff]
        %v2770 = vld [vmem:[#allocation2 + $0x30] sm:$0xff]
        %v2771 = vld [vmem:[#allocation2 + $0x38] sm:$0xff]
        %v2772 = vld [vmem:[#allocation2 + $0x40] sm:$0xff]
        %v2773 = vld [vmem:[#allocation2 + $0x48] sm:$0xff]
        %v2774 = vld [vmem:[#allocation2 + $0x50] sm:$0xff]
        %v2775 = vld [vmem:[#allocation2 + $0x58] sm:$0xff]
        %v2776 = vld [vmem:[#allocation2 + $0x60] sm:$0xff]
        %v2777 = vld [vmem:[#allocation2 + $0x68] sm:$0xff]
        %v2778 = vld [vmem:[#allocation2 + $0x70] sm:$0xff]
        %v2779 = vld [vmem:[#allocation2 + $0x78] sm:$0xff]
        %v2780 = vld [vmem:[#allocation2 + $0x80] sm:$0xff]
        %v2781 = vld [vmem:[#allocation2 + $0x88] sm:$0xff]
        %v2782 = vld [vmem:[#allocation2 + $0x90] sm:$0xff]
        %v2783 = vld [vmem:[#allocation2 + $0x98] sm:$0xff]
        %v2784 = vld [vmem:[#allocation2 + $0xa0] sm:$0xff]
        %v2785 = vld [vmem:[#allocation2 + $0xa8] sm:$0xff]
        %v2786 = vld [vmem:[#allocation2 + $0xb0] sm:$0xff]
        %v2787 = vld [vmem:[#allocation2 + $0xb8] sm:$0xff]
        %v2788 = vld [vmem:[#allocation2 + $0xc0] sm:$0xff]
        %v2789 = vld [vmem:[#allocation2 + $0xc8] sm:$0xff]
        %v2790 = vld [vmem:[#allocation2 + $0xd0] sm:$0xff]
        %v2791 = vld [vmem:[#allocation2 + $0xd8] sm:$0xff]
        %v2792 = vld [vmem:[#allocation2 + $0xe0] sm:$0xff]
        %v2793 = vld [vmem:[#allocation2 + $0xe8] sm:$0xff]
        %v2794 = vld [vmem:[#allocation2 + $0xf0] sm:$0xff]
        %v2795 = vld [vmem:[#allocation2 + $0xf8] sm:$0xff]
        %v2796 = vld [vmem:[#allocation2 + $0x100] sm:$0xff]
        %v2797 = vld [vmem:[#allocation2 + $0x108] sm:$0xff]
        %v2798 = vld [vmem:[#allocation2 + $0x110] sm:$0xff]
        %v2799 = vld [vmem:[#allocation2 + $0x118] sm:$0xff]
        %v2800 = vld [vmem:[#allocation2 + $0x120] sm:$0xff]
        %v2801 = vld [vmem:[#allocation2 + $0x128] sm:$0xff]
        %v2802 = vld [vmem:[#allocation2 + $0x130] sm:$0xff]
        %v2803 = vld [vmem:[#allocation2 + $0x138] sm:$0xff]
        %v2804 = vld [vmem:[#allocation2 + $0x140] sm:$0xff]
        %v2805 = vld [vmem:[#allocation2 + $0x148] sm:$0xff]
        %v2806 = vld [vmem:[#allocation2 + $0x150] sm:$0xff]
        %v2807 = vld [vmem:[#allocation2 + $0x158] sm:$0xff]
        %v2808 = vld [vmem:[#allocation2 + $0x160] sm:$0xff]
        %v2809 = vld [vmem:[#allocation2 + $0x168] sm:$0xff]
        %v2810 = vld [vmem:[#allocation2 + $0x170] sm:$0xff]
        %v2811 = vld [vmem:[#allocation2 + $0x178] sm:$0xff]
        %v2812 = vld [vmem:[#allocation2 + $0x180] sm:$0xff]
        %v2813 = vld [vmem:[#allocation2 + $0x188] sm:$0xff]
        %v2814 = vld [vmem:[#allocation2 + $0x190] sm:$0xff]
        %v2815 = vld [vmem:[#allocation2 + $0x198] sm:$0xff]
        %v2816 = vld [vmem:[#allocation2 + $0x1a0] sm:$0xff]
        %v2817 = vld [vmem:[#allocation2 + $0x1a8] sm:$0xff]
        %v2818 = vld [vmem:[#allocation2 + $0x1b0] sm:$0xff]
        %v2819 = vld [vmem:[#allocation2 + $0x1b8] sm:$0xff]
        %v2820 = vld [vmem:[#allocation2 + $0x1c0] sm:$0xff]
        %v2821 = vld [vmem:[#allocation2 + $0x1c8] sm:$0xff]
        %v2822 = vld [vmem:[#allocation2 + $0x1d0] sm:$0xff]
        %v2823 = vld [vmem:[#allocation2 + $0x1d8] sm:$0xff]
        %v2824 = vld [vmem:[#allocation2 + $0x1e0] sm:$0xff]
        %v2825 = vld [vmem:[#allocation2 + $0x1e8] sm:$0xff]
        %v2826 = vld [vmem:[#allocation2 + $0x1f0] sm:$0xff]
        %v2827 = vld [vmem:[#allocation2 + $0x1f8] sm:$0xff]
        %v2828 = vadd.f32 %v2764, %v2606
        %v2829 = vadd.f32 %v2765, %v2608
        %v2830 = vadd.f32 %v2766, %v2610
        %v2831 = vadd.f32 %v2767, %v2612
        %v2832 = vadd.f32 %v2768, %v2616
        %v2833 = vadd.f32 %v2769, %v2618
        %v2834 = vadd.f32 %v2770, %v2620
        %v2835 = vadd.f32 %v2771, %v2622
        %v2836 = vadd.f32 %v2772, %v2626
        %v2837 = vadd.f32 %v2773, %v2628
        %v2838 = vadd.f32 %v2774, %v2630
        %v2839 = vadd.f32 %v2775, %v2632
        %v2840 = vadd.f32 %v2776, %v2636
        %v2841 = vadd.f32 %v2777, %v2638
        %v2842 = vadd.f32 %v2778, %v2640
        %v2843 = vadd.f32 %v2779, %v2642
        %v2844 = vadd.f32 %v2780, %v2646
        %v2845 = vadd.f32 %v2781, %v2648
        %v2846 = vadd.f32 %v2782, %v2650
        %v2847 = vadd.f32 %v2783, %v2652
        %v2848 = vadd.f32 %v2784, %v2656
        %v2849 = vadd.f32 %v2785, %v2658
        %v2850 = vadd.f32 %v2786, %v2660
        %v2851 = vadd.f32 %v2787, %v2662
        %v2852 = vadd.f32 %v2788, %v2666
        %v2853 = vadd.f32 %v2789, %v2668
        %v2854 = vadd.f32 %v2790, %v2670
        %v2855 = vadd.f32 %v2791, %v2672
        %v2856 = vadd.f32 %v2792, %v2676
        %v2857 = vadd.f32 %v2793, %v2678
        %v2858 = vadd.f32 %v2794, %v2680
        %v2859 = vadd.f32 %v2795, %v2682
        %v2860 = vadd.f32 %v2796, %v2686
        %v2861 = vadd.f32 %v2797, %v2688
        %v2862 = vadd.f32 %v2798, %v2690
        %v2863 = vadd.f32 %v2799, %v2692
        %v2864 = vadd.f32 %v2800, %v2696
        %v2865 = vadd.f32 %v2801, %v2698
        %v2866 = vadd.f32 %v2802, %v2700
        %v2867 = vadd.f32 %v2803, %v2702
        %v2868 = vadd.f32 %v2804, %v2706
        %v2869 = vadd.f32 %v2805, %v2708
        %v2870 = vadd.f32 %v2806, %v2710
        %v2871 = vadd.f32 %v2807, %v2712
        %v2872 = vadd.f32 %v2808, %v2716
        %v2873 = vadd.f32 %v2809, %v2718
        %v2874 = vadd.f32 %v2810, %v2720
        %v2875 = vadd.f32 %v2811, %v2722
        %v2876 = vadd.f32 %v2812, %v2726
        %v2877 = vadd.f32 %v2813, %v2728
        %v2878 = vadd.f32 %v2814, %v2730
        %v2879 = vadd.f32 %v2815, %v2732
        %v2880 = vadd.f32 %v2816, %v2736
        %v2881 = vadd.f32 %v2817, %v2738
        %v2882 = vadd.f32 %v2818, %v2740
        %v2883 = vadd.f32 %v2819, %v2742
        %v2884 = vadd.f32 %v2820, %v2746
        %v2885 = vadd.f32 %v2821, %v2748
        %v2886 = vadd.f32 %v2822, %v2750
        %v2887 = vadd.f32 %v2823, %v2752
        %v2888 = vadd.f32 %v2824, %v2756
        %v2889 = vadd.f32 %v2825, %v2758
        %v2890 = vadd.f32 %v2826, %v2760
        %v2891 = vadd.f32 %v2827, %v2762
        %2892 = vst [vmem:[#allocation2] sm:$0xff] %v2828
        %2893 = vst [vmem:[#allocation2 + $0x8] sm:$0xff] %v2829
        %2894 = vst [vmem:[#allocation2 + $0x10] sm:$0xff] %v2830
        %2895 = vst [vmem:[#allocation2 + $0x18] sm:$0xff] %v2831
        %2896 = vst [vmem:[#allocation2 + $0x20] sm:$0xff] %v2832
        %2897 = vst [vmem:[#allocation2 + $0x28] sm:$0xff] %v2833
        %2898 = vst [vmem:[#allocation2 + $0x30] sm:$0xff] %v2834
        %2899 = vst [vmem:[#allocation2 + $0x38] sm:$0xff] %v2835
        %2900 = vst [vmem:[#allocation2 + $0x40] sm:$0xff] %v2836
        %2901 = vst [vmem:[#allocation2 + $0x48] sm:$0xff] %v2837
        %2902 = vst [vmem:[#allocation2 + $0x50] sm:$0xff] %v2838
        %2903 = vst [vmem:[#allocation2 + $0x58] sm:$0xff] %v2839
        %2904 = vst [vmem:[#allocation2 + $0x60] sm:$0xff] %v2840
        %2905 = vst [vmem:[#allocation2 + $0x68] sm:$0xff] %v2841
        %2906 = vst [vmem:[#allocation2 + $0x70] sm:$0xff] %v2842
        %2907 = vst [vmem:[#allocation2 + $0x78] sm:$0xff] %v2843
        %2908 = vst [vmem:[#allocation2 + $0x80] sm:$0xff] %v2844
        %2909 = vst [vmem:[#allocation2 + $0x88] sm:$0xff] %v2845
        %2910 = vst [vmem:[#allocation2 + $0x90] sm:$0xff] %v2846
        %2911 = vst [vmem:[#allocation2 + $0x98] sm:$0xff] %v2847
        %2912 = vst [vmem:[#allocation2 + $0xa0] sm:$0xff] %v2848
        %2913 = vst [vmem:[#allocation2 + $0xa8] sm:$0xff] %v2849
        %2914 = vst [vmem:[#allocation2 + $0xb0] sm:$0xff] %v2850
        %2915 = vst [vmem:[#allocation2 + $0xb8] sm:$0xff] %v2851
        %2916 = vst [vmem:[#allocation2 + $0xc0] sm:$0xff] %v2852
        %2917 = vst [vmem:[#allocation2 + $0xc8] sm:$0xff] %v2853
        %2918 = vst [vmem:[#allocation2 + $0xd0] sm:$0xff] %v2854
        %2919 = vst [vmem:[#allocation2 + $0xd8] sm:$0xff] %v2855
        %2920 = vst [vmem:[#allocation2 + $0xe0] sm:$0xff] %v2856
        %2921 = vst [vmem:[#allocation2 + $0xe8] sm:$0xff] %v2857
        %2922 = vst [vmem:[#allocation2 + $0xf0] sm:$0xff] %v2858
        %2923 = vst [vmem:[#allocation2 + $0xf8] sm:$0xff] %v2859
        %2924 = vst [vmem:[#allocation2 + $0x100] sm:$0xff] %v2860
        %2925 = vst [vmem:[#allocation2 + $0x108] sm:$0xff] %v2861
        %2926 = vst [vmem:[#allocation2 + $0x110] sm:$0xff] %v2862
        %2927 = vst [vmem:[#allocation2 + $0x118] sm:$0xff] %v2863
        %2928 = vst [vmem:[#allocation2 + $0x120] sm:$0xff] %v2864
        %2929 = vst [vmem:[#allocation2 + $0x128] sm:$0xff] %v2865
        %2930 = vst [vmem:[#allocation2 + $0x130] sm:$0xff] %v2866
        %2931 = vst [vmem:[#allocation2 + $0x138] sm:$0xff] %v2867
        %2932 = vst [vmem:[#allocation2 + $0x140] sm:$0xff] %v2868
        %2933 = vst [vmem:[#allocation2 + $0x148] sm:$0xff] %v2869
        %2934 = vst [vmem:[#allocation2 + $0x150] sm:$0xff] %v2870
        %2935 = vst [vmem:[#allocation2 + $0x158] sm:$0xff] %v2871
        %2936 = vst [vmem:[#allocation2 + $0x160] sm:$0xff] %v2872
        %2937 = vst [vmem:[#allocation2 + $0x168] sm:$0xff] %v2873
        %2938 = vst [vmem:[#allocation2 + $0x170] sm:$0xff] %v2874
        %2939 = vst [vmem:[#allocation2 + $0x178] sm:$0xff] %v2875
        %2940 = vst [vmem:[#allocation2 + $0x180] sm:$0xff] %v2876
        %2941 = vst [vmem:[#allocation2 + $0x188] sm:$0xff] %v2877
        %2942 = vst [vmem:[#allocation2 + $0x190] sm:$0xff] %v2878
        %2943 = vst [vmem:[#allocation2 + $0x198] sm:$0xff] %v2879
        %2944 = vst [vmem:[#allocation2 + $0x1a0] sm:$0xff] %v2880
        %2945 = vst [vmem:[#allocation2 + $0x1a8] sm:$0xff] %v2881
        %2946 = vst [vmem:[#allocation2 + $0x1b0] sm:$0xff] %v2882
        %2947 = vst [vmem:[#allocation2 + $0x1b8] sm:$0xff] %v2883
        %2948 = vst [vmem:[#allocation2 + $0x1c0] sm:$0xff] %v2884
        %2949 = vst [vmem:[#allocation2 + $0x1c8] sm:$0xff] %v2885
        %2950 = vst [vmem:[#allocation2 + $0x1d0] sm:$0xff] %v2886
        %2951 = vst [vmem:[#allocation2 + $0x1d8] sm:$0xff] %v2887
        %2952 = vst [vmem:[#allocation2 + $0x1e0] sm:$0xff] %v2888
        %2953 = vst [vmem:[#allocation2 + $0x1e8] sm:$0xff] %v2889
        %2954 = vst [vmem:[#allocation2 + $0x1f0] sm:$0xff] %v2890
        %2955 = vst [vmem:[#allocation2 + $0x1f8] sm:$0xff] %v2891
        %v2957 = vrot.slane %v191, 5
        %v2958 = vrot.slane %v2957, 4
        %v2959 = vrot.slane %v192, 5
        %v2960 = vsel %vm1503, %v2958, %v2959
        %v2961 = vrot.slane %v2959, 4
        %v2962 = vrot.slane %v193, 5
        %v2963 = vsel %vm1503, %v2961, %v2962
        %s2964 = scalar_lea.vmem %s1, 20
        %v2965 = vld [vmem:[%s2964] sm:$0xf]
        %v2966 = vunpack.c.l.b16 %v2960
        %v2967 = vunpack.c.l.b16 %v2963
        %v2968 = vpack.c.b16 %v2967, %v2966
        %v2971 = vunpack.c.l.s4 1983009808
        %v2972 = vunpack.c.0.s8 %v2971
        %v2973 = vlaneseq
        %v2974 = vshrl.u32 %v2973, 7
        %v2975 = vsub.s32 %v2972, %v2974
        %v2976 = vrot.slane %v2965, %v2975
        %v2977 = vcombine.high %v2976, %v2976
        %v2979 = vsel %vm287, %v2968, 0
        %v2982 = vsel %vm336, %v2976, 0
        %v2985 = vsel %vm336, %v2977, 0
        %2987 = vmatprep.subr.bf16.mxu0 %v2985
        %2988 = vmatpush1.bf16.msra.mxu0 %v2982
        %2989 = vmatprep.subr.bf16.mxu0 0
        %2990 = vmatpush1.bf16.msra.mxu0 0
        %2991 = vmatprep.subr.bf16.mxu0 0
        %2992 = vmatpush1.bf16.msra.mxu0 0
        %2993 = vmatprep.subr.bf16.mxu0 0
        %2994 = vmatpush1.bf16.msra.mxu0 0
        %2995 = vmatprep.subr.bf16.mxu0 0
        %2996 = vmatpush1.bf16.msra.mxu0 0
        %2997 = vmatprep.subr.bf16.mxu0 0
        %2998 = vmatpush1.bf16.msra.mxu0 0
        %2999 = vmatprep.subr.bf16.mxu0 0
        %3000 = vmatpush1.bf16.msra.mxu0 0
        %3001 = vmatprep.subr.bf16.mxu0 0
        %3002 = vmatpush1.bf16.msra.mxu0 0
        %3003 = vmatprep.subr.bf16.mxu0 0
        %3004 = vmatpush1.bf16.msra.mxu0 0
        %3005 = vmatprep.subr.bf16.mxu0 0
        %3006 = vmatpush1.bf16.msra.mxu0 0
        %3007 = vmatprep.subr.bf16.mxu0 0
        %3008 = vmatpush1.bf16.msra.mxu0 0
        %3009 = vmatprep.subr.bf16.mxu0 0
        %3010 = vmatpush1.bf16.msra.mxu0 0
        %3011 = vmatprep.subr.bf16.mxu0 0
        %3012 = vmatpush1.bf16.msra.mxu0 0
        %3013 = vmatprep.subr.bf16.mxu0 0
        %3014 = vmatpush1.bf16.msra.mxu0 0
        %3015 = vmatprep.subr.bf16.mxu0 0
        %3016 = vmatpush1.bf16.msra.mxu0 0
        %3017 = vmatprep.subr.bf16.mxu0 0
        %3018 = vmatpush1.bf16.msra.mxu0 0
        %3019 = vmatprep.mubr.bf16.mxu0 0
        %3020 = vmatmul.mubr.bf16.gmra.mrb[0].mxu0 %v1679
        %v3021 = vpop.f32.mrb[0].mxu0
        %v3022 = vadd.f32 0.0, %v3021
        %v3023 = vpop.f32.mrb[0].mxu0
        %v3024 = vadd.f32 0.0, %v3023
        %v3025 = vpop.f32.mrb[0].mxu0
        %v3026 = vadd.f32 0.0, %v3025
        %v3027 = vpop.f32.mrb[0].mxu0
        %v3028 = vadd.f32 0.0, %v3027
        %3029 = vmatprep.mubr.bf16.mxu0 0
        %3030 = vmatmul.mubr.bf16.gmra.mrb[0].mxu0 %v1682
        %v3031 = vpop.f32.mrb[0].mxu0
        %v3032 = vadd.f32 0.0, %v3031
        %v3033 = vpop.f32.mrb[0].mxu0
        %v3034 = vadd.f32 0.0, %v3033
        %v3035 = vpop.f32.mrb[0].mxu0
        %v3036 = vadd.f32 0.0, %v3035
        %v3037 = vpop.f32.mrb[0].mxu0
        %v3038 = vadd.f32 0.0, %v3037
        %3039 = vmatprep.mubr.bf16.mxu0 0
        %3040 = vmatmul.mubr.bf16.gmra.mrb[0].mxu0 %v1685
        %v3041 = vpop.f32.mrb[0].mxu0
        %v3042 = vadd.f32 0.0, %v3041
        %v3043 = vpop.f32.mrb[0].mxu0
        %v3044 = vadd.f32 0.0, %v3043
        %v3045 = vpop.f32.mrb[0].mxu0
        %v3046 = vadd.f32 0.0, %v3045
        %v3047 = vpop.f32.mrb[0].mxu0
        %v3048 = vadd.f32 0.0, %v3047
        %3049 = vmatprep.mubr.bf16.mxu0 0
        %3050 = vmatmul.mubr.bf16.gmra.mrb[0].mxu0 %v1688
        %v3051 = vpop.f32.mrb[0].mxu0
        %v3052 = vadd.f32 0.0, %v3051
        %v3053 = vpop.f32.mrb[0].mxu0
        %v3054 = vadd.f32 0.0, %v3053
        %v3055 = vpop.f32.mrb[0].mxu0
        %v3056 = vadd.f32 0.0, %v3055
        %v3057 = vpop.f32.mrb[0].mxu0
        %v3058 = vadd.f32 0.0, %v3057
        %3059 = vmatprep.mubr.bf16.mxu0 0
        %3060 = vmatmul.mubr.bf16.gmra.mrb[0].mxu0 %v1691
        %v3061 = vpop.f32.mrb[0].mxu0
        %v3062 = vadd.f32 0.0, %v3061
        %v3063 = vpop.f32.mrb[0].mxu0
        %v3064 = vadd.f32 0.0, %v3063
        %v3065 = vpop.f32.mrb[0].mxu0
        %v3066 = vadd.f32 0.0, %v3065
        %v3067 = vpop.f32.mrb[0].mxu0
        %v3068 = vadd.f32 0.0, %v3067
        %3069 = vmatprep.mubr.bf16.mxu0 0
        %3070 = vmatmul.mubr.bf16.gmra.mrb[0].mxu0 %v1694
        %v3071 = vpop.f32.mrb[0].mxu0
        %v3072 = vadd.f32 0.0, %v3071
        %v3073 = vpop.f32.mrb[0].mxu0
        %v3074 = vadd.f32 0.0, %v3073
        %v3075 = vpop.f32.mrb[0].mxu0
        %v3076 = vadd.f32 0.0, %v3075
        %v3077 = vpop.f32.mrb[0].mxu0
        %v3078 = vadd.f32 0.0, %v3077
        %3079 = vmatprep.mubr.bf16.mxu0 0
        %3080 = vmatmul.mubr.bf16.gmra.mrb[0].mxu0 %v1697
        %v3081 = vpop.f32.mrb[0].mxu0
        %v3082 = vadd.f32 0.0, %v3081
        %v3083 = vpop.f32.mrb[0].mxu0
        %v3084 = vadd.f32 0.0, %v3083
        %v3085 = vpop.f32.mrb[0].mxu0
        %v3086 = vadd.f32 0.0, %v3085
        %v3087 = vpop.f32.mrb[0].mxu0
        %v3088 = vadd.f32 0.0, %v3087
        %3089 = vmatprep.mubr.bf16.mxu0 0
        %3090 = vmatmul.mubr.bf16.gmra.mrb[0].mxu0 %v1700
        %v3091 = vpop.f32.mrb[0].mxu0
        %v3092 = vadd.f32 0.0, %v3091
        %v3093 = vpop.f32.mrb[0].mxu0
        %v3094 = vadd.f32 0.0, %v3093
        %v3095 = vpop.f32.mrb[0].mxu0
        %v3096 = vadd.f32 0.0, %v3095
        %v3097 = vpop.f32.mrb[0].mxu0
        %v3098 = vadd.f32 0.0, %v3097
        %3099 = vmatprep.mubr.bf16.mxu0 0
        %3100 = vmatmul.mubr.bf16.gmra.mrb[0].mxu0 %v1703
        %v3101 = vpop.f32.mrb[0].mxu0
        %v3102 = vadd.f32 0.0, %v3101
        %v3103 = vpop.f32.mrb[0].mxu0
        %v3104 = vadd.f32 0.0, %v3103
        %v3105 = vpop.f32.mrb[0].mxu0
        %v3106 = vadd.f32 0.0, %v3105
        %v3107 = vpop.f32.mrb[0].mxu0
        %v3108 = vadd.f32 0.0, %v3107
        %3109 = vmatprep.mubr.bf16.mxu0 0
        %3110 = vmatmul.mubr.bf16.gmra.mrb[0].mxu0 %v1706
        %v3111 = vpop.f32.mrb[0].mxu0
        %v3112 = vadd.f32 0.0, %v3111
        %v3113 = vpop.f32.mrb[0].mxu0
        %v3114 = vadd.f32 0.0, %v3113
        %v3115 = vpop.f32.mrb[0].mxu0
        %v3116 = vadd.f32 0.0, %v3115
        %v3117 = vpop.f32.mrb[0].mxu0
        %v3118 = vadd.f32 0.0, %v3117
        %3119 = vmatprep.mubr.bf16.mxu0 0
        %3120 = vmatmul.mubr.bf16.gmra.mrb[0].mxu0 %v1709
        %v3121 = vpop.f32.mrb[0].mxu0
        %v3122 = vadd.f32 0.0, %v3121
        %v3123 = vpop.f32.mrb[0].mxu0
        %v3124 = vadd.f32 0.0, %v3123
        %v3125 = vpop.f32.mrb[0].mxu0
        %v3126 = vadd.f32 0.0, %v3125
        %v3127 = vpop.f32.mrb[0].mxu0
        %v3128 = vadd.f32 0.0, %v3127
        %3129 = vmatprep.mubr.bf16.mxu0 0
        %3130 = vmatmul.mubr.bf16.gmra.mrb[0].mxu0 %v1712
        %v3131 = vpop.f32.mrb[0].mxu0
        %v3132 = vadd.f32 0.0, %v3131
        %v3133 = vpop.f32.mrb[0].mxu0
        %v3134 = vadd.f32 0.0, %v3133
        %v3135 = vpop.f32.mrb[0].mxu0
        %v3136 = vadd.f32 0.0, %v3135
        %v3137 = vpop.f32.mrb[0].mxu0
        %v3138 = vadd.f32 0.0, %v3137
        %3139 = vmatprep.mubr.bf16.mxu0 0
        %3140 = vmatmul.mubr.bf16.gmra.mrb[0].mxu0 %v1715
        %v3141 = vpop.f32.mrb[0].mxu0
        %v3142 = vadd.f32 0.0, %v3141
        %v3143 = vpop.f32.mrb[0].mxu0
        %v3144 = vadd.f32 0.0, %v3143
        %v3145 = vpop.f32.mrb[0].mxu0
        %v3146 = vadd.f32 0.0, %v3145
        %v3147 = vpop.f32.mrb[0].mxu0
        %v3148 = vadd.f32 0.0, %v3147
        %3149 = vmatprep.mubr.bf16.mxu0 0
        %3150 = vmatmul.mubr.bf16.gmra.mrb[0].mxu0 %v1718
        %v3151 = vpop.f32.mrb[0].mxu0
        %v3152 = vadd.f32 0.0, %v3151
        %v3153 = vpop.f32.mrb[0].mxu0
        %v3154 = vadd.f32 0.0, %v3153
        %v3155 = vpop.f32.mrb[0].mxu0
        %v3156 = vadd.f32 0.0, %v3155
        %v3157 = vpop.f32.mrb[0].mxu0
        %v3158 = vadd.f32 0.0, %v3157
        %3159 = vmatprep.mubr.bf16.mxu0 0
        %3160 = vmatmul.mubr.bf16.gmra.mrb[0].mxu0 %v1721
        %v3161 = vpop.f32.mrb[0].mxu0
        %v3162 = vadd.f32 0.0, %v3161
        %v3163 = vpop.f32.mrb[0].mxu0
        %v3164 = vadd.f32 0.0, %v3163
        %v3165 = vpop.f32.mrb[0].mxu0
        %v3166 = vadd.f32 0.0, %v3165
        %v3167 = vpop.f32.mrb[0].mxu0
        %v3168 = vadd.f32 0.0, %v3167
        %3169 = vmatprep.mubr.bf16.mxu0 0
        %3170 = vmatmul.mubr.bf16.gmra.mrb[0].mxu0 %v2979
        %v3171 = vpop.f32.mrb[0].mxu0
        %v3172 = vadd.f32 0.0, %v3171
        %v3173 = vpop.f32.mrb[0].mxu0
        %v3174 = vadd.f32 0.0, %v3173
        %v3175 = vpop.f32.mrb[0].mxu0
        %v3176 = vadd.f32 0.0, %v3175
        %v3177 = vpop.f32.mrb[0].mxu0
        %v3178 = vadd.f32 0.0, %v3177
        %3179 = vdwg.mxu0
        %v3180 = vld [vmem:[#allocation2] sm:$0xff]
        %v3181 = vld [vmem:[#allocation2 + $0x8] sm:$0xff]
        %v3182 = vld [vmem:[#allocation2 + $0x10] sm:$0xff]
        %v3183 = vld [vmem:[#allocation2 + $0x18] sm:$0xff]
        %v3184 = vld [vmem:[#allocation2 + $0x20] sm:$0xff]
        %v3185 = vld [vmem:[#allocation2 + $0x28] sm:$0xff]
        %v3186 = vld [vmem:[#allocation2 + $0x30] sm:$0xff]
        %v3187 = vld [vmem:[#allocation2 + $0x38] sm:$0xff]
        %v3188 = vld [vmem:[#allocation2 + $0x40] sm:$0xff]
        %v3189 = vld [vmem:[#allocation2 + $0x48] sm:$0xff]
        %v3190 = vld [vmem:[#allocation2 + $0x50] sm:$0xff]
        %v3191 = vld [vmem:[#allocation2 + $0x58] sm:$0xff]
        %v3192 = vld [vmem:[#allocation2 + $0x60] sm:$0xff]
        %v3193 = vld [vmem:[#allocation2 + $0x68] sm:$0xff]
        %v3194 = vld [vmem:[#allocation2 + $0x70] sm:$0xff]
        %v3195 = vld [vmem:[#allocation2 + $0x78] sm:$0xff]
        %v3196 = vld [vmem:[#allocation2 + $0x80] sm:$0xff]
        %v3197 = vld [vmem:[#allocation2 + $0x88] sm:$0xff]
        %v3198 = vld [vmem:[#allocation2 + $0x90] sm:$0xff]
        %v3199 = vld [vmem:[#allocation2 + $0x98] sm:$0xff]
        %v3200 = vld [vmem:[#allocation2 + $0xa0] sm:$0xff]
        %v3201 = vld [vmem:[#allocation2 + $0xa8] sm:$0xff]
        %v3202 = vld [vmem:[#allocation2 + $0xb0] sm:$0xff]
        %v3203 = vld [vmem:[#allocation2 + $0xb8] sm:$0xff]
        %v3204 = vld [vmem:[#allocation2 + $0xc0] sm:$0xff]
        %v3205 = vld [vmem:[#allocation2 + $0xc8] sm:$0xff]
        %v3206 = vld [vmem:[#allocation2 + $0xd0] sm:$0xff]
        %v3207 = vld [vmem:[#allocation2 + $0xd8] sm:$0xff]
        %v3208 = vld [vmem:[#allocation2 + $0xe0] sm:$0xff]
        %v3209 = vld [vmem:[#allocation2 + $0xe8] sm:$0xff]
        %v3210 = vld [vmem:[#allocation2 + $0xf0] sm:$0xff]
        %v3211 = vld [vmem:[#allocation2 + $0xf8] sm:$0xff]
        %v3212 = vld [vmem:[#allocation2 + $0x100] sm:$0xff]
        %v3213 = vld [vmem:[#allocation2 + $0x108] sm:$0xff]
        %v3214 = vld [vmem:[#allocation2 + $0x110] sm:$0xff]
        %v3215 = vld [vmem:[#allocation2 + $0x118] sm:$0xff]
        %v3216 = vld [vmem:[#allocation2 + $0x120] sm:$0xff]
        %v3217 = vld [vmem:[#allocation2 + $0x128] sm:$0xff]
        %v3218 = vld [vmem:[#allocation2 + $0x130] sm:$0xff]
        %v3219 = vld [vmem:[#allocation2 + $0x138] sm:$0xff]
        %v3220 = vld [vmem:[#allocation2 + $0x140] sm:$0xff]
        %v3221 = vld [vmem:[#allocation2 + $0x148] sm:$0xff]
        %v3222 = vld [vmem:[#allocation2 + $0x150] sm:$0xff]
        %v3223 = vld [vmem:[#allocation2 + $0x158] sm:$0xff]
        %v3224 = vld [vmem:[#allocation2 + $0x160] sm:$0xff]
        %v3225 = vld [vmem:[#allocation2 + $0x168] sm:$0xff]
        %v3226 = vld [vmem:[#allocation2 + $0x170] sm:$0xff]
        %v3227 = vld [vmem:[#allocation2 + $0x178] sm:$0xff]
        %v3228 = vld [vmem:[#allocation2 + $0x180] sm:$0xff]
        %v3229 = vld [vmem:[#allocation2 + $0x188] sm:$0xff]
        %v3230 = vld [vmem:[#allocation2 + $0x190] sm:$0xff]
        %v3231 = vld [vmem:[#allocation2 + $0x198] sm:$0xff]
        %v3232 = vld [vmem:[#allocation2 + $0x1a0] sm:$0xff]
        %v3233 = vld [vmem:[#allocation2 + $0x1a8] sm:$0xff]
        %v3234 = vld [vmem:[#allocation2 + $0x1b0] sm:$0xff]
        %v3235 = vld [vmem:[#allocation2 + $0x1b8] sm:$0xff]
        %v3236 = vld [vmem:[#allocation2 + $0x1c0] sm:$0xff]
        %v3237 = vld [vmem:[#allocation2 + $0x1c8] sm:$0xff]
        %v3238 = vld [vmem:[#allocation2 + $0x1d0] sm:$0xff]
        %v3239 = vld [vmem:[#allocation2 + $0x1d8] sm:$0xff]
        %v3240 = vld [vmem:[#allocation2 + $0x1e0] sm:$0xff]
        %v3241 = vld [vmem:[#allocation2 + $0x1e8] sm:$0xff]
        %v3242 = vld [vmem:[#allocation2 + $0x1f0] sm:$0xff]
        %v3243 = vld [vmem:[#allocation2 + $0x1f8] sm:$0xff]
        %v3244 = vadd.f32 %v3180, %v3022
        %v3245 = vadd.f32 %v3181, %v3024
        %v3246 = vadd.f32 %v3182, %v3026
        %v3247 = vadd.f32 %v3183, %v3028
        %v3248 = vadd.f32 %v3184, %v3032
        %v3249 = vadd.f32 %v3185, %v3034
        %v3250 = vadd.f32 %v3186, %v3036
        %v3251 = vadd.f32 %v3187, %v3038
        %v3252 = vadd.f32 %v3188, %v3042
        %v3253 = vadd.f32 %v3189, %v3044
        %v3254 = vadd.f32 %v3190, %v3046
        %v3255 = vadd.f32 %v3191, %v3048
        %v3256 = vadd.f32 %v3192, %v3052
        %v3257 = vadd.f32 %v3193, %v3054
        %v3258 = vadd.f32 %v3194, %v3056
        %v3259 = vadd.f32 %v3195, %v3058
        %v3260 = vadd.f32 %v3196, %v3062
        %v3261 = vadd.f32 %v3197, %v3064
        %v3262 = vadd.f32 %v3198, %v3066
        %v3263 = vadd.f32 %v3199, %v3068
        %v3264 = vadd.f32 %v3200, %v3072
        %v3265 = vadd.f32 %v3201, %v3074
        %v3266 = vadd.f32 %v3202, %v3076
        %v3267 = vadd.f32 %v3203, %v3078
        %v3268 = vadd.f32 %v3204, %v3082
        %v3269 = vadd.f32 %v3205, %v3084
        %v3270 = vadd.f32 %v3206, %v3086
        %v3271 = vadd.f32 %v3207, %v3088
        %v3272 = vadd.f32 %v3208, %v3092
        %v3273 = vadd.f32 %v3209, %v3094
        %v3274 = vadd.f32 %v3210, %v3096
        %v3275 = vadd.f32 %v3211, %v3098
        %v3276 = vadd.f32 %v3212, %v3102
        %v3277 = vadd.f32 %v3213, %v3104
        %v3278 = vadd.f32 %v3214, %v3106
        %v3279 = vadd.f32 %v3215, %v3108
        %v3280 = vadd.f32 %v3216, %v3112
        %v3281 = vadd.f32 %v3217, %v3114
        %v3282 = vadd.f32 %v3218, %v3116
        %v3283 = vadd.f32 %v3219, %v3118
        %v3284 = vadd.f32 %v3220, %v3122
        %v3285 = vadd.f32 %v3221, %v3124
        %v3286 = vadd.f32 %v3222, %v3126
        %v3287 = vadd.f32 %v3223, %v3128
        %v3288 = vadd.f32 %v3224, %v3132
        %v3289 = vadd.f32 %v3225, %v3134
        %v3290 = vadd.f32 %v3226, %v3136
        %v3291 = vadd.f32 %v3227, %v3138
        %v3292 = vadd.f32 %v3228, %v3142
        %v3293 = vadd.f32 %v3229, %v3144
        %v3294 = vadd.f32 %v3230, %v3146
        %v3295 = vadd.f32 %v3231, %v3148
        %v3296 = vadd.f32 %v3232, %v3152
        %v3297 = vadd.f32 %v3233, %v3154
        %v3298 = vadd.f32 %v3234, %v3156
        %v3299 = vadd.f32 %v3235, %v3158
        %v3300 = vadd.f32 %v3236, %v3162
        %v3301 = vadd.f32 %v3237, %v3164
        %v3302 = vadd.f32 %v3238, %v3166
        %v3303 = vadd.f32 %v3239, %v3168
        %v3304 = vadd.f32 %v3240, %v3172
        %v3305 = vadd.f32 %v3241, %v3174
        %v3306 = vadd.f32 %v3242, %v3176
        %v3307 = vadd.f32 %v3243, %v3178
        %3308 = vst [vmem:[#allocation2] sm:$0xff] %v3244
        %3309 = vst [vmem:[#allocation2 + $0x8] sm:$0xff] %v3245
        %3310 = vst [vmem:[#allocation2 + $0x10] sm:$0xff] %v3246
        %3311 = vst [vmem:[#allocation2 + $0x18] sm:$0xff] %v3247
        %3312 = vst [vmem:[#allocation2 + $0x20] sm:$0xff] %v3248
        %3313 = vst [vmem:[#allocation2 + $0x28] sm:$0xff] %v3249
        %3314 = vst [vmem:[#allocation2 + $0x30] sm:$0xff] %v3250
        %3315 = vst [vmem:[#allocation2 + $0x38] sm:$0xff] %v3251
        %3316 = vst [vmem:[#allocation2 + $0x40] sm:$0xff] %v3252
        %3317 = vst [vmem:[#allocation2 + $0x48] sm:$0xff] %v3253
        %3318 = vst [vmem:[#allocation2 + $0x50] sm:$0xff] %v3254
        %3319 = vst [vmem:[#allocation2 + $0x58] sm:$0xff] %v3255
        %3320 = vst [vmem:[#allocation2 + $0x60] sm:$0xff] %v3256
        %3321 = vst [vmem:[#allocation2 + $0x68] sm:$0xff] %v3257
        %3322 = vst [vmem:[#allocation2 + $0x70] sm:$0xff] %v3258
        %3323 = vst [vmem:[#allocation2 + $0x78] sm:$0xff] %v3259
        %3324 = vst [vmem:[#allocation2 + $0x80] sm:$0xff] %v3260
        %3325 = vst [vmem:[#allocation2 + $0x88] sm:$0xff] %v3261
        %3326 = vst [vmem:[#allocation2 + $0x90] sm:$0xff] %v3262
        %3327 = vst [vmem:[#allocation2 + $0x98] sm:$0xff] %v3263
        %3328 = vst [vmem:[#allocation2 + $0xa0] sm:$0xff] %v3264
        %3329 = vst [vmem:[#allocation2 + $0xa8] sm:$0xff] %v3265
        %3330 = vst [vmem:[#allocation2 + $0xb0] sm:$0xff] %v3266
        %3331 = vst [vmem:[#allocation2 + $0xb8] sm:$0xff] %v3267
        %3332 = vst [vmem:[#allocation2 + $0xc0] sm:$0xff] %v3268
        %3333 = vst [vmem:[#allocation2 + $0xc8] sm:$0xff] %v3269
        %3334 = vst [vmem:[#allocation2 + $0xd0] sm:$0xff] %v3270
        %3335 = vst [vmem:[#allocation2 + $0xd8] sm:$0xff] %v3271
        %3336 = vst [vmem:[#allocation2 + $0xe0] sm:$0xff] %v3272
        %3337 = vst [vmem:[#allocation2 + $0xe8] sm:$0xff] %v3273
        %3338 = vst [vmem:[#allocation2 + $0xf0] sm:$0xff] %v3274
        %3339 = vst [vmem:[#allocation2 + $0xf8] sm:$0xff] %v3275
        %3340 = vst [vmem:[#allocation2 + $0x100] sm:$0xff] %v3276
        %3341 = vst [vmem:[#allocation2 + $0x108] sm:$0xff] %v3277
        %3342 = vst [vmem:[#allocation2 + $0x110] sm:$0xff] %v3278
        %3343 = vst [vmem:[#allocation2 + $0x118] sm:$0xff] %v3279
        %3344 = vst [vmem:[#allocation2 + $0x120] sm:$0xff] %v3280
        %3345 = vst [vmem:[#allocation2 + $0x128] sm:$0xff] %v3281
        %3346 = vst [vmem:[#allocation2 + $0x130] sm:$0xff] %v3282
        %3347 = vst [vmem:[#allocation2 + $0x138] sm:$0xff] %v3283
        %3348 = vst [vmem:[#allocation2 + $0x140] sm:$0xff] %v3284
        %3349 = vst [vmem:[#allocation2 + $0x148] sm:$0xff] %v3285
        %3350 = vst [vmem:[#allocation2 + $0x150] sm:$0xff] %v3286
        %3351 = vst [vmem:[#allocation2 + $0x158] sm:$0xff] %v3287
        %3352 = vst [vmem:[#allocation2 + $0x160] sm:$0xff] %v3288
        %3353 = vst [vmem:[#allocation2 + $0x168] sm:$0xff] %v3289
        %3354 = vst [vmem:[#allocation2 + $0x170] sm:$0xff] %v3290
        %3355 = vst [vmem:[#allocation2 + $0x178] sm:$0xff] %v3291
        %3356 = vst [vmem:[#allocation2 + $0x180] sm:$0xff] %v3292
        %3357 = vst [vmem:[#allocation2 + $0x188] sm:$0xff] %v3293
        %3358 = vst [vmem:[#allocation2 + $0x190] sm:$0xff] %v3294
        %3359 = vst [vmem:[#allocation2 + $0x198] sm:$0xff] %v3295
        %3360 = vst [vmem:[#allocation2 + $0x1a0] sm:$0xff] %v3296
        %3361 = vst [vmem:[#allocation2 + $0x1a8] sm:$0xff] %v3297
        %3362 = vst [vmem:[#allocation2 + $0x1b0] sm:$0xff] %v3298
        %3363 = vst [vmem:[#allocation2 + $0x1b8] sm:$0xff] %v3299
        %3364 = vst [vmem:[#allocation2 + $0x1c0] sm:$0xff] %v3300
        %3365 = vst [vmem:[#allocation2 + $0x1c8] sm:$0xff] %v3301
        %3366 = vst [vmem:[#allocation2 + $0x1d0] sm:$0xff] %v3302
        %3367 = vst [vmem:[#allocation2 + $0x1d8] sm:$0xff] %v3303
        %3368 = vst [vmem:[#allocation2 + $0x1e0] sm:$0xff] %v3304
        %3369 = vst [vmem:[#allocation2 + $0x1e8] sm:$0xff] %v3305
        %3370 = vst [vmem:[#allocation2 + $0x1f0] sm:$0xff] %v3306
        %3371 = vst [vmem:[#allocation2 + $0x1f8] sm:$0xff] %v3307
        %s3372 = scalar_lea.vmem %s1, 24
        %v3373 = vld [vmem:[%s3372] sm:$0xf]
        %v3376 = vunpack.c.l.b16 %v194
        %v3377 = vunpack.c.l.b16 %v195
        %v3378 = vpack.c.b16 %v3377, %v3376
        %v3381 = vunpack.c.l.s4 1983009808
        %v3382 = vunpack.c.0.s8 %v3381
        %v3383 = vlaneseq
        %v3384 = vshrl.u32 %v3383, 7
        %v3385 = vsub.s32 %v3382, %v3384
        %v3386 = vrot.slane %v3373, %v3385
        %v3387 = vcombine.high %v3386, %v3386
        %v3389 = vsel %vm287, %v3378, 0
        %v3392 = vsel %vm336, %v3386, 0
        %v3395 = vsel %vm336, %v3387, 0
        %3397 = vmatprep.subr.bf16.mxu0 %v3395
        %3398 = vmatpush1.bf16.msra.mxu0 %v3392
        %3399 = vmatprep.subr.bf16.mxu0 0
        %3400 = vmatpush1.bf16.msra.mxu0 0
        %3401 = vmatprep.subr.bf16.mxu0 0
        %3402 = vmatpush1.bf16.msra.mxu0 0
        %3403 = vmatprep.subr.bf16.mxu0 0
        %3404 = vmatpush1.bf16.msra.mxu0 0
        %3405 = vmatprep.subr.bf16.mxu0 0
        %3406 = vmatpush1.bf16.msra.mxu0 0
        %3407 = vmatprep.subr.bf16.mxu0 0
        %3408 = vmatpush1.bf16.msra.mxu0 0
        %3409 = vmatprep.subr.bf16.mxu0 0
        %3410 = vmatpush1.bf16.msra.mxu0 0
        %3411 = vmatprep.subr.bf16.mxu0 0
        %3412 = vmatpush1.bf16.msra.mxu0 0
        %3413 = vmatprep.subr.bf16.mxu0 0
        %3414 = vmatpush1.bf16.msra.mxu0 0
        %3415 = vmatprep.subr.bf16.mxu0 0
        %3416 = vmatpush1.bf16.msra.mxu0 0
        %3417 = vmatprep.subr.bf16.mxu0 0
        %3418 = vmatpush1.bf16.msra.mxu0 0
        %3419 = vmatprep.subr.bf16.mxu0 0
        %3420 = vmatpush1.bf16.msra.mxu0 0
        %3421 = vmatprep.subr.bf16.mxu0 0
        %3422 = vmatpush1.bf16.msra.mxu0 0
        %3423 = vmatprep.subr.bf16.mxu0 0
        %3424 = vmatpush1.bf16.msra.mxu0 0
        %3425 = vmatprep.subr.bf16.mxu0 0
        %3426 = vmatpush1.bf16.msra.mxu0 0
        %3427 = vmatprep.subr.bf16.mxu0 0
        %3428 = vmatpush1.bf16.msra.mxu0 0
        %3429 = vmatprep.mubr.bf16.mxu0 0
        %3430 = vmatmul.mubr.bf16.gmra.mrb[0].mxu0 %v295
        %v3431 = vpop.f32.mrb[0].mxu0
        %v3432 = vadd.f32 0.0, %v3431
        %v3433 = vpop.f32.mrb[0].mxu0
        %v3434 = vadd.f32 0.0, %v3433
        %v3435 = vpop.f32.mrb[0].mxu0
        %v3436 = vadd.f32 0.0, %v3435
        %v3437 = vpop.f32.mrb[0].mxu0
        %v3438 = vadd.f32 0.0, %v3437
        %3439 = vmatprep.mubr.bf16.mxu0 0
        %3440 = vmatmul.mubr.bf16.gmra.mrb[0].mxu0 %v298
        %v3441 = vpop.f32.mrb[0].mxu0
        %v3442 = vadd.f32 0.0, %v3441
        %v3443 = vpop.f32.mrb[0].mxu0
        %v3444 = vadd.f32 0.0, %v3443
        %v3445 = vpop.f32.mrb[0].mxu0
        %v3446 = vadd.f32 0.0, %v3445
        %v3447 = vpop.f32.mrb[0].mxu0
        %v3448 = vadd.f32 0.0, %v3447
        %3449 = vmatprep.mubr.bf16.mxu0 0
        %3450 = vmatmul.mubr.bf16.gmra.mrb[0].mxu0 %v301
        %v3451 = vpop.f32.mrb[0].mxu0
        %v3452 = vadd.f32 0.0, %v3451
        %v3453 = vpop.f32.mrb[0].mxu0
        %v3454 = vadd.f32 0.0, %v3453
        %v3455 = vpop.f32.mrb[0].mxu0
        %v3456 = vadd.f32 0.0, %v3455
        %v3457 = vpop.f32.mrb[0].mxu0
        %v3458 = vadd.f32 0.0, %v3457
        %3459 = vmatprep.mubr.bf16.mxu0 0
        %3460 = vmatmul.mubr.bf16.gmra.mrb[0].mxu0 %v304
        %v3461 = vpop.f32.mrb[0].mxu0
        %v3462 = vadd.f32 0.0, %v3461
        %v3463 = vpop.f32.mrb[0].mxu0
        %v3464 = vadd.f32 0.0, %v3463
        %v3465 = vpop.f32.mrb[0].mxu0
        %v3466 = vadd.f32 0.0, %v3465
        %v3467 = vpop.f32.mrb[0].mxu0
        %v3468 = vadd.f32 0.0, %v3467
        %3469 = vmatprep.mubr.bf16.mxu0 0
        %3470 = vmatmul.mubr.bf16.gmra.mrb[0].mxu0 %v307
        %v3471 = vpop.f32.mrb[0].mxu0
        %v3472 = vadd.f32 0.0, %v3471
        %v3473 = vpop.f32.mrb[0].mxu0
        %v3474 = vadd.f32 0.0, %v3473
        %v3475 = vpop.f32.mrb[0].mxu0
        %v3476 = vadd.f32 0.0, %v3475
        %v3477 = vpop.f32.mrb[0].mxu0
        %v3478 = vadd.f32 0.0, %v3477
        %3479 = vmatprep.mubr.bf16.mxu0 0
        %3480 = vmatmul.mubr.bf16.gmra.mrb[0].mxu0 %v310
        %v3481 = vpop.f32.mrb[0].mxu0
        %v3482 = vadd.f32 0.0, %v3481
        %v3483 = vpop.f32.mrb[0].mxu0
        %v3484 = vadd.f32 0.0, %v3483
        %v3485 = vpop.f32.mrb[0].mxu0
        %v3486 = vadd.f32 0.0, %v3485
        %v3487 = vpop.f32.mrb[0].mxu0
        %v3488 = vadd.f32 0.0, %v3487
        %3489 = vmatprep.mubr.bf16.mxu0 0
        %3490 = vmatmul.mubr.bf16.gmra.mrb[0].mxu0 %v313
        %v3491 = vpop.f32.mrb[0].mxu0
        %v3492 = vadd.f32 0.0, %v3491
        %v3493 = vpop.f32.mrb[0].mxu0
        %v3494 = vadd.f32 0.0, %v3493
        %v3495 = vpop.f32.mrb[0].mxu0
        %v3496 = vadd.f32 0.0, %v3495
        %v3497 = vpop.f32.mrb[0].mxu0
        %v3498 = vadd.f32 0.0, %v3497
        %3499 = vmatprep.mubr.bf16.mxu0 0
        %3500 = vmatmul.mubr.bf16.gmra.mrb[0].mxu0 %v316
        %v3501 = vpop.f32.mrb[0].mxu0
        %v3502 = vadd.f32 0.0, %v3501
        %v3503 = vpop.f32.mrb[0].mxu0
        %v3504 = vadd.f32 0.0, %v3503
        %v3505 = vpop.f32.mrb[0].mxu0
        %v3506 = vadd.f32 0.0, %v3505
        %v3507 = vpop.f32.mrb[0].mxu0
        %v3508 = vadd.f32 0.0, %v3507
        %3509 = vmatprep.mubr.bf16.mxu0 0
        %3510 = vmatmul.mubr.bf16.gmra.mrb[0].mxu0 %v319
        %v3511 = vpop.f32.mrb[0].mxu0
        %v3512 = vadd.f32 0.0, %v3511
        %v3513 = vpop.f32.mrb[0].mxu0
        %v3514 = vadd.f32 0.0, %v3513
        %v3515 = vpop.f32.mrb[0].mxu0
        %v3516 = vadd.f32 0.0, %v3515
        %v3517 = vpop.f32.mrb[0].mxu0
        %v3518 = vadd.f32 0.0, %v3517
        %3519 = vmatprep.mubr.bf16.mxu0 0
        %3520 = vmatmul.mubr.bf16.gmra.mrb[0].mxu0 %v322
        %v3521 = vpop.f32.mrb[0].mxu0
        %v3522 = vadd.f32 0.0, %v3521
        %v3523 = vpop.f32.mrb[0].mxu0
        %v3524 = vadd.f32 0.0, %v3523
        %v3525 = vpop.f32.mrb[0].mxu0
        %v3526 = vadd.f32 0.0, %v3525
        %v3527 = vpop.f32.mrb[0].mxu0
        %v3528 = vadd.f32 0.0, %v3527
        %3529 = vmatprep.mubr.bf16.mxu0 0
        %3530 = vmatmul.mubr.bf16.gmra.mrb[0].mxu0 %v325
        %v3531 = vpop.f32.mrb[0].mxu0
        %v3532 = vadd.f32 0.0, %v3531
        %v3533 = vpop.f32.mrb[0].mxu0
        %v3534 = vadd.f32 0.0, %v3533
        %v3535 = vpop.f32.mrb[0].mxu0
        %v3536 = vadd.f32 0.0, %v3535
        %v3537 = vpop.f32.mrb[0].mxu0
        %v3538 = vadd.f32 0.0, %v3537
        %3539 = vmatprep.mubr.bf16.mxu0 0
        %3540 = vmatmul.mubr.bf16.gmra.mrb[0].mxu0 %v328
        %v3541 = vpop.f32.mrb[0].mxu0
        %v3542 = vadd.f32 0.0, %v3541
        %v3543 = vpop.f32.mrb[0].mxu0
        %v3544 = vadd.f32 0.0, %v3543
        %v3545 = vpop.f32.mrb[0].mxu0
        %v3546 = vadd.f32 0.0, %v3545
        %v3547 = vpop.f32.mrb[0].mxu0
        %v3548 = vadd.f32 0.0, %v3547
        %3549 = vmatprep.mubr.bf16.mxu0 0
        %3550 = vmatmul.mubr.bf16.gmra.mrb[0].mxu0 %v331
        %v3551 = vpop.f32.mrb[0].mxu0
        %v3552 = vadd.f32 0.0, %v3551
        %v3553 = vpop.f32.mrb[0].mxu0
        %v3554 = vadd.f32 0.0, %v3553
        %v3555 = vpop.f32.mrb[0].mxu0
        %v3556 = vadd.f32 0.0, %v3555
        %v3557 = vpop.f32.mrb[0].mxu0
        %v3558 = vadd.f32 0.0, %v3557
        %3559 = vmatprep.mubr.bf16.mxu0 0
        %3560 = vmatmul.mubr.bf16.gmra.mrb[0].mxu0 %v334
        %v3561 = vpop.f32.mrb[0].mxu0
        %v3562 = vadd.f32 0.0, %v3561
        %v3563 = vpop.f32.mrb[0].mxu0
        %v3564 = vadd.f32 0.0, %v3563
        %v3565 = vpop.f32.mrb[0].mxu0
        %v3566 = vadd.f32 0.0, %v3565
        %v3567 = vpop.f32.mrb[0].mxu0
        %v3568 = vadd.f32 0.0, %v3567
        %3569 = vmatprep.mubr.bf16.mxu0 0
        %3570 = vmatmul.mubr.bf16.gmra.mrb[0].mxu0 %v2131
        %v3571 = vpop.f32.mrb[0].mxu0
        %v3572 = vadd.f32 0.0, %v3571
        %v3573 = vpop.f32.mrb[0].mxu0
        %v3574 = vadd.f32 0.0, %v3573
        %v3575 = vpop.f32.mrb[0].mxu0
        %v3576 = vadd.f32 0.0, %v3575
        %v3577 = vpop.f32.mrb[0].mxu0
        %v3578 = vadd.f32 0.0, %v3577
        %3579 = vmatprep.mubr.bf16.mxu0 0
        %3580 = vmatmul.mubr.bf16.gmra.mrb[0].mxu0 %v3389
        %v3581 = vpop.f32.mrb[0].mxu0
        %v3582 = vadd.f32 0.0, %v3581
        %v3583 = vpop.f32.mrb[0].mxu0
        %v3584 = vadd.f32 0.0, %v3583
        %v3585 = vpop.f32.mrb[0].mxu0
        %v3586 = vadd.f32 0.0, %v3585
        %v3587 = vpop.f32.mrb[0].mxu0
        %v3588 = vadd.f32 0.0, %v3587
        %3589 = vdwg.mxu0
        %v3590 = vld [vmem:[#allocation2] sm:$0xff]
        %v3591 = vld [vmem:[#allocation2 + $0x8] sm:$0xff]
        %v3592 = vld [vmem:[#allocation2 + $0x10] sm:$0xff]
        %v3593 = vld [vmem:[#allocation2 + $0x18] sm:$0xff]
        %v3594 = vld [vmem:[#allocation2 + $0x20] sm:$0xff]
        %v3595 = vld [vmem:[#allocation2 + $0x28] sm:$0xff]
        %v3596 = vld [vmem:[#allocation2 + $0x30] sm:$0xff]
        %v3597 = vld [vmem:[#allocation2 + $0x38] sm:$0xff]
        %v3598 = vld [vmem:[#allocation2 + $0x40] sm:$0xff]
        %v3599 = vld [vmem:[#allocation2 + $0x48] sm:$0xff]
        %v3600 = vld [vmem:[#allocation2 + $0x50] sm:$0xff]
        %v3601 = vld [vmem:[#allocation2 + $0x58] sm:$0xff]
        %v3602 = vld [vmem:[#allocation2 + $0x60] sm:$0xff]
        %v3603 = vld [vmem:[#allocation2 + $0x68] sm:$0xff]
        %v3604 = vld [vmem:[#allocation2 + $0x70] sm:$0xff]
        %v3605 = vld [vmem:[#allocation2 + $0x78] sm:$0xff]
        %v3606 = vld [vmem:[#allocation2 + $0x80] sm:$0xff]
        %v3607 = vld [vmem:[#allocation2 + $0x88] sm:$0xff]
        %v3608 = vld [vmem:[#allocation2 + $0x90] sm:$0xff]
        %v3609 = vld [vmem:[#allocation2 + $0x98] sm:$0xff]
        %v3610 = vld [vmem:[#allocation2 + $0xa0] sm:$0xff]
        %v3611 = vld [vmem:[#allocation2 + $0xa8] sm:$0xff]
        %v3612 = vld [vmem:[#allocation2 + $0xb0] sm:$0xff]
        %v3613 = vld [vmem:[#allocation2 + $0xb8] sm:$0xff]
        %v3614 = vld [vmem:[#allocation2 + $0xc0] sm:$0xff]
        %v3615 = vld [vmem:[#allocation2 + $0xc8] sm:$0xff]
        %v3616 = vld [vmem:[#allocation2 + $0xd0] sm:$0xff]
        %v3617 = vld [vmem:[#allocation2 + $0xd8] sm:$0xff]
        %v3618 = vld [vmem:[#allocation2 + $0xe0] sm:$0xff]
        %v3619 = vld [vmem:[#allocation2 + $0xe8] sm:$0xff]
        %v3620 = vld [vmem:[#allocation2 + $0xf0] sm:$0xff]
        %v3621 = vld [vmem:[#allocation2 + $0xf8] sm:$0xff]
        %v3622 = vld [vmem:[#allocation2 + $0x100] sm:$0xff]
        %v3623 = vld [vmem:[#allocation2 + $0x108] sm:$0xff]
        %v3624 = vld [vmem:[#allocation2 + $0x110] sm:$0xff]
        %v3625 = vld [vmem:[#allocation2 + $0x118] sm:$0xff]
        %v3626 = vld [vmem:[#allocation2 + $0x120] sm:$0xff]
        %v3627 = vld [vmem:[#allocation2 + $0x128] sm:$0xff]
        %v3628 = vld [vmem:[#allocation2 + $0x130] sm:$0xff]
        %v3629 = vld [vmem:[#allocation2 + $0x138] sm:$0xff]
        %v3630 = vld [vmem:[#allocation2 + $0x140] sm:$0xff]
        %v3631 = vld [vmem:[#allocation2 + $0x148] sm:$0xff]
        %v3632 = vld [vmem:[#allocation2 + $0x150] sm:$0xff]
        %v3633 = vld [vmem:[#allocation2 + $0x158] sm:$0xff]
        %v3634 = vld [vmem:[#allocation2 + $0x160] sm:$0xff]
        %v3635 = vld [vmem:[#allocation2 + $0x168] sm:$0xff]
        %v3636 = vld [vmem:[#allocation2 + $0x170] sm:$0xff]
        %v3637 = vld [vmem:[#allocation2 + $0x178] sm:$0xff]
        %v3638 = vld [vmem:[#allocation2 + $0x180] sm:$0xff]
        %v3639 = vld [vmem:[#allocation2 + $0x188] sm:$0xff]
        %v3640 = vld [vmem:[#allocation2 + $0x190] sm:$0xff]
        %v3641 = vld [vmem:[#allocation2 + $0x198] sm:$0xff]
        %v3642 = vld [vmem:[#allocation2 + $0x1a0] sm:$0xff]
        %v3643 = vld [vmem:[#allocation2 + $0x1a8] sm:$0xff]
        %v3644 = vld [vmem:[#allocation2 + $0x1b0] sm:$0xff]
        %v3645 = vld [vmem:[#allocation2 + $0x1b8] sm:$0xff]
        %v3646 = vld [vmem:[#allocation2 + $0x1c0] sm:$0xff]
        %v3647 = vld [vmem:[#allocation2 + $0x1c8] sm:$0xff]
        %v3648 = vld [vmem:[#allocation2 + $0x1d0] sm:$0xff]
        %v3649 = vld [vmem:[#allocation2 + $0x1d8] sm:$0xff]
        %v3650 = vld [vmem:[#allocation2 + $0x1e0] sm:$0xff]
        %v3651 = vld [vmem:[#allocation2 + $0x1e8] sm:$0xff]
        %v3652 = vld [vmem:[#allocation2 + $0x1f0] sm:$0xff]
        %v3653 = vld [vmem:[#allocation2 + $0x1f8] sm:$0xff]
        %v3654 = vadd.f32 %v3590, %v3432
        %v3655 = vadd.f32 %v3591, %v3434
        %v3656 = vadd.f32 %v3592, %v3436
        %v3657 = vadd.f32 %v3593, %v3438
        %v3658 = vadd.f32 %v3594, %v3442
        %v3659 = vadd.f32 %v3595, %v3444
        %v3660 = vadd.f32 %v3596, %v3446
        %v3661 = vadd.f32 %v3597, %v3448
        %v3662 = vadd.f32 %v3598, %v3452
        %v3663 = vadd.f32 %v3599, %v3454
        %v3664 = vadd.f32 %v3600, %v3456
        %v3665 = vadd.f32 %v3601, %v3458
        %v3666 = vadd.f32 %v3602, %v3462
        %v3667 = vadd.f32 %v3603, %v3464
        %v3668 = vadd.f32 %v3604, %v3466
        %v3669 = vadd.f32 %v3605, %v3468
        %v3670 = vadd.f32 %v3606, %v3472
        %v3671 = vadd.f32 %v3607, %v3474
        %v3672 = vadd.f32 %v3608, %v3476
        %v3673 = vadd.f32 %v3609, %v3478
        %v3674 = vadd.f32 %v3610, %v3482
        %v3675 = vadd.f32 %v3611, %v3484
        %v3676 = vadd.f32 %v3612, %v3486
        %v3677 = vadd.f32 %v3613, %v3488
        %v3678 = vadd.f32 %v3614, %v3492
        %v3679 = vadd.f32 %v3615, %v3494
        %v3680 = vadd.f32 %v3616, %v3496
        %v3681 = vadd.f32 %v3617, %v3498
        %v3682 = vadd.f32 %v3618, %v3502
        %v3683 = vadd.f32 %v3619, %v3504
        %v3684 = vadd.f32 %v3620, %v3506
        %v3685 = vadd.f32 %v3621, %v3508
        %v3686 = vadd.f32 %v3622, %v3512
        %v3687 = vadd.f32 %v3623, %v3514
        %v3688 = vadd.f32 %v3624, %v3516
        %v3689 = vadd.f32 %v3625, %v3518
        %v3690 = vadd.f32 %v3626, %v3522
        %v3691 = vadd.f32 %v3627, %v3524
        %v3692 = vadd.f32 %v3628, %v3526
        %v3693 = vadd.f32 %v3629, %v3528
        %v3694 = vadd.f32 %v3630, %v3532
        %v3695 = vadd.f32 %v3631, %v3534
        %v3696 = vadd.f32 %v3632, %v3536
        %v3697 = vadd.f32 %v3633, %v3538
        %v3698 = vadd.f32 %v3634, %v3542
        %v3699 = vadd.f32 %v3635, %v3544
        %v3700 = vadd.f32 %v3636, %v3546
        %v3701 = vadd.f32 %v3637, %v3548
        %v3702 = vadd.f32 %v3638, %v3552
        %v3703 = vadd.f32 %v3639, %v3554
        %v3704 = vadd.f32 %v3640, %v3556
        %v3705 = vadd.f32 %v3641, %v3558
        %v3706 = vadd.f32 %v3642, %v3562
        %v3707 = vadd.f32 %v3643, %v3564
        %v3708 = vadd.f32 %v3644, %v3566
        %v3709 = vadd.f32 %v3645, %v3568
        %v3710 = vadd.f32 %v3646, %v3572
        %v3711 = vadd.f32 %v3647, %v3574
        %v3712 = vadd.f32 %v3648, %v3576
        %v3713 = vadd.f32 %v3649, %v3578
        %v3714 = vadd.f32 %v3650, %v3582
        %v3715 = vadd.f32 %v3651, %v3584
        %v3716 = vadd.f32 %v3652, %v3586
        %v3717 = vadd.f32 %v3653, %v3588
        %3718 = vst [vmem:[#allocation2] sm:$0xff] %v3654
        %3719 = vst [vmem:[#allocation2 + $0x8] sm:$0xff] %v3655
        %3720 = vst [vmem:[#allocation2 + $0x10] sm:$0xff] %v3656
        %3721 = vst [vmem:[#allocation2 + $0x18] sm:$0xff] %v3657
        %3722 = vst [vmem:[#allocation2 + $0x20] sm:$0xff] %v3658
        %3723 = vst [vmem:[#allocation2 + $0x28] sm:$0xff] %v3659
        %3724 = vst [vmem:[#allocation2 + $0x30] sm:$0xff] %v3660
        %3725 = vst [vmem:[#allocation2 + $0x38] sm:$0xff] %v3661
        %3726 = vst [vmem:[#allocation2 + $0x40] sm:$0xff] %v3662
        %3727 = vst [vmem:[#allocation2 + $0x48] sm:$0xff] %v3663
        %3728 = vst [vmem:[#allocation2 + $0x50] sm:$0xff] %v3664
        %3729 = vst [vmem:[#allocation2 + $0x58] sm:$0xff] %v3665
        %3730 = vst [vmem:[#allocation2 + $0x60] sm:$0xff] %v3666
        %3731 = vst [vmem:[#allocation2 + $0x68] sm:$0xff] %v3667
        %3732 = vst [vmem:[#allocation2 + $0x70] sm:$0xff] %v3668
        %3733 = vst [vmem:[#allocation2 + $0x78] sm:$0xff] %v3669
        %3734 = vst [vmem:[#allocation2 + $0x80] sm:$0xff] %v3670
        %3735 = vst [vmem:[#allocation2 + $0x88] sm:$0xff] %v3671
        %3736 = vst [vmem:[#allocation2 + $0x90] sm:$0xff] %v3672
        %3737 = vst [vmem:[#allocation2 + $0x98] sm:$0xff] %v3673
        %3738 = vst [vmem:[#allocation2 + $0xa0] sm:$0xff] %v3674
        %3739 = vst [vmem:[#allocation2 + $0xa8] sm:$0xff] %v3675
        %3740 = vst [vmem:[#allocation2 + $0xb0] sm:$0xff] %v3676
        %3741 = vst [vmem:[#allocation2 + $0xb8] sm:$0xff] %v3677
        %3742 = vst [vmem:[#allocation2 + $0xc0] sm:$0xff] %v3678
        %3743 = vst [vmem:[#allocation2 + $0xc8] sm:$0xff] %v3679
        %3744 = vst [vmem:[#allocation2 + $0xd0] sm:$0xff] %v3680
        %3745 = vst [vmem:[#allocation2 + $0xd8] sm:$0xff] %v3681
        %3746 = vst [vmem:[#allocation2 + $0xe0] sm:$0xff] %v3682
        %3747 = vst [vmem:[#allocation2 + $0xe8] sm:$0xff] %v3683
        %3748 = vst [vmem:[#allocation2 + $0xf0] sm:$0xff] %v3684
        %3749 = vst [vmem:[#allocation2 + $0xf8] sm:$0xff] %v3685
        %3750 = vst [vmem:[#allocation2 + $0x100] sm:$0xff] %v3686
        %3751 = vst [vmem:[#allocation2 + $0x108] sm:$0xff] %v3687
        %3752 = vst [vmem:[#allocation2 + $0x110] sm:$0xff] %v3688
        %3753 = vst [vmem:[#allocation2 + $0x118] sm:$0xff] %v3689
        %3754 = vst [vmem:[#allocation2 + $0x120] sm:$0xff] %v3690
        %3755 = vst [vmem:[#allocation2 + $0x128] sm:$0xff] %v3691
        %3756 = vst [vmem:[#allocation2 + $0x130] sm:$0xff] %v3692
        %3757 = vst [vmem:[#allocation2 + $0x138] sm:$0xff] %v3693
        %3758 = vst [vmem:[#allocation2 + $0x140] sm:$0xff] %v3694
        %3759 = vst [vmem:[#allocation2 + $0x148] sm:$0xff] %v3695
        %3760 = vst [vmem:[#allocation2 + $0x150] sm:$0xff] %v3696
        %3761 = vst [vmem:[#allocation2 + $0x158] sm:$0xff] %v3697
        %3762 = vst [vmem:[#allocation2 + $0x160] sm:$0xff] %v3698
        %3763 = vst [vmem:[#allocation2 + $0x168] sm:$0xff] %v3699
        %3764 = vst [vmem:[#allocation2 + $0x170] sm:$0xff] %v3700
        %3765 = vst [vmem:[#allocation2 + $0x178] sm:$0xff] %v3701
        %3766 = vst [vmem:[#allocation2 + $0x180] sm:$0xff] %v3702
        %3767 = vst [vmem:[#allocation2 + $0x188] sm:$0xff] %v3703
        %3768 = vst [vmem:[#allocation2 + $0x190] sm:$0xff] %v3704
        %3769 = vst [vmem:[#allocation2 + $0x198] sm:$0xff] %v3705
        %3770 = vst [vmem:[#allocation2 + $0x1a0] sm:$0xff] %v3706
        %3771 = vst [vmem:[#allocation2 + $0x1a8] sm:$0xff] %v3707
        %3772 = vst [vmem:[#allocation2 + $0x1b0] sm:$0xff] %v3708
        %3773 = vst [vmem:[#allocation2 + $0x1b8] sm:$0xff] %v3709
        %3774 = vst [vmem:[#allocation2 + $0x1c0] sm:$0xff] %v3710
        %3775 = vst [vmem:[#allocation2 + $0x1c8] sm:$0xff] %v3711
        %3776 = vst [vmem:[#allocation2 + $0x1d0] sm:$0xff] %v3712
        %3777 = vst [vmem:[#allocation2 + $0x1d8] sm:$0xff] %v3713
        %3778 = vst [vmem:[#allocation2 + $0x1e0] sm:$0xff] %v3714
        %3779 = vst [vmem:[#allocation2 + $0x1e8] sm:$0xff] %v3715
        %3780 = vst [vmem:[#allocation2 + $0x1f0] sm:$0xff] %v3716
        %3781 = vst [vmem:[#allocation2 + $0x1f8] sm:$0xff] %v3717
        %v3783 = vshrl.u32 %v194, 16
        %v3785 = vrot.slane %v3783, 4
        %v3786 = vshll.u32 %v194, 16
        %v3788 = vrot.slane %v3786, 5
        %v3789 = vor.u32 %v3785, %v3788
        %v3790 = vrot.slane %v3789, 4
        %v3792 = vshll.u32 %v195, 16
        %v3794 = vrot.slane %v3792, 5
        %v3795 = vsel %vm602, %v3790, %v3794
        %v3796 = vshrl.u32 %v195, 16
        %v3798 = vrot.slane %v3796, 4
        %v3799 = vor.u32 %v3798, %v3794
        %v3800 = vrot.slane %v3799, 4
        %v3802 = vshll.u32 %v196, 16
        %v3804 = vrot.slane %v3802, 5
        %v3805 = vsel %vm602, %v3800, %v3804
        %s3806 = scalar_lea.vmem %s1, 28
        %v3807 = vld [vmem:[%s3806] sm:$0xf]
        %v3808 = vunpack.c.l.b16 %v3795
        %v3809 = vunpack.c.l.b16 %v3805
        %v3810 = vpack.c.b16 %v3809, %v3808
        %v3813 = vunpack.c.l.s4 1983009808
        %v3814 = vunpack.c.0.s8 %v3813
        %v3815 = vlaneseq
        %v3816 = vshrl.u32 %v3815, 7
        %v3817 = vsub.s32 %v3814, %v3816
        %v3818 = vrot.slane %v3807, %v3817
        %v3819 = vcombine.high %v3818, %v3818
        %v3821 = vsel %vm287, %v3810, 0
        %v3824 = vsel %vm336, %v3818, 0
        %v3827 = vsel %vm336, %v3819, 0
        %3829 = vmatprep.subr.bf16.mxu0 %v3827
        %3830 = vmatpush1.bf16.msra.mxu0 %v3824
        %3831 = vmatprep.subr.bf16.mxu0 0
        %3832 = vmatpush1.bf16.msra.mxu0 0
        %3833 = vmatprep.subr.bf16.mxu0 0
        %3834 = vmatpush1.bf16.msra.mxu0 0
        %3835 = vmatprep.subr.bf16.mxu0 0
        %3836 = vmatpush1.bf16.msra.mxu0 0
        %3837 = vmatprep.subr.bf16.mxu0 0
        %3838 = vmatpush1.bf16.msra.mxu0 0
        %3839 = vmatprep.subr.bf16.mxu0 0
        %3840 = vmatpush1.bf16.msra.mxu0 0
        %3841 = vmatprep.subr.bf16.mxu0 0
        %3842 = vmatpush1.bf16.msra.mxu0 0
        %3843 = vmatprep.subr.bf16.mxu0 0
        %3844 = vmatpush1.bf16.msra.mxu0 0
        %3845 = vmatprep.subr.bf16.mxu0 0
        %3846 = vmatpush1.bf16.msra.mxu0 0
        %3847 = vmatprep.subr.bf16.mxu0 0
        %3848 = vmatpush1.bf16.msra.mxu0 0
        %3849 = vmatprep.subr.bf16.mxu0 0
        %3850 = vmatpush1.bf16.msra.mxu0 0
        %3851 = vmatprep.subr.bf16.mxu0 0
        %3852 = vmatpush1.bf16.msra.mxu0 0
        %3853 = vmatprep.subr.bf16.mxu0 0
        %3854 = vmatpush1.bf16.msra.mxu0 0
        %3855 = vmatprep.subr.bf16.mxu0 0
        %3856 = vmatpush1.bf16.msra.mxu0 0
        %3857 = vmatprep.subr.bf16.mxu0 0
        %3858 = vmatpush1.bf16.msra.mxu0 0
        %3859 = vmatprep.subr.bf16.mxu0 0
        %3860 = vmatpush1.bf16.msra.mxu0 0
        %3861 = vmatprep.mubr.bf16.mxu0 0
        %3862 = vmatmul.mubr.bf16.gmra.mrb[0].mxu0 %v1053
        %v3863 = vpop.f32.mrb[0].mxu0
        %v3864 = vadd.f32 0.0, %v3863
        %v3865 = vpop.f32.mrb[0].mxu0
        %v3866 = vadd.f32 0.0, %v3865
        %v3867 = vpop.f32.mrb[0].mxu0
        %v3868 = vadd.f32 0.0, %v3867
        %v3869 = vpop.f32.mrb[0].mxu0
        %v3870 = vadd.f32 0.0, %v3869
        %3871 = vmatprep.mubr.bf16.mxu0 0
        %3872 = vmatmul.mubr.bf16.gmra.mrb[0].mxu0 %v1056
        %v3873 = vpop.f32.mrb[0].mxu0
        %v3874 = vadd.f32 0.0, %v3873
        %v3875 = vpop.f32.mrb[0].mxu0
        %v3876 = vadd.f32 0.0, %v3875
        %v3877 = vpop.f32.mrb[0].mxu0
        %v3878 = vadd.f32 0.0, %v3877
        %v3879 = vpop.f32.mrb[0].mxu0
        %v3880 = vadd.f32 0.0, %v3879
        %3881 = vmatprep.mubr.bf16.mxu0 0
        %3882 = vmatmul.mubr.bf16.gmra.mrb[0].mxu0 %v1059
        %v3883 = vpop.f32.mrb[0].mxu0
        %v3884 = vadd.f32 0.0, %v3883
        %v3885 = vpop.f32.mrb[0].mxu0
        %v3886 = vadd.f32 0.0, %v3885
        %v3887 = vpop.f32.mrb[0].mxu0
        %v3888 = vadd.f32 0.0, %v3887
        %v3889 = vpop.f32.mrb[0].mxu0
        %v3890 = vadd.f32 0.0, %v3889
        %3891 = vmatprep.mubr.bf16.mxu0 0
        %3892 = vmatmul.mubr.bf16.gmra.mrb[0].mxu0 %v1062
        %v3893 = vpop.f32.mrb[0].mxu0
        %v3894 = vadd.f32 0.0, %v3893
        %v3895 = vpop.f32.mrb[0].mxu0
        %v3896 = vadd.f32 0.0, %v3895
        %v3897 = vpop.f32.mrb[0].mxu0
        %v3898 = vadd.f32 0.0, %v3897
        %v3899 = vpop.f32.mrb[0].mxu0
        %v3900 = vadd.f32 0.0, %v3899
        %3901 = vmatprep.mubr.bf16.mxu0 0
        %3902 = vmatmul.mubr.bf16.gmra.mrb[0].mxu0 %v1065
        %v3903 = vpop.f32.mrb[0].mxu0
        %v3904 = vadd.f32 0.0, %v3903
        %v3905 = vpop.f32.mrb[0].mxu0
        %v3906 = vadd.f32 0.0, %v3905
        %v3907 = vpop.f32.mrb[0].mxu0
        %v3908 = vadd.f32 0.0, %v3907
        %v3909 = vpop.f32.mrb[0].mxu0
        %v3910 = vadd.f32 0.0, %v3909
        %3911 = vmatprep.mubr.bf16.mxu0 0
        %3912 = vmatmul.mubr.bf16.gmra.mrb[0].mxu0 %v1068
        %v3913 = vpop.f32.mrb[0].mxu0
        %v3914 = vadd.f32 0.0, %v3913
        %v3915 = vpop.f32.mrb[0].mxu0
        %v3916 = vadd.f32 0.0, %v3915
        %v3917 = vpop.f32.mrb[0].mxu0
        %v3918 = vadd.f32 0.0, %v3917
        %v3919 = vpop.f32.mrb[0].mxu0
        %v3920 = vadd.f32 0.0, %v3919
        %3921 = vmatprep.mubr.bf16.mxu0 0
        %3922 = vmatmul.mubr.bf16.gmra.mrb[0].mxu0 %v1071
        %v3923 = vpop.f32.mrb[0].mxu0
        %v3924 = vadd.f32 0.0, %v3923
        %v3925 = vpop.f32.mrb[0].mxu0
        %v3926 = vadd.f32 0.0, %v3925
        %v3927 = vpop.f32.mrb[0].mxu0
        %v3928 = vadd.f32 0.0, %v3927
        %v3929 = vpop.f32.mrb[0].mxu0
        %v3930 = vadd.f32 0.0, %v3929
        %3931 = vmatprep.mubr.bf16.mxu0 0
        %3932 = vmatmul.mubr.bf16.gmra.mrb[0].mxu0 %v1074
        %v3933 = vpop.f32.mrb[0].mxu0
        %v3934 = vadd.f32 0.0, %v3933
        %v3935 = vpop.f32.mrb[0].mxu0
        %v3936 = vadd.f32 0.0, %v3935
        %v3937 = vpop.f32.mrb[0].mxu0
        %v3938 = vadd.f32 0.0, %v3937
        %v3939 = vpop.f32.mrb[0].mxu0
        %v3940 = vadd.f32 0.0, %v3939
        %3941 = vmatprep.mubr.bf16.mxu0 0
        %3942 = vmatmul.mubr.bf16.gmra.mrb[0].mxu0 %v1077
        %v3943 = vpop.f32.mrb[0].mxu0
        %v3944 = vadd.f32 0.0, %v3943
        %v3945 = vpop.f32.mrb[0].mxu0
        %v3946 = vadd.f32 0.0, %v3945
        %v3947 = vpop.f32.mrb[0].mxu0
        %v3948 = vadd.f32 0.0, %v3947
        %v3949 = vpop.f32.mrb[0].mxu0
        %v3950 = vadd.f32 0.0, %v3949
        %3951 = vmatprep.mubr.bf16.mxu0 0
        %3952 = vmatmul.mubr.bf16.gmra.mrb[0].mxu0 %v1080
        %v3953 = vpop.f32.mrb[0].mxu0
        %v3954 = vadd.f32 0.0, %v3953
        %v3955 = vpop.f32.mrb[0].mxu0
        %v3956 = vadd.f32 0.0, %v3955
        %v3957 = vpop.f32.mrb[0].mxu0
        %v3958 = vadd.f32 0.0, %v3957
        %v3959 = vpop.f32.mrb[0].mxu0
        %v3960 = vadd.f32 0.0, %v3959
        %3961 = vmatprep.mubr.bf16.mxu0 0
        %3962 = vmatmul.mubr.bf16.gmra.mrb[0].mxu0 %v1083
        %v3963 = vpop.f32.mrb[0].mxu0
        %v3964 = vadd.f32 0.0, %v3963
        %v3965 = vpop.f32.mrb[0].mxu0
        %v3966 = vadd.f32 0.0, %v3965
        %v3967 = vpop.f32.mrb[0].mxu0
        %v3968 = vadd.f32 0.0, %v3967
        %v3969 = vpop.f32.mrb[0].mxu0
        %v3970 = vadd.f32 0.0, %v3969
        %3971 = vmatprep.mubr.bf16.mxu0 0
        %3972 = vmatmul.mubr.bf16.gmra.mrb[0].mxu0 %v1086
        %v3973 = vpop.f32.mrb[0].mxu0
        %v3974 = vadd.f32 0.0, %v3973
        %v3975 = vpop.f32.mrb[0].mxu0
        %v3976 = vadd.f32 0.0, %v3975
        %v3977 = vpop.f32.mrb[0].mxu0
        %v3978 = vadd.f32 0.0, %v3977
        %v3979 = vpop.f32.mrb[0].mxu0
        %v3980 = vadd.f32 0.0, %v3979
        %3981 = vmatprep.mubr.bf16.mxu0 0
        %3982 = vmatmul.mubr.bf16.gmra.mrb[0].mxu0 %v1089
        %v3983 = vpop.f32.mrb[0].mxu0
        %v3984 = vadd.f32 0.0, %v3983
        %v3985 = vpop.f32.mrb[0].mxu0
        %v3986 = vadd.f32 0.0, %v3985
        %v3987 = vpop.f32.mrb[0].mxu0
        %v3988 = vadd.f32 0.0, %v3987
        %v3989 = vpop.f32.mrb[0].mxu0
        %v3990 = vadd.f32 0.0, %v3989
        %3991 = vmatprep.mubr.bf16.mxu0 0
        %3992 = vmatmul.mubr.bf16.gmra.mrb[0].mxu0 %v1092
        %v3993 = vpop.f32.mrb[0].mxu0
        %v3994 = vadd.f32 0.0, %v3993
        %v3995 = vpop.f32.mrb[0].mxu0
        %v3996 = vadd.f32 0.0, %v3995
        %v3997 = vpop.f32.mrb[0].mxu0
        %v3998 = vadd.f32 0.0, %v3997
        %v3999 = vpop.f32.mrb[0].mxu0
        %v4000 = vadd.f32 0.0, %v3999
        %4001 = vmatprep.mubr.bf16.mxu0 0
        %4002 = vmatmul.mubr.bf16.gmra.mrb[0].mxu0 %v2563
        %v4003 = vpop.f32.mrb[0].mxu0
        %v4004 = vadd.f32 0.0, %v4003
        %v4005 = vpop.f32.mrb[0].mxu0
        %v4006 = vadd.f32 0.0, %v4005
        %v4007 = vpop.f32.mrb[0].mxu0
        %v4008 = vadd.f32 0.0, %v4007
        %v4009 = vpop.f32.mrb[0].mxu0
        %v4010 = vadd.f32 0.0, %v4009
        %4011 = vmatprep.mubr.bf16.mxu0 0
        %4012 = vmatmul.mubr.bf16.gmra.mrb[0].mxu0 %v3821
        %v4013 = vpop.f32.mrb[0].mxu0
        %v4014 = vadd.f32 0.0, %v4013
        %v4015 = vpop.f32.mrb[0].mxu0
        %v4016 = vadd.f32 0.0, %v4015
        %v4017 = vpop.f32.mrb[0].mxu0
        %v4018 = vadd.f32 0.0, %v4017
        %v4019 = vpop.f32.mrb[0].mxu0
        %v4020 = vadd.f32 0.0, %v4019
        %4021 = vdwg.mxu0
        %v4022 = vld [vmem:[#allocation2] sm:$0xff]
        %v4023 = vld [vmem:[#allocation2 + $0x8] sm:$0xff]
        %v4024 = vld [vmem:[#allocation2 + $0x10] sm:$0xff]
        %v4025 = vld [vmem:[#allocation2 + $0x18] sm:$0xff]
        %v4026 = vld [vmem:[#allocation2 + $0x20] sm:$0xff]
        %v4027 = vld [vmem:[#allocation2 + $0x28] sm:$0xff]
        %v4028 = vld [vmem:[#allocation2 + $0x30] sm:$0xff]
        %v4029 = vld [vmem:[#allocation2 + $0x38] sm:$0xff]
        %v4030 = vld [vmem:[#allocation2 + $0x40] sm:$0xff]
        %v4031 = vld [vmem:[#allocation2 + $0x48] sm:$0xff]
        %v4032 = vld [vmem:[#allocation2 + $0x50] sm:$0xff]
        %v4033 = vld [vmem:[#allocation2 + $0x58] sm:$0xff]
        %v4034 = vld [vmem:[#allocation2 + $0x60] sm:$0xff]
        %v4035 = vld [vmem:[#allocation2 + $0x68] sm:$0xff]
        %v4036 = vld [vmem:[#allocation2 + $0x70] sm:$0xff]
        %v4037 = vld [vmem:[#allocation2 + $0x78] sm:$0xff]
        %v4038 = vld [vmem:[#allocation2 + $0x80] sm:$0xff]
        %v4039 = vld [vmem:[#allocation2 + $0x88] sm:$0xff]
        %v4040 = vld [vmem:[#allocation2 + $0x90] sm:$0xff]
        %v4041 = vld [vmem:[#allocation2 + $0x98] sm:$0xff]
        %v4042 = vld [vmem:[#allocation2 + $0xa0] sm:$0xff]
        %v4043 = vld [vmem:[#allocation2 + $0xa8] sm:$0xff]
        %v4044 = vld [vmem:[#allocation2 + $0xb0] sm:$0xff]
        %v4045 = vld [vmem:[#allocation2 + $0xb8] sm:$0xff]
        %v4046 = vld [vmem:[#allocation2 + $0xc0] sm:$0xff]
        %v4047 = vld [vmem:[#allocation2 + $0xc8] sm:$0xff]
        %v4048 = vld [vmem:[#allocation2 + $0xd0] sm:$0xff]
        %v4049 = vld [vmem:[#allocation2 + $0xd8] sm:$0xff]
        %v4050 = vld [vmem:[#allocation2 + $0xe0] sm:$0xff]
        %v4051 = vld [vmem:[#allocation2 + $0xe8] sm:$0xff]
        %v4052 = vld [vmem:[#allocation2 + $0xf0] sm:$0xff]
        %v4053 = vld [vmem:[#allocation2 + $0xf8] sm:$0xff]
        %v4054 = vld [vmem:[#allocation2 + $0x100] sm:$0xff]
        %v4055 = vld [vmem:[#allocation2 + $0x108] sm:$0xff]
        %v4056 = vld [vmem:[#allocation2 + $0x110] sm:$0xff]
        %v4057 = vld [vmem:[#allocation2 + $0x118] sm:$0xff]
        %v4058 = vld [vmem:[#allocation2 + $0x120] sm:$0xff]
        %v4059 = vld [vmem:[#allocation2 + $0x128] sm:$0xff]
        %v4060 = vld [vmem:[#allocation2 + $0x130] sm:$0xff]
        %v4061 = vld [vmem:[#allocation2 + $0x138] sm:$0xff]
        %v4062 = vld [vmem:[#allocation2 + $0x140] sm:$0xff]
        %v4063 = vld [vmem:[#allocation2 + $0x148] sm:$0xff]
        %v4064 = vld [vmem:[#allocation2 + $0x150] sm:$0xff]
        %v4065 = vld [vmem:[#allocation2 + $0x158] sm:$0xff]
        %v4066 = vld [vmem:[#allocation2 + $0x160] sm:$0xff]
        %v4067 = vld [vmem:[#allocation2 + $0x168] sm:$0xff]
        %v4068 = vld [vmem:[#allocation2 + $0x170] sm:$0xff]
        %v4069 = vld [vmem:[#allocation2 + $0x178] sm:$0xff]
        %v4070 = vld [vmem:[#allocation2 + $0x180] sm:$0xff]
        %v4071 = vld [vmem:[#allocation2 + $0x188] sm:$0xff]
        %v4072 = vld [vmem:[#allocation2 + $0x190] sm:$0xff]
        %v4073 = vld [vmem:[#allocation2 + $0x198] sm:$0xff]
        %v4074 = vld [vmem:[#allocation2 + $0x1a0] sm:$0xff]
        %v4075 = vld [vmem:[#allocation2 + $0x1a8] sm:$0xff]
        %v4076 = vld [vmem:[#allocation2 + $0x1b0] sm:$0xff]
        %v4077 = vld [vmem:[#allocation2 + $0x1b8] sm:$0xff]
        %v4078 = vld [vmem:[#allocation2 + $0x1c0] sm:$0xff]
        %v4079 = vld [vmem:[#allocation2 + $0x1c8] sm:$0xff]
        %v4080 = vld [vmem:[#allocation2 + $0x1d0] sm:$0xff]
        %v4081 = vld [vmem:[#allocation2 + $0x1d8] sm:$0xff]
        %v4082 = vld [vmem:[#allocation2 + $0x1e0] sm:$0xff]
        %v4083 = vld [vmem:[#allocation2 + $0x1e8] sm:$0xff]
        %v4084 = vld [vmem:[#allocation2 + $0x1f0] sm:$0xff]
        %v4085 = vld [vmem:[#allocation2 + $0x1f8] sm:$0xff]
        %v4086 = vadd.f32 %v4022, %v3864
        %v4087 = vadd.f32 %v4023, %v3866
        %v4088 = vadd.f32 %v4024, %v3868
        %v4089 = vadd.f32 %v4025, %v3870
        %v4090 = vadd.f32 %v4026, %v3874
        %v4091 = vadd.f32 %v4027, %v3876
        %v4092 = vadd.f32 %v4028, %v3878
        %v4093 = vadd.f32 %v4029, %v3880
        %v4094 = vadd.f32 %v4030, %v3884
        %v4095 = vadd.f32 %v4031, %v3886
        %v4096 = vadd.f32 %v4032, %v3888
        %v4097 = vadd.f32 %v4033, %v3890
        %v4098 = vadd.f32 %v4034, %v3894
        %v4099 = vadd.f32 %v4035, %v3896
        %v4100 = vadd.f32 %v4036, %v3898
        %v4101 = vadd.f32 %v4037, %v3900
        %v4102 = vadd.f32 %v4038, %v3904
        %v4103 = vadd.f32 %v4039, %v3906
        %v4104 = vadd.f32 %v4040, %v3908
        %v4105 = vadd.f32 %v4041, %v3910
        %v4106 = vadd.f32 %v4042, %v3914
        %v4107 = vadd.f32 %v4043, %v3916
        %v4108 = vadd.f32 %v4044, %v3918
        %v4109 = vadd.f32 %v4045, %v3920
        %v4110 = vadd.f32 %v4046, %v3924
        %v4111 = vadd.f32 %v4047, %v3926
        %v4112 = vadd.f32 %v4048, %v3928
        %v4113 = vadd.f32 %v4049, %v3930
        %v4114 = vadd.f32 %v4050, %v3934
        %v4115 = vadd.f32 %v4051, %v3936
        %v4116 = vadd.f32 %v4052, %v3938
        %v4117 = vadd.f32 %v4053, %v3940
        %v4118 = vadd.f32 %v4054, %v3944
        %v4119 = vadd.f32 %v4055, %v3946
        %v4120 = vadd.f32 %v4056, %v3948
        %v4121 = vadd.f32 %v4057, %v3950
        %v4122 = vadd.f32 %v4058, %v3954
        %v4123 = vadd.f32 %v4059, %v3956
        %v4124 = vadd.f32 %v4060, %v3958
        %v4125 = vadd.f32 %v4061, %v3960
        %v4126 = vadd.f32 %v4062, %v3964
        %v4127 = vadd.f32 %v4063, %v3966
        %v4128 = vadd.f32 %v4064, %v3968
        %v4129 = vadd.f32 %v4065, %v3970
        %v4130 = vadd.f32 %v4066, %v3974
        %v4131 = vadd.f32 %v4067, %v3976
        %v4132 = vadd.f32 %v4068, %v3978
        %v4133 = vadd.f32 %v4069, %v3980
        %v4134 = vadd.f32 %v4070, %v3984
        %v4135 = vadd.f32 %v4071, %v3986
        %v4136 = vadd.f32 %v4072, %v3988
        %v4137 = vadd.f32 %v4073, %v3990
        %v4138 = vadd.f32 %v4074, %v3994
        %v4139 = vadd.f32 %v4075, %v3996
        %v4140 = vadd.f32 %v4076, %v3998
        %v4141 = vadd.f32 %v4077, %v4000
        %v4142 = vadd.f32 %v4078, %v4004
        %v4143 = vadd.f32 %v4079, %v4006
        %v4144 = vadd.f32 %v4080, %v4008
        %v4145 = vadd.f32 %v4081, %v4010
        %v4146 = vadd.f32 %v4082, %v4014
        %v4147 = vadd.f32 %v4083, %v4016
        %v4148 = vadd.f32 %v4084, %v4018
        %v4149 = vadd.f32 %v4085, %v4020
        %4150 = vst [vmem:[#allocation2] sm:$0xff] %v4086
        %4151 = vst [vmem:[#allocation2 + $0x8] sm:$0xff] %v4087
        %4152 = vst [vmem:[#allocation2 + $0x10] sm:$0xff] %v4088
        %4153 = vst [vmem:[#allocation2 + $0x18] sm:$0xff] %v4089
        %4154 = vst [vmem:[#allocation2 + $0x20] sm:$0xff] %v4090
        %4155 = vst [vmem:[#allocation2 + $0x28] sm:$0xff] %v4091
        %4156 = vst [vmem:[#allocation2 + $0x30] sm:$0xff] %v4092
        %4157 = vst [vmem:[#allocation2 + $0x38] sm:$0xff] %v4093
        %4158 = vst [vmem:[#allocation2 + $0x40] sm:$0xff] %v4094
        %4159 = vst [vmem:[#allocation2 + $0x48] sm:$0xff] %v4095
        %4160 = vst [vmem:[#allocation2 + $0x50] sm:$0xff] %v4096
        %4161 = vst [vmem:[#allocation2 + $0x58] sm:$0xff] %v4097
        %4162 = vst [vmem:[#allocation2 + $0x60] sm:$0xff] %v4098
        %4163 = vst [vmem:[#allocation2 + $0x68] sm:$0xff] %v4099
        %4164 = vst [vmem:[#allocation2 + $0x70] sm:$0xff] %v4100
        %4165 = vst [vmem:[#allocation2 + $0x78] sm:$0xff] %v4101
        %4166 = vst [vmem:[#allocation2 + $0x80] sm:$0xff] %v4102
        %4167 = vst [vmem:[#allocation2 + $0x88] sm:$0xff] %v4103
        %4168 = vst [vmem:[#allocation2 + $0x90] sm:$0xff] %v4104
        %4169 = vst [vmem:[#allocation2 + $0x98] sm:$0xff] %v4105
        %4170 = vst [vmem:[#allocation2 + $0xa0] sm:$0xff] %v4106
        %4171 = vst [vmem:[#allocation2 + $0xa8] sm:$0xff] %v4107
        %4172 = vst [vmem:[#allocation2 + $0xb0] sm:$0xff] %v4108
        %4173 = vst [vmem:[#allocation2 + $0xb8] sm:$0xff] %v4109
        %4174 = vst [vmem:[#allocation2 + $0xc0] sm:$0xff] %v4110
        %4175 = vst [vmem:[#allocation2 + $0xc8] sm:$0xff] %v4111
        %4176 = vst [vmem:[#allocation2 + $0xd0] sm:$0xff] %v4112
        %4177 = vst [vmem:[#allocation2 + $0xd8] sm:$0xff] %v4113
        %4178 = vst [vmem:[#allocation2 + $0xe0] sm:$0xff] %v4114
        %4179 = vst [vmem:[#allocation2 + $0xe8] sm:$0xff] %v4115
        %4180 = vst [vmem:[#allocation2 + $0xf0] sm:$0xff] %v4116
        %4181 = vst [vmem:[#allocation2 + $0xf8] sm:$0xff] %v4117
        %4182 = vst [vmem:[#allocation2 + $0x100] sm:$0xff] %v4118
        %4183 = vst [vmem:[#allocation2 + $0x108] sm:$0xff] %v4119
        %4184 = vst [vmem:[#allocation2 + $0x110] sm:$0xff] %v4120
        %4185 = vst [vmem:[#allocation2 + $0x118] sm:$0xff] %v4121
        %4186 = vst [vmem:[#allocation2 + $0x120] sm:$0xff] %v4122
        %4187 = vst [vmem:[#allocation2 + $0x128] sm:$0xff] %v4123
        %4188 = vst [vmem:[#allocation2 + $0x130] sm:$0xff] %v4124
        %4189 = vst [vmem:[#allocation2 + $0x138] sm:$0xff] %v4125
        %4190 = vst [vmem:[#allocation2 + $0x140] sm:$0xff] %v4126
        %4191 = vst [vmem:[#allocation2 + $0x148] sm:$0xff] %v4127
        %4192 = vst [vmem:[#allocation2 + $0x150] sm:$0xff] %v4128
        %4193 = vst [vmem:[#allocation2 + $0x158] sm:$0xff] %v4129
        %4194 = vst [vmem:[#allocation2 + $0x160] sm:$0xff] %v4130
        %4195 = vst [vmem:[#allocation2 + $0x168] sm:$0xff] %v4131
        %4196 = vst [vmem:[#allocation2 + $0x170] sm:$0xff] %v4132
        %4197 = vst [vmem:[#allocation2 + $0x178] sm:$0xff] %v4133
        %4198 = vst [vmem:[#allocation2 + $0x180] sm:$0xff] %v4134
        %4199 = vst [vmem:[#allocation2 + $0x188] sm:$0xff] %v4135
        %4200 = vst [vmem:[#allocation2 + $0x190] sm:$0xff] %v4136
        %4201 = vst [vmem:[#allocation2 + $0x198] sm:$0xff] %v4137
        %4202 = vst [vmem:[#allocation2 + $0x1a0] sm:$0xff] %v4138
        %4203 = vst [vmem:[#allocation2 + $0x1a8] sm:$0xff] %v4139
        %4204 = vst [vmem:[#allocation2 + $0x1b0] sm:$0xff] %v4140
        %4205 = vst [vmem:[#allocation2 + $0x1b8] sm:$0xff] %v4141
        %4206 = vst [vmem:[#allocation2 + $0x1c0] sm:$0xff] %v4142
        %4207 = vst [vmem:[#allocation2 + $0x1c8] sm:$0xff] %v4143
        %4208 = vst [vmem:[#allocation2 + $0x1d0] sm:$0xff] %v4144
        %4209 = vst [vmem:[#allocation2 + $0x1d8] sm:$0xff] %v4145
        %4210 = vst [vmem:[#allocation2 + $0x1e0] sm:$0xff] %v4146
        %4211 = vst [vmem:[#allocation2 + $0x1e8] sm:$0xff] %v4147
        %4212 = vst [vmem:[#allocation2 + $0x1f0] sm:$0xff] %v4148
        %4213 = vst [vmem:[#allocation2 + $0x1f8] sm:$0xff] %v4149
        %v4215 = vrot.slane %v194, 5
        %v4216 = vrot.slane %v4215, 4
        %v4217 = vrot.slane %v195, 5
        %v4218 = vsel %vm1503, %v4216, %v4217
        %v4219 = vrot.slane %v4217, 4
        %v4220 = vrot.slane %v196, 5
        %v4221 = vsel %vm1503, %v4219, %v4220
        %s4222 = scalar_lea.vmem %s1, 32
        %v4223 = vld [vmem:[%s4222] sm:$0xf]
        %v4224 = vunpack.c.l.b16 %v4218
        %v4225 = vunpack.c.l.b16 %v4221
        %v4226 = vpack.c.b16 %v4225, %v4224
        %v4229 = vunpack.c.l.s4 1983009808
        %v4230 = vunpack.c.0.s8 %v4229
        %v4231 = vlaneseq
        %v4232 = vshrl.u32 %v4231, 7
        %v4233 = vsub.s32 %v4230, %v4232
        %v4234 = vrot.slane %v4223, %v4233
        %v4235 = vcombine.high %v4234, %v4234
        %v4237 = vsel %vm287, %v4226, 0
        %v4240 = vsel %vm336, %v4234, 0
        %v4243 = vsel %vm336, %v4235, 0
        %4245 = vmatprep.subr.bf16.mxu0 %v4243
        %4246 = vmatpush1.bf16.msra.mxu0 %v4240
        %4247 = vmatprep.subr.bf16.mxu0 0
        %4248 = vmatpush1.bf16.msra.mxu0 0
        %4249 = vmatprep.subr.bf16.mxu0 0
        %4250 = vmatpush1.bf16.msra.mxu0 0
        %4251 = vmatprep.subr.bf16.mxu0 0
        %4252 = vmatpush1.bf16.msra.mxu0 0
        %4253 = vmatprep.subr.bf16.mxu0 0
        %4254 = vmatpush1.bf16.msra.mxu0 0
        %4255 = vmatprep.subr.bf16.mxu0 0
        %4256 = vmatpush1.bf16.msra.mxu0 0
        %4257 = vmatprep.subr.bf16.mxu0 0
        %4258 = vmatpush1.bf16.msra.mxu0 0
        %4259 = vmatprep.subr.bf16.mxu0 0
        %4260 = vmatpush1.bf16.msra.mxu0 0
        %4261 = vmatprep.subr.bf16.mxu0 0
        %4262 = vmatpush1.bf16.msra.mxu0 0
        %4263 = vmatprep.subr.bf16.mxu0 0
        %4264 = vmatpush1.bf16.msra.mxu0 0
        %4265 = vmatprep.subr.bf16.mxu0 0
        %4266 = vmatpush1.bf16.msra.mxu0 0
        %4267 = vmatprep.subr.bf16.mxu0 0
        %4268 = vmatpush1.bf16.msra.mxu0 0
        %4269 = vmatprep.subr.bf16.mxu0 0
        %4270 = vmatpush1.bf16.msra.mxu0 0
        %4271 = vmatprep.subr.bf16.mxu0 0
        %4272 = vmatpush1.bf16.msra.mxu0 0
        %4273 = vmatprep.subr.bf16.mxu0 0
        %4274 = vmatpush1.bf16.msra.mxu0 0
        %4275 = vmatprep.subr.bf16.mxu0 0
        %4276 = vmatpush1.bf16.msra.mxu0 0
        %4277 = vmatprep.mubr.bf16.mxu0 0
        %4278 = vmatmul.mubr.bf16.gmra.mrb[0].mxu0 %v1682
        %v4279 = vpop.f32.mrb[0].mxu0
        %v4280 = vadd.f32 0.0, %v4279
        %v4281 = vpop.f32.mrb[0].mxu0
        %v4282 = vadd.f32 0.0, %v4281
        %v4283 = vpop.f32.mrb[0].mxu0
        %v4284 = vadd.f32 0.0, %v4283
        %v4285 = vpop.f32.mrb[0].mxu0
        %v4286 = vadd.f32 0.0, %v4285
        %4287 = vmatprep.mubr.bf16.mxu0 0
        %4288 = vmatmul.mubr.bf16.gmra.mrb[0].mxu0 %v1685
        %v4289 = vpop.f32.mrb[0].mxu0
        %v4290 = vadd.f32 0.0, %v4289
        %v4291 = vpop.f32.mrb[0].mxu0
        %v4292 = vadd.f32 0.0, %v4291
        %v4293 = vpop.f32.mrb[0].mxu0
        %v4294 = vadd.f32 0.0, %v4293
        %v4295 = vpop.f32.mrb[0].mxu0
        %v4296 = vadd.f32 0.0, %v4295
        %4297 = vmatprep.mubr.bf16.mxu0 0
        %4298 = vmatmul.mubr.bf16.gmra.mrb[0].mxu0 %v1688
        %v4299 = vpop.f32.mrb[0].mxu0
        %v4300 = vadd.f32 0.0, %v4299
        %v4301 = vpop.f32.mrb[0].mxu0
        %v4302 = vadd.f32 0.0, %v4301
        %v4303 = vpop.f32.mrb[0].mxu0
        %v4304 = vadd.f32 0.0, %v4303
        %v4305 = vpop.f32.mrb[0].mxu0
        %v4306 = vadd.f32 0.0, %v4305
        %4307 = vmatprep.mubr.bf16.mxu0 0
        %4308 = vmatmul.mubr.bf16.gmra.mrb[0].mxu0 %v1691
        %v4309 = vpop.f32.mrb[0].mxu0
        %v4310 = vadd.f32 0.0, %v4309
        %v4311 = vpop.f32.mrb[0].mxu0
        %v4312 = vadd.f32 0.0, %v4311
        %v4313 = vpop.f32.mrb[0].mxu0
        %v4314 = vadd.f32 0.0, %v4313
        %v4315 = vpop.f32.mrb[0].mxu0
        %v4316 = vadd.f32 0.0, %v4315
        %4317 = vmatprep.mubr.bf16.mxu0 0
        %4318 = vmatmul.mubr.bf16.gmra.mrb[0].mxu0 %v1694
        %v4319 = vpop.f32.mrb[0].mxu0
        %v4320 = vadd.f32 0.0, %v4319
        %v4321 = vpop.f32.mrb[0].mxu0
        %v4322 = vadd.f32 0.0, %v4321
        %v4323 = vpop.f32.mrb[0].mxu0
        %v4324 = vadd.f32 0.0, %v4323
        %v4325 = vpop.f32.mrb[0].mxu0
        %v4326 = vadd.f32 0.0, %v4325
        %4327 = vmatprep.mubr.bf16.mxu0 0
        %4328 = vmatmul.mubr.bf16.gmra.mrb[0].mxu0 %v1697
        %v4329 = vpop.f32.mrb[0].mxu0
        %v4330 = vadd.f32 0.0, %v4329
        %v4331 = vpop.f32.mrb[0].mxu0
        %v4332 = vadd.f32 0.0, %v4331
        %v4333 = vpop.f32.mrb[0].mxu0
        %v4334 = vadd.f32 0.0, %v4333
        %v4335 = vpop.f32.mrb[0].mxu0
        %v4336 = vadd.f32 0.0, %v4335
        %4337 = vmatprep.mubr.bf16.mxu0 0
        %4338 = vmatmul.mubr.bf16.gmra.mrb[0].mxu0 %v1700
        %v4339 = vpop.f32.mrb[0].mxu0
        %v4340 = vadd.f32 0.0, %v4339
        %v4341 = vpop.f32.mrb[0].mxu0
        %v4342 = vadd.f32 0.0, %v4341
        %v4343 = vpop.f32.mrb[0].mxu0
        %v4344 = vadd.f32 0.0, %v4343
        %v4345 = vpop.f32.mrb[0].mxu0
        %v4346 = vadd.f32 0.0, %v4345
        %4347 = vmatprep.mubr.bf16.mxu0 0
        %4348 = vmatmul.mubr.bf16.gmra.mrb[0].mxu0 %v1703
        %v4349 = vpop.f32.mrb[0].mxu0
        %v4350 = vadd.f32 0.0, %v4349
        %v4351 = vpop.f32.mrb[0].mxu0
        %v4352 = vadd.f32 0.0, %v4351
        %v4353 = vpop.f32.mrb[0].mxu0
        %v4354 = vadd.f32 0.0, %v4353
        %v4355 = vpop.f32.mrb[0].mxu0
        %v4356 = vadd.f32 0.0, %v4355
        %4357 = vmatprep.mubr.bf16.mxu0 0
        %4358 = vmatmul.mubr.bf16.gmra.mrb[0].mxu0 %v1706
        %v4359 = vpop.f32.mrb[0].mxu0
        %v4360 = vadd.f32 0.0, %v4359
        %v4361 = vpop.f32.mrb[0].mxu0
        %v4362 = vadd.f32 0.0, %v4361
        %v4363 = vpop.f32.mrb[0].mxu0
        %v4364 = vadd.f32 0.0, %v4363
        %v4365 = vpop.f32.mrb[0].mxu0
        %v4366 = vadd.f32 0.0, %v4365
        %4367 = vmatprep.mubr.bf16.mxu0 0
        %4368 = vmatmul.mubr.bf16.gmra.mrb[0].mxu0 %v1709
        %v4369 = vpop.f32.mrb[0].mxu0
        %v4370 = vadd.f32 0.0, %v4369
        %v4371 = vpop.f32.mrb[0].mxu0
        %v4372 = vadd.f32 0.0, %v4371
        %v4373 = vpop.f32.mrb[0].mxu0
        %v4374 = vadd.f32 0.0, %v4373
        %v4375 = vpop.f32.mrb[0].mxu0
        %v4376 = vadd.f32 0.0, %v4375
        %4377 = vmatprep.mubr.bf16.mxu0 0
        %4378 = vmatmul.mubr.bf16.gmra.mrb[0].mxu0 %v1712
        %v4379 = vpop.f32.mrb[0].mxu0
        %v4380 = vadd.f32 0.0, %v4379
        %v4381 = vpop.f32.mrb[0].mxu0
        %v4382 = vadd.f32 0.0, %v4381
        %v4383 = vpop.f32.mrb[0].mxu0
        %v4384 = vadd.f32 0.0, %v4383
        %v4385 = vpop.f32.mrb[0].mxu0
        %v4386 = vadd.f32 0.0, %v4385
        %4387 = vmatprep.mubr.bf16.mxu0 0
        %4388 = vmatmul.mubr.bf16.gmra.mrb[0].mxu0 %v1715
        %v4389 = vpop.f32.mrb[0].mxu0
        %v4390 = vadd.f32 0.0, %v4389
        %v4391 = vpop.f32.mrb[0].mxu0
        %v4392 = vadd.f32 0.0, %v4391
        %v4393 = vpop.f32.mrb[0].mxu0
        %v4394 = vadd.f32 0.0, %v4393
        %v4395 = vpop.f32.mrb[0].mxu0
        %v4396 = vadd.f32 0.0, %v4395
        %4397 = vmatprep.mubr.bf16.mxu0 0
        %4398 = vmatmul.mubr.bf16.gmra.mrb[0].mxu0 %v1718
        %v4399 = vpop.f32.mrb[0].mxu0
        %v4400 = vadd.f32 0.0, %v4399
        %v4401 = vpop.f32.mrb[0].mxu0
        %v4402 = vadd.f32 0.0, %v4401
        %v4403 = vpop.f32.mrb[0].mxu0
        %v4404 = vadd.f32 0.0, %v4403
        %v4405 = vpop.f32.mrb[0].mxu0
        %v4406 = vadd.f32 0.0, %v4405
        %4407 = vmatprep.mubr.bf16.mxu0 0
        %4408 = vmatmul.mubr.bf16.gmra.mrb[0].mxu0 %v1721
        %v4409 = vpop.f32.mrb[0].mxu0
        %v4410 = vadd.f32 0.0, %v4409
        %v4411 = vpop.f32.mrb[0].mxu0
        %v4412 = vadd.f32 0.0, %v4411
        %v4413 = vpop.f32.mrb[0].mxu0
        %v4414 = vadd.f32 0.0, %v4413
        %v4415 = vpop.f32.mrb[0].mxu0
        %v4416 = vadd.f32 0.0, %v4415
        %4417 = vmatprep.mubr.bf16.mxu0 0
        %4418 = vmatmul.mubr.bf16.gmra.mrb[0].mxu0 %v2979
        %v4419 = vpop.f32.mrb[0].mxu0
        %v4420 = vadd.f32 0.0, %v4419
        %v4421 = vpop.f32.mrb[0].mxu0
        %v4422 = vadd.f32 0.0, %v4421
        %v4423 = vpop.f32.mrb[0].mxu0
        %v4424 = vadd.f32 0.0, %v4423
        %v4425 = vpop.f32.mrb[0].mxu0
        %v4426 = vadd.f32 0.0, %v4425
        %4427 = vmatprep.mubr.bf16.mxu0 0
        %4428 = vmatmul.mubr.bf16.gmra.mrb[0].mxu0 %v4237
        %v4429 = vpop.f32.mrb[0].mxu0
        %v4430 = vadd.f32 0.0, %v4429
        %v4431 = vpop.f32.mrb[0].mxu0
        %v4432 = vadd.f32 0.0, %v4431
        %v4433 = vpop.f32.mrb[0].mxu0
        %v4434 = vadd.f32 0.0, %v4433
        %v4435 = vpop.f32.mrb[0].mxu0
        %v4436 = vadd.f32 0.0, %v4435
        %4437 = vdwg.mxu0
        %v4438 = vld [vmem:[#allocation2] sm:$0xff]
        %v4439 = vld [vmem:[#allocation2 + $0x8] sm:$0xff]
        %v4440 = vld [vmem:[#allocation2 + $0x10] sm:$0xff]
        %v4441 = vld [vmem:[#allocation2 + $0x18] sm:$0xff]
        %v4442 = vld [vmem:[#allocation2 + $0x20] sm:$0xff]
        %v4443 = vld [vmem:[#allocation2 + $0x28] sm:$0xff]
        %v4444 = vld [vmem:[#allocation2 + $0x30] sm:$0xff]
        %v4445 = vld [vmem:[#allocation2 + $0x38] sm:$0xff]
        %v4446 = vld [vmem:[#allocation2 + $0x40] sm:$0xff]
        %v4447 = vld [vmem:[#allocation2 + $0x48] sm:$0xff]
        %v4448 = vld [vmem:[#allocation2 + $0x50] sm:$0xff]
        %v4449 = vld [vmem:[#allocation2 + $0x58] sm:$0xff]
        %v4450 = vld [vmem:[#allocation2 + $0x60] sm:$0xff]
        %v4451 = vld [vmem:[#allocation2 + $0x68] sm:$0xff]
        %v4452 = vld [vmem:[#allocation2 + $0x70] sm:$0xff]
        %v4453 = vld [vmem:[#allocation2 + $0x78] sm:$0xff]
        %v4454 = vld [vmem:[#allocation2 + $0x80] sm:$0xff]
        %v4455 = vld [vmem:[#allocation2 + $0x88] sm:$0xff]
        %v4456 = vld [vmem:[#allocation2 + $0x90] sm:$0xff]
        %v4457 = vld [vmem:[#allocation2 + $0x98] sm:$0xff]
        %v4458 = vld [vmem:[#allocation2 + $0xa0] sm:$0xff]
        %v4459 = vld [vmem:[#allocation2 + $0xa8] sm:$0xff]
        %v4460 = vld [vmem:[#allocation2 + $0xb0] sm:$0xff]
        %v4461 = vld [vmem:[#allocation2 + $0xb8] sm:$0xff]
        %v4462 = vld [vmem:[#allocation2 + $0xc0] sm:$0xff]
        %v4463 = vld [vmem:[#allocation2 + $0xc8] sm:$0xff]
        %v4464 = vld [vmem:[#allocation2 + $0xd0] sm:$0xff]
        %v4465 = vld [vmem:[#allocation2 + $0xd8] sm:$0xff]
        %v4466 = vld [vmem:[#allocation2 + $0xe0] sm:$0xff]
        %v4467 = vld [vmem:[#allocation2 + $0xe8] sm:$0xff]
        %v4468 = vld [vmem:[#allocation2 + $0xf0] sm:$0xff]
        %v4469 = vld [vmem:[#allocation2 + $0xf8] sm:$0xff]
        %v4470 = vld [vmem:[#allocation2 + $0x100] sm:$0xff]
        %v4471 = vld [vmem:[#allocation2 + $0x108] sm:$0xff]
        %v4472 = vld [vmem:[#allocation2 + $0x110] sm:$0xff]
        %v4473 = vld [vmem:[#allocation2 + $0x118] sm:$0xff]
        %v4474 = vld [vmem:[#allocation2 + $0x120] sm:$0xff]
        %v4475 = vld [vmem:[#allocation2 + $0x128] sm:$0xff]
        %v4476 = vld [vmem:[#allocation2 + $0x130] sm:$0xff]
        %v4477 = vld [vmem:[#allocation2 + $0x138] sm:$0xff]
        %v4478 = vld [vmem:[#allocation2 + $0x140] sm:$0xff]
        %v4479 = vld [vmem:[#allocation2 + $0x148] sm:$0xff]
        %v4480 = vld [vmem:[#allocation2 + $0x150] sm:$0xff]
        %v4481 = vld [vmem:[#allocation2 + $0x158] sm:$0xff]
        %v4482 = vld [vmem:[#allocation2 + $0x160] sm:$0xff]
        %v4483 = vld [vmem:[#allocation2 + $0x168] sm:$0xff]
        %v4484 = vld [vmem:[#allocation2 + $0x170] sm:$0xff]
        %v4485 = vld [vmem:[#allocation2 + $0x178] sm:$0xff]
        %v4486 = vld [vmem:[#allocation2 + $0x180] sm:$0xff]
        %v4487 = vld [vmem:[#allocation2 + $0x188] sm:$0xff]
        %v4488 = vld [vmem:[#allocation2 + $0x190] sm:$0xff]
        %v4489 = vld [vmem:[#allocation2 + $0x198] sm:$0xff]
        %v4490 = vld [vmem:[#allocation2 + $0x1a0] sm:$0xff]
        %v4491 = vld [vmem:[#allocation2 + $0x1a8] sm:$0xff]
        %v4492 = vld [vmem:[#allocation2 + $0x1b0] sm:$0xff]
        %v4493 = vld [vmem:[#allocation2 + $0x1b8] sm:$0xff]
        %v4494 = vld [vmem:[#allocation2 + $0x1c0] sm:$0xff]
        %v4495 = vld [vmem:[#allocation2 + $0x1c8] sm:$0xff]
        %v4496 = vld [vmem:[#allocation2 + $0x1d0] sm:$0xff]
        %v4497 = vld [vmem:[#allocation2 + $0x1d8] sm:$0xff]
        %v4498 = vld [vmem:[#allocation2 + $0x1e0] sm:$0xff]
        %v4499 = vld [vmem:[#allocation2 + $0x1e8] sm:$0xff]
        %v4500 = vld [vmem:[#allocation2 + $0x1f0] sm:$0xff]
        %v4501 = vld [vmem:[#allocation2 + $0x1f8] sm:$0xff]
        %v4502 = vadd.f32 %v4438, %v4280
        %v4503 = vadd.f32 %v4439, %v4282
        %v4504 = vadd.f32 %v4440, %v4284
        %v4505 = vadd.f32 %v4441, %v4286
        %v4506 = vadd.f32 %v4442, %v4290
        %v4507 = vadd.f32 %v4443, %v4292
        %v4508 = vadd.f32 %v4444, %v4294
        %v4509 = vadd.f32 %v4445, %v4296
        %v4510 = vadd.f32 %v4446, %v4300
        %v4511 = vadd.f32 %v4447, %v4302
        %v4512 = vadd.f32 %v4448, %v4304
        %v4513 = vadd.f32 %v4449, %v4306
        %v4514 = vadd.f32 %v4450, %v4310
        %v4515 = vadd.f32 %v4451, %v4312
        %v4516 = vadd.f32 %v4452, %v4314
        %v4517 = vadd.f32 %v4453, %v4316
        %v4518 = vadd.f32 %v4454, %v4320
        %v4519 = vadd.f32 %v4455, %v4322
        %v4520 = vadd.f32 %v4456, %v4324
        %v4521 = vadd.f32 %v4457, %v4326
        %v4522 = vadd.f32 %v4458, %v4330
        %v4523 = vadd.f32 %v4459, %v4332
        %v4524 = vadd.f32 %v4460, %v4334
        %v4525 = vadd.f32 %v4461, %v4336
        %v4526 = vadd.f32 %v4462, %v4340
        %v4527 = vadd.f32 %v4463, %v4342
        %v4528 = vadd.f32 %v4464, %v4344
        %v4529 = vadd.f32 %v4465, %v4346
        %v4530 = vadd.f32 %v4466, %v4350
        %v4531 = vadd.f32 %v4467, %v4352
        %v4532 = vadd.f32 %v4468, %v4354
        %v4533 = vadd.f32 %v4469, %v4356
        %v4534 = vadd.f32 %v4470, %v4360
        %v4535 = vadd.f32 %v4471, %v4362
        %v4536 = vadd.f32 %v4472, %v4364
        %v4537 = vadd.f32 %v4473, %v4366
        %v4538 = vadd.f32 %v4474, %v4370
        %v4539 = vadd.f32 %v4475, %v4372
        %v4540 = vadd.f32 %v4476, %v4374
        %v4541 = vadd.f32 %v4477, %v4376
        %v4542 = vadd.f32 %v4478, %v4380
        %v4543 = vadd.f32 %v4479, %v4382
        %v4544 = vadd.f32 %v4480, %v4384
        %v4545 = vadd.f32 %v4481, %v4386
        %v4546 = vadd.f32 %v4482, %v4390
        %v4547 = vadd.f32 %v4483, %v4392
        %v4548 = vadd.f32 %v4484, %v4394
        %v4549 = vadd.f32 %v4485, %v4396
        %v4550 = vadd.f32 %v4486, %v4400
        %v4551 = vadd.f32 %v4487, %v4402
        %v4552 = vadd.f32 %v4488, %v4404
        %v4553 = vadd.f32 %v4489, %v4406
        %v4554 = vadd.f32 %v4490, %v4410
        %v4555 = vadd.f32 %v4491, %v4412
        %v4556 = vadd.f32 %v4492, %v4414
        %v4557 = vadd.f32 %v4493, %v4416
        %v4558 = vadd.f32 %v4494, %v4420
        %v4559 = vadd.f32 %v4495, %v4422
        %v4560 = vadd.f32 %v4496, %v4424
        %v4561 = vadd.f32 %v4497, %v4426
        %v4562 = vadd.f32 %v4498, %v4430
        %v4563 = vadd.f32 %v4499, %v4432
        %v4564 = vadd.f32 %v4500, %v4434
        %v4565 = vadd.f32 %v4501, %v4436
        %4566 = vst [vmem:[#allocation2] sm:$0xff] %v4502
        %4567 = vst [vmem:[#allocation2 + $0x8] sm:$0xff] %v4503
        %4568 = vst [vmem:[#allocation2 + $0x10] sm:$0xff] %v4504
        %4569 = vst [vmem:[#allocation2 + $0x18] sm:$0xff] %v4505
        %4570 = vst [vmem:[#allocation2 + $0x20] sm:$0xff] %v4506
        %4571 = vst [vmem:[#allocation2 + $0x28] sm:$0xff] %v4507
        %4572 = vst [vmem:[#allocation2 + $0x30] sm:$0xff] %v4508
        %4573 = vst [vmem:[#allocation2 + $0x38] sm:$0xff] %v4509
        %4574 = vst [vmem:[#allocation2 + $0x40] sm:$0xff] %v4510
        %4575 = vst [vmem:[#allocation2 + $0x48] sm:$0xff] %v4511
        %4576 = vst [vmem:[#allocation2 + $0x50] sm:$0xff] %v4512
        %4577 = vst [vmem:[#allocation2 + $0x58] sm:$0xff] %v4513
        %4578 = vst [vmem:[#allocation2 + $0x60] sm:$0xff] %v4514
        %4579 = vst [vmem:[#allocation2 + $0x68] sm:$0xff] %v4515
        %4580 = vst [vmem:[#allocation2 + $0x70] sm:$0xff] %v4516
        %4581 = vst [vmem:[#allocation2 + $0x78] sm:$0xff] %v4517
        %4582 = vst [vmem:[#allocation2 + $0x80] sm:$0xff] %v4518
        %4583 = vst [vmem:[#allocation2 + $0x88] sm:$0xff] %v4519
        %4584 = vst [vmem:[#allocation2 + $0x90] sm:$0xff] %v4520
        %4585 = vst [vmem:[#allocation2 + $0x98] sm:$0xff] %v4521
        %4586 = vst [vmem:[#allocation2 + $0xa0] sm:$0xff] %v4522
        %4587 = vst [vmem:[#allocation2 + $0xa8] sm:$0xff] %v4523
        %4588 = vst [vmem:[#allocation2 + $0xb0] sm:$0xff] %v4524
        %4589 = vst [vmem:[#allocation2 + $0xb8] sm:$0xff] %v4525
        %4590 = vst [vmem:[#allocation2 + $0xc0] sm:$0xff] %v4526
        %4591 = vst [vmem:[#allocation2 + $0xc8] sm:$0xff] %v4527
        %4592 = vst [vmem:[#allocation2 + $0xd0] sm:$0xff] %v4528
        %4593 = vst [vmem:[#allocation2 + $0xd8] sm:$0xff] %v4529
        %4594 = vst [vmem:[#allocation2 + $0xe0] sm:$0xff] %v4530
        %4595 = vst [vmem:[#allocation2 + $0xe8] sm:$0xff] %v4531
        %4596 = vst [vmem:[#allocation2 + $0xf0] sm:$0xff] %v4532
        %4597 = vst [vmem:[#allocation2 + $0xf8] sm:$0xff] %v4533
        %4598 = vst [vmem:[#allocation2 + $0x100] sm:$0xff] %v4534
        %4599 = vst [vmem:[#allocation2 + $0x108] sm:$0xff] %v4535
        %4600 = vst [vmem:[#allocation2 + $0x110] sm:$0xff] %v4536
        %4601 = vst [vmem:[#allocation2 + $0x118] sm:$0xff] %v4537
        %4602 = vst [vmem:[#allocation2 + $0x120] sm:$0xff] %v4538
        %4603 = vst [vmem:[#allocation2 + $0x128] sm:$0xff] %v4539
        %4604 = vst [vmem:[#allocation2 + $0x130] sm:$0xff] %v4540
        %4605 = vst [vmem:[#allocation2 + $0x138] sm:$0xff] %v4541
        %4606 = vst [vmem:[#allocation2 + $0x140] sm:$0xff] %v4542
        %4607 = vst [vmem:[#allocation2 + $0x148] sm:$0xff] %v4543
        %4608 = vst [vmem:[#allocation2 + $0x150] sm:$0xff] %v4544
        %4609 = vst [vmem:[#allocation2 + $0x158] sm:$0xff] %v4545
        %4610 = vst [vmem:[#allocation2 + $0x160] sm:$0xff] %v4546
        %4611 = vst [vmem:[#allocation2 + $0x168] sm:$0xff] %v4547
        %4612 = vst [vmem:[#allocation2 + $0x170] sm:$0xff] %v4548
        %4613 = vst [vmem:[#allocation2 + $0x178] sm:$0xff] %v4549
        %4614 = vst [vmem:[#allocation2 + $0x180] sm:$0xff] %v4550
        %4615 = vst [vmem:[#allocation2 + $0x188] sm:$0xff] %v4551
        %4616 = vst [vmem:[#allocation2 + $0x190] sm:$0xff] %v4552
        %4617 = vst [vmem:[#allocation2 + $0x198] sm:$0xff] %v4553
        %4618 = vst [vmem:[#allocation2 + $0x1a0] sm:$0xff] %v4554
        %4619 = vst [vmem:[#allocation2 + $0x1a8] sm:$0xff] %v4555
        %4620 = vst [vmem:[#allocation2 + $0x1b0] sm:$0xff] %v4556
        %4621 = vst [vmem:[#allocation2 + $0x1b8] sm:$0xff] %v4557
        %4622 = vst [vmem:[#allocation2 + $0x1c0] sm:$0xff] %v4558
        %4623 = vst [vmem:[#allocation2 + $0x1c8] sm:$0xff] %v4559
        %4624 = vst [vmem:[#allocation2 + $0x1d0] sm:$0xff] %v4560
        %4625 = vst [vmem:[#allocation2 + $0x1d8] sm:$0xff] %v4561
        %4626 = vst [vmem:[#allocation2 + $0x1e0] sm:$0xff] %v4562
        %4627 = vst [vmem:[#allocation2 + $0x1e8] sm:$0xff] %v4563
        %4628 = vst [vmem:[#allocation2 + $0x1f0] sm:$0xff] %v4564
        %4629 = vst [vmem:[#allocation2 + $0x1f8] sm:$0xff] %v4565
        %v4630 = vld [vmem:[#allocation2] sm:$0xff]
        %v4631 = vld [vmem:[#allocation2 + $0x8] sm:$0xff]
        %v4632 = vld [vmem:[#allocation2 + $0x10] sm:$0xff]
        %v4633 = vld [vmem:[#allocation2 + $0x18] sm:$0xff]
        %v4634 = vld [vmem:[#allocation2 + $0x20] sm:$0xff]
        %v4635 = vld [vmem:[#allocation2 + $0x28] sm:$0xff]
        %v4636 = vld [vmem:[#allocation2 + $0x30] sm:$0xff]
        %v4637 = vld [vmem:[#allocation2 + $0x38] sm:$0xff]
        %v4638 = vld [vmem:[#allocation2 + $0x40] sm:$0xff]
        %v4639 = vld [vmem:[#allocation2 + $0x48] sm:$0xff]
        %v4640 = vld [vmem:[#allocation2 + $0x50] sm:$0xff]
        %v4641 = vld [vmem:[#allocation2 + $0x58] sm:$0xff]
        %v4642 = vld [vmem:[#allocation2 + $0x60] sm:$0xff]
        %v4643 = vld [vmem:[#allocation2 + $0x68] sm:$0xff]
        %v4644 = vld [vmem:[#allocation2 + $0x70] sm:$0xff]
        %v4645 = vld [vmem:[#allocation2 + $0x78] sm:$0xff]
        %v4646 = vld [vmem:[#allocation2 + $0x80] sm:$0xff]
        %v4647 = vld [vmem:[#allocation2 + $0x88] sm:$0xff]
        %v4648 = vld [vmem:[#allocation2 + $0x90] sm:$0xff]
        %v4649 = vld [vmem:[#allocation2 + $0x98] sm:$0xff]
        %v4650 = vld [vmem:[#allocation2 + $0xa0] sm:$0xff]
        %v4651 = vld [vmem:[#allocation2 + $0xa8] sm:$0xff]
        %v4652 = vld [vmem:[#allocation2 + $0xb0] sm:$0xff]
        %v4653 = vld [vmem:[#allocation2 + $0xb8] sm:$0xff]
        %v4654 = vld [vmem:[#allocation2 + $0xc0] sm:$0xff]
        %v4655 = vld [vmem:[#allocation2 + $0xc8] sm:$0xff]
        %v4656 = vld [vmem:[#allocation2 + $0xd0] sm:$0xff]
        %v4657 = vld [vmem:[#allocation2 + $0xd8] sm:$0xff]
        %v4658 = vld [vmem:[#allocation2 + $0xe0] sm:$0xff]
        %v4659 = vld [vmem:[#allocation2 + $0xe8] sm:$0xff]
        %v4660 = vld [vmem:[#allocation2 + $0xf0] sm:$0xff]
        %v4661 = vld [vmem:[#allocation2 + $0xf8] sm:$0xff]
        %v4662 = vld [vmem:[#allocation2 + $0x100] sm:$0xff]
        %v4663 = vld [vmem:[#allocation2 + $0x108] sm:$0xff]
        %v4664 = vld [vmem:[#allocation2 + $0x110] sm:$0xff]
        %v4665 = vld [vmem:[#allocation2 + $0x118] sm:$0xff]
        %v4666 = vld [vmem:[#allocation2 + $0x120] sm:$0xff]
        %v4667 = vld [vmem:[#allocation2 + $0x128] sm:$0xff]
        %v4668 = vld [vmem:[#allocation2 + $0x130] sm:$0xff]
        %v4669 = vld [vmem:[#allocation2 + $0x138] sm:$0xff]
        %v4670 = vld [vmem:[#allocation2 + $0x140] sm:$0xff]
        %v4671 = vld [vmem:[#allocation2 + $0x148] sm:$0xff]
        %v4672 = vld [vmem:[#allocation2 + $0x150] sm:$0xff]
        %v4673 = vld [vmem:[#allocation2 + $0x158] sm:$0xff]
        %v4674 = vld [vmem:[#allocation2 + $0x160] sm:$0xff]
        %v4675 = vld [vmem:[#allocation2 + $0x168] sm:$0xff]
        %v4676 = vld [vmem:[#allocation2 + $0x170] sm:$0xff]
        %v4677 = vld [vmem:[#allocation2 + $0x178] sm:$0xff]
        %v4678 = vld [vmem:[#allocation2 + $0x180] sm:$0xff]
        %v4679 = vld [vmem:[#allocation2 + $0x188] sm:$0xff]
        %v4680 = vld [vmem:[#allocation2 + $0x190] sm:$0xff]
        %v4681 = vld [vmem:[#allocation2 + $0x198] sm:$0xff]
        %v4682 = vld [vmem:[#allocation2 + $0x1a0] sm:$0xff]
        %v4683 = vld [vmem:[#allocation2 + $0x1a8] sm:$0xff]
        %v4684 = vld [vmem:[#allocation2 + $0x1b0] sm:$0xff]
        %v4685 = vld [vmem:[#allocation2 + $0x1b8] sm:$0xff]
        %v4686 = vld [vmem:[#allocation2 + $0x1c0] sm:$0xff]
        %v4687 = vld [vmem:[#allocation2 + $0x1c8] sm:$0xff]
        %v4688 = vld [vmem:[#allocation2 + $0x1d0] sm:$0xff]
        %v4689 = vld [vmem:[#allocation2 + $0x1d8] sm:$0xff]
        %v4690 = vld [vmem:[#allocation2 + $0x1e0] sm:$0xff]
        %v4691 = vld [vmem:[#allocation2 + $0x1e8] sm:$0xff]
        %v4692 = vld [vmem:[#allocation2 + $0x1f0] sm:$0xff]
        %v4693 = vld [vmem:[#allocation2 + $0x1f8] sm:$0xff]
        %v4694 = vadd.f32 %v4630, %v4632
        %v4695 = vadd.f32 %v4694, %v4634
        %v4696 = vadd.f32 %v4695, %v4636
        %v4697 = vadd.f32 %v4696, %v4638
        %v4698 = vadd.f32 %v4697, %v4640
        %v4699 = vadd.f32 %v4698, %v4642
        %v4700 = vadd.f32 %v4699, %v4644
        %v4701 = vadd.f32 %v4700, %v4646
        %v4702 = vadd.f32 %v4701, %v4648
        %v4703 = vadd.f32 %v4702, %v4650
        %v4704 = vadd.f32 %v4703, %v4652
        %v4705 = vadd.f32 %v4704, %v4654
        %v4706 = vadd.f32 %v4705, %v4656
        %v4707 = vadd.f32 %v4706, %v4658
        %v4708 = vadd.f32 %v4707, %v4660
        %v4709 = vadd.f32 %v4708, %v4662
        %v4710 = vadd.f32 %v4709, %v4664
        %v4711 = vadd.f32 %v4710, %v4666
        %v4712 = vadd.f32 %v4711, %v4668
        %v4713 = vadd.f32 %v4712, %v4670
        %v4714 = vadd.f32 %v4713, %v4672
        %v4715 = vadd.f32 %v4714, %v4674
        %v4716 = vadd.f32 %v4715, %v4676
        %v4717 = vadd.f32 %v4716, %v4678
        %v4718 = vadd.f32 %v4717, %v4680
        %v4719 = vadd.f32 %v4718, %v4682
        %v4720 = vadd.f32 %v4719, %v4684
        %v4721 = vadd.f32 %v4720, %v4686
        %v4722 = vadd.f32 %v4721, %v4688
        %v4723 = vadd.f32 %v4722, %v4690
        %v4724 = vadd.f32 %v4723, %v4692
        %v4725 = vrot.slane %v4724, 4
        %v4726 = vadd.f32 %v4724, %v4725
        %v4727 = vrot.slane %v4726, 2
        %v4728 = vadd.f32 %v4726, %v4727
        %v4729 = vrot.slane %v4728, 1
        %v4730 = vadd.f32 %v4728, %v4729
        %v4731 = vadd.f32 %v4631, %v4633
        %v4732 = vadd.f32 %v4731, %v4635
        %v4733 = vadd.f32 %v4732, %v4637
        %v4734 = vadd.f32 %v4733, %v4639
        %v4735 = vadd.f32 %v4734, %v4641
        %v4736 = vadd.f32 %v4735, %v4643
        %v4737 = vadd.f32 %v4736, %v4645
        %v4738 = vadd.f32 %v4737, %v4647
        %v4739 = vadd.f32 %v4738, %v4649
        %v4740 = vadd.f32 %v4739, %v4651
        %v4741 = vadd.f32 %v4740, %v4653
        %v4742 = vadd.f32 %v4741, %v4655
        %v4743 = vadd.f32 %v4742, %v4657
        %v4744 = vadd.f32 %v4743, %v4659
        %v4745 = vadd.f32 %v4744, %v4661
        %v4746 = vadd.f32 %v4745, %v4663
        %v4747 = vadd.f32 %v4746, %v4665
        %v4748 = vadd.f32 %v4747, %v4667
        %v4749 = vadd.f32 %v4748, %v4669
        %v4750 = vadd.f32 %v4749, %v4671
        %v4751 = vadd.f32 %v4750, %v4673
        %v4752 = vadd.f32 %v4751, %v4675
        %v4753 = vadd.f32 %v4752, %v4677
        %v4754 = vadd.f32 %v4753, %v4679
        %v4755 = vadd.f32 %v4754, %v4681
        %v4756 = vadd.f32 %v4755, %v4683
        %v4757 = vadd.f32 %v4756, %v4685
        %v4758 = vadd.f32 %v4757, %v4687
        %v4759 = vadd.f32 %v4758, %v4689
        %v4760 = vadd.f32 %v4759, %v4691
        %v4761 = vadd.f32 %v4760, %v4693
        %v4762 = vrot.slane %v4761, 4
        %v4763 = vadd.f32 %v4761, %v4762
        %v4764 = vrot.slane %v4763, 2
        %v4765 = vadd.f32 %v4763, %v4764
        %v4766 = vrot.slane %v4765, 1
        %v4767 = vadd.f32 %v4765, %v4766
        %v4768 = vmul.f32 %v4630, %v4630
        %v4769 = vmul.f32 %v4631, %v4631
        %v4770 = vmul.f32 %v4632, %v4632
        %v4771 = vmul.f32 %v4633, %v4633
        %v4772 = vmul.f32 %v4634, %v4634
        %v4773 = vmul.f32 %v4635, %v4635
        %v4774 = vmul.f32 %v4636, %v4636
        %v4775 = vmul.f32 %v4637, %v4637
        %v4776 = vmul.f32 %v4638, %v4638
        %v4777 = vmul.f32 %v4639, %v4639
        %v4778 = vmul.f32 %v4640, %v4640
        %v4779 = vmul.f32 %v4641, %v4641
        %v4780 = vmul.f32 %v4642, %v4642
        %v4781 = vmul.f32 %v4643, %v4643
        %v4782 = vmul.f32 %v4644, %v4644
        %v4783 = vmul.f32 %v4645, %v4645
        %v4784 = vmul.f32 %v4646, %v4646
        %v4785 = vmul.f32 %v4647, %v4647
        %v4786 = vmul.f32 %v4648, %v4648
        %v4787 = vmul.f32 %v4649, %v4649
        %v4788 = vmul.f32 %v4650, %v4650
        %v4789 = vmul.f32 %v4651, %v4651
        %v4790 = vmul.f32 %v4652, %v4652
        %v4791 = vmul.f32 %v4653, %v4653
        %v4792 = vmul.f32 %v4654, %v4654
        %v4793 = vmul.f32 %v4655, %v4655
        %v4794 = vmul.f32 %v4656, %v4656
        %v4795 = vmul.f32 %v4657, %v4657
        %v4796 = vmul.f32 %v4658, %v4658
        %v4797 = vmul.f32 %v4659, %v4659
        %v4798 = vmul.f32 %v4660, %v4660
        %v4799 = vmul.f32 %v4661, %v4661
        %v4800 = vmul.f32 %v4662, %v4662
        %v4801 = vmul.f32 %v4663, %v4663
        %v4802 = vmul.f32 %v4664, %v4664
        %v4803 = vmul.f32 %v4665, %v4665
        %v4804 = vmul.f32 %v4666, %v4666
        %v4805 = vmul.f32 %v4667, %v4667
        %v4806 = vmul.f32 %v4668, %v4668
        %v4807 = vmul.f32 %v4669, %v4669
        %v4808 = vmul.f32 %v4670, %v4670
        %v4809 = vmul.f32 %v4671, %v4671
        %v4810 = vmul.f32 %v4672, %v4672
        %v4811 = vmul.f32 %v4673, %v4673
        %v4812 = vmul.f32 %v4674, %v4674
        %v4813 = vmul.f32 %v4675, %v4675
        %v4814 = vmul.f32 %v4676, %v4676
        %v4815 = vmul.f32 %v4677, %v4677
        %v4816 = vmul.f32 %v4678, %v4678
        %v4817 = vmul.f32 %v4679, %v4679
        %v4818 = vmul.f32 %v4680, %v4680
        %v4819 = vmul.f32 %v4681, %v4681
        %v4820 = vmul.f32 %v4682, %v4682
        %v4821 = vmul.f32 %v4683, %v4683
        %v4822 = vmul.f32 %v4684, %v4684
        %v4823 = vmul.f32 %v4685, %v4685
        %v4824 = vmul.f32 %v4686, %v4686
        %v4825 = vmul.f32 %v4687, %v4687
        %v4826 = vmul.f32 %v4688, %v4688
        %v4827 = vmul.f32 %v4689, %v4689
        %v4828 = vmul.f32 %v4690, %v4690
        %v4829 = vmul.f32 %v4691, %v4691
        %v4830 = vmul.f32 %v4692, %v4692
        %v4831 = vmul.f32 %v4693, %v4693
        %v4832 = vadd.f32 %v4768, %v4770
        %v4833 = vadd.f32 %v4832, %v4772
        %v4834 = vadd.f32 %v4833, %v4774
        %v4835 = vadd.f32 %v4834, %v4776
        %v4836 = vadd.f32 %v4835, %v4778
        %v4837 = vadd.f32 %v4836, %v4780
        %v4838 = vadd.f32 %v4837, %v4782
        %v4839 = vadd.f32 %v4838, %v4784
        %v4840 = vadd.f32 %v4839, %v4786
        %v4841 = vadd.f32 %v4840, %v4788
        %v4842 = vadd.f32 %v4841, %v4790
        %v4843 = vadd.f32 %v4842, %v4792
        %v4844 = vadd.f32 %v4843, %v4794
        %v4845 = vadd.f32 %v4844, %v4796
        %v4846 = vadd.f32 %v4845, %v4798
        %v4847 = vadd.f32 %v4846, %v4800
        %v4848 = vadd.f32 %v4847, %v4802
        %v4849 = vadd.f32 %v4848, %v4804
        %v4850 = vadd.f32 %v4849, %v4806
        %v4851 = vadd.f32 %v4850, %v4808
        %v4852 = vadd.f32 %v4851, %v4810
        %v4853 = vadd.f32 %v4852, %v4812
        %v4854 = vadd.f32 %v4853, %v4814
        %v4855 = vadd.f32 %v4854, %v4816
        %v4856 = vadd.f32 %v4855, %v4818
        %v4857 = vadd.f32 %v4856, %v4820
        %v4858 = vadd.f32 %v4857, %v4822
        %v4859 = vadd.f32 %v4858, %v4824
        %v4860 = vadd.f32 %v4859, %v4826
        %v4861 = vadd.f32 %v4860, %v4828
        %v4862 = vadd.f32 %v4861, %v4830
        %v4863 = vrot.slane %v4862, 4
        %v4864 = vadd.f32 %v4862, %v4863
        %v4865 = vrot.slane %v4864, 2
        %v4866 = vadd.f32 %v4864, %v4865
        %v4867 = vrot.slane %v4866, 1
        %v4868 = vadd.f32 %v4866, %v4867
        %v4869 = vadd.f32 %v4769, %v4771
        %v4870 = vadd.f32 %v4869, %v4773
        %v4871 = vadd.f32 %v4870, %v4775
        %v4872 = vadd.f32 %v4871, %v4777
        %v4873 = vadd.f32 %v4872, %v4779
        %v4874 = vadd.f32 %v4873, %v4781
        %v4875 = vadd.f32 %v4874, %v4783
        %v4876 = vadd.f32 %v4875, %v4785
        %v4877 = vadd.f32 %v4876, %v4787
        %v4878 = vadd.f32 %v4877, %v4789
        %v4879 = vadd.f32 %v4878, %v4791
        %v4880 = vadd.f32 %v4879, %v4793
        %v4881 = vadd.f32 %v4880, %v4795
        %v4882 = vadd.f32 %v4881, %v4797
        %v4883 = vadd.f32 %v4882, %v4799
        %v4884 = vadd.f32 %v4883, %v4801
        %v4885 = vadd.f32 %v4884, %v4803
        %v4886 = vadd.f32 %v4885, %v4805
        %v4887 = vadd.f32 %v4886, %v4807
        %v4888 = vadd.f32 %v4887, %v4809
        %v4889 = vadd.f32 %v4888, %v4811
        %v4890 = vadd.f32 %v4889, %v4813
        %v4891 = vadd.f32 %v4890, %v4815
        %v4892 = vadd.f32 %v4891, %v4817
        %v4893 = vadd.f32 %v4892, %v4819
        %v4894 = vadd.f32 %v4893, %v4821
        %v4895 = vadd.f32 %v4894, %v4823
        %v4896 = vadd.f32 %v4895, %v4825
        %v4897 = vadd.f32 %v4896, %v4827
        %v4898 = vadd.f32 %v4897, %v4829
        %v4899 = vadd.f32 %v4898, %v4831
        %v4900 = vrot.slane %v4899, 4
        %v4901 = vadd.f32 %v4899, %v4900
        %v4902 = vrot.slane %v4901, 2
        %v4903 = vadd.f32 %v4901, %v4902
        %v4904 = vrot.slane %v4903, 1
        %v4905 = vadd.f32 %v4903, %v4904
        %vm4906 = vcmask 1040384
        %v4907 = vsel %vm4906, %v4730, %v4868
        %v4908 = vsel %vm4906, %v4767, %v4905
        %v4911 = vcombine.low %v4907, %v4908
        %v4913 = vunpack.c.l.s4 1983009808
        %v4914 = vunpack.c.0.s8 %v4913
        %v4915 = vlaneseq
        %v4916 = vshrl.u32 %v4915, 7
        %v4917 = vsub.s32 %v4914, %v4916
        %v4918 = vrot.slane %v4911, %v4917
        %4920 = vst [vmem:[%s136] sm:$0xf] %v4918
        %s4921 = sand.u32 %s71, 1
        %s4922 = scalar_lea.sflag [#allocation4], %s4921
        %s4923 = sand.u32 %s71, 1
        %s4924 = smul.addr %s4923, 4
        %s4925 = scalar_lea.vmem [#allocation3], %s4924
        // Predicated region
        $region29: #{tpu_custom_call.1} parent=27 // pred_check
          %p4926 = pneg %p81
        $region30: #{tpu_custom_call.1} parent=27 // pred_check_branch
          %4928 = sbr.rel (%p4926) target = $region32
        $region31: #{tpu_custom_call.1} parent=27 // pred_region
          %s4930 = ssub.s32 64, 64
          %4931 = vsyncadd %s4922, %s4930
          %s4932 = smul.addr %s16, 2
          %s4933 = smul.addr %s4932, 32
          %s4934 = scalar_lea.hbm %s2, %s4933
          %s4936 = sshll.u32 %s4925, 4
          %s4937 = int_to_ptr.vmem [resolvable:$true] %s4936
          %4939 = dma.vmem_to_hbm [thread:$0]  %s4937, 64, %s4934, %s4922
        $region32: #{tpu_custom_call.1} parent=27 // pred_fallthru
          _
      $region28: #{tpu_custom_call.1} parent=5 // pred_fallthru
        _
      %p4940 = scmp.le.s32.totalorder 2, %s11
      // Predicated region
      $region33: #{tpu_custom_call.1} parent=5 // pred_check
        %p4941 = pneg %p4940
      $region34: #{tpu_custom_call.1} parent=5 // pred_check_branch
        %4943 = sbr.rel (%p4941) target = $region36
      $region35: #{tpu_custom_call.1} parent=5 // pred_region
        %s4944 = ssub.s32 %s11, 2
        // Predicated region
        $region37: #{tpu_custom_call.1} parent=35 // pred_check
          %p4945 = pneg %p87
        $region38: #{tpu_custom_call.1} parent=35 // pred_check_branch
          %4947 = sbr.rel (%p4945) target = $region40
        $region39: #{tpu_custom_call.1} parent=35 // pred_region
          %s4948 = sand.u32 %s72, 1
          %s4949 = scalar_lea.sflag [#allocation4], %s4948
          %s4950 = sand.u32 %s72, 1
          %s4951 = smul.addr %s4950, 4
          %s4952 = scalar_lea.vmem [#allocation3], %s4951
          %4953 = dma.done %s4949, 64
        $region40: #{tpu_custom_call.1} parent=35 // pred_fallthru
          _
      $region36: #{tpu_custom_call.1} parent=5 // pred_fallthru
        _
    $region6: #{tpu_custom_call.1} parent=1 // loop_footer
      %s15 = sadd.s32 1, %s11
    $region7: #{tpu_custom_call.1} parent=1 // loop_footer_branch
      %10 = sbr.rel target = $region3
    $region8: #{tpu_custom_call.1} parent=1 // loop_exit
      _
    %4954 = vsyncpa [#allocation4], 1
    %s4955 = scalar_lea.sflag [#allocation4], 1
    %4956 = vsyncpa %s4955, 1

</llo_original>
